<compile_context>
chip_gen: v6e
topology: v6e:2x2x1
jax: 0.10.0
libtpu: 0.0.40
codegen_flags: <defaults>
</compile_context>

<pallas_src>
import functools
import math

import jax
import jax.numpy as jnp
from jax import lax
from jax.experimental import pallas as pl
from jax.experimental.pallas import tpu as pltpu  # noqa: F401


NEG_INF = -1e30


# ---------------------------------------------------------------------------
# In-kernel building blocks (pure functions of loaded values; all shape / head
# constants are Python ints/floats -> no captured traced constants).
# ---------------------------------------------------------------------------
def _elu(y):
    # clamp the unselected branch so exp never sees large positives
    return jnp.where(y > 0, y, jnp.exp(jnp.minimum(y, 0.0)) - 1.0)


def _gat_layer(x, adj_mask, w, att_src, att_dst, bias, *, heads, out_dim, concat):
    """PyG GATConv on a dense adjacency mask (self-loops included in the mask),
    negative_slope=0.2, bias added after aggregation."""
    h = jnp.dot(x, w, preferred_element_type=jnp.float32)        # [N, heads*out_dim]
    head_outs = []
    for hd in range(heads):
        xh = h[:, hd * out_dim:(hd + 1) * out_dim]               # [N, F]
        asrc_h = att_src[hd:hd + 1, :]                           # [1, F]
        adst_h = att_dst[hd:hd + 1, :]                           # [1, F]
        # a_dst as a column, a_src as a row -> broadcast add; no transposes.
        a_dst = lax.dot_general(xh, adst_h, (((1,), (1,)), ((), ())),
                                preferred_element_type=jnp.float32)   # [N, 1]
        a_src = lax.dot_general(asrc_h, xh, (((1,), (1,)), ((), ())),
                                preferred_element_type=jnp.float32)   # [1, N]
        e = a_dst + a_src                                        # e[i,j] = a_dst[i] + a_src[j]
        e = jnp.where(e > 0, e, 0.2 * e)                         # leaky_relu(0.2)
        e = jnp.where(adj_mask, e, NEG_INF)
        m = jnp.max(e, axis=-1, keepdims=True)
        p = jnp.where(adj_mask, jnp.exp(e - m), 0.0)
        denom = jnp.sum(p, axis=-1, keepdims=True)
        alpha = p * pl.reciprocal(denom, approx=True)            # softmax on EUP
        head_outs.append(jnp.dot(alpha, xh, preferred_element_type=jnp.float32))
    if concat:
        out = jnp.concatenate(head_outs, axis=-1)                # lane-dense [N, heads*F]
    else:
        out = head_outs[0]
        for ho in head_outs[1:]:
            out = out + ho
        out = out * (1.0 / heads)
    return out + bias


def _mha_residual_layernorm(x2, in_w, in_b, out_w, out_b, ln_w, ln_b,
                            *, num_heads, eps):
    """torch.nn.MultiheadAttention(q=k=v=x2) + residual + LayerNorm, fused."""
    n, e = x2.shape
    dh = e // num_heads
    scale = 1.0 / math.sqrt(dh)                                  # static Python float
    qkv = jnp.dot(x2, in_w, preferred_element_type=jnp.float32) + in_b   # [N, 3E]
    head_outs = []
    for hd in range(num_heads):
        q = qkv[:, hd * dh:(hd + 1) * dh]
        k = qkv[:, e + hd * dh:e + (hd + 1) * dh]
        v = qkv[:, 2 * e + hd * dh:2 * e + (hd + 1) * dh]
        s = lax.dot_general(q, k, (((1,), (1,)), ((), ())),
                            preferred_element_type=jnp.float32) * scale  # [N, N]
        m = jnp.max(s, axis=-1, keepdims=True)
        p = jnp.exp(s - m)
        denom = jnp.sum(p, axis=-1, keepdims=True)
        attn = p * pl.reciprocal(denom, approx=True)
        head_outs.append(jnp.dot(attn, v, preferred_element_type=jnp.float32))
    o = jnp.concatenate(head_outs, axis=-1)                               # [N, E]
    attended = jnp.dot(o, out_w, preferred_element_type=jnp.float32) + out_b
    y = attended + x2                                                     # residual
    mu = jnp.mean(y, axis=-1, keepdims=True)
    var = jnp.mean((y - mu) ** 2, axis=-1, keepdims=True)
    return (y - mu) * lax.rsqrt(var + eps) * ln_w + ln_b


# ---------------------------------------------------------------------------
# The single fused kernel
# ---------------------------------------------------------------------------
def _tga_kernel(
    x_ref, adj_ref,
    w1_ref, as1_ref, ad1_ref, b1_ref,
    w2_ref, as2_ref, ad2_ref, b2_ref,
    w3_ref, as3_ref, ad3_ref, b3_ref,
    inw_ref, inb_ref, outw_ref, outb_ref,
    lnw_ref, lnb_ref,
    o_ref,
    *, heads, hidden, out_dim, eps,
):
    adj_mask = adj_ref[...] > 0
    x = x_ref[...]

    # gat1 + ELU    (dropout = identity at inference)
    x1 = _elu(_gat_layer(x, adj_mask, w1_ref[...], as1_ref[...], ad1_ref[...],
                         b1_ref[...], heads=heads, out_dim=hidden, concat=True))
    # gat2 + ELU
    x2 = _elu(_gat_layer(x1, adj_mask, w2_ref[...], as2_ref[...], ad2_ref[...],
                         b2_ref[...], heads=heads, out_dim=hidden, concat=True))
    # subtree multi-head self-attention + residual + LayerNorm
    x2_att = _mha_residual_layernorm(x2, inw_ref[...], inb_ref[...],
                                     outw_ref[...], outb_ref[...],
                                     lnw_ref[...], lnb_ref[...],
                                     num_heads=heads, eps=eps)
    # gat3 (single head, concat=False, no activation)
    x3 = _gat_layer(x2_att, adj_mask, w3_ref[...], as3_ref[...], ad3_ref[...],
                    b3_ref[...], heads=1, out_dim=out_dim, concat=False)
    o_ref[...] = x3


def temporal_graph_attention(params, x, adj, *, heads, hidden, out_dim):
    """Fused forward pass. adj[i, j] = 1 iff edge j -> i (self-loops included)."""
    n = x.shape[0]
    e = heads * hidden
    kernel = functools.partial(_tga_kernel, heads=heads, hidden=hidden,
                               out_dim=out_dim, eps=1e-5)
    # No grid: the whole problem is one block; default BlockSpecs map every
    # (2-D) operand fully into VMEM.
    return pl.pallas_call(
        kernel,
        out_shape=jax.ShapeDtypeStruct((n, out_dim), jnp.float32),
    )(
        x.astype(jnp.float32), adj.astype(jnp.float32),
        params["gat1"]["w"], params["gat1"]["att_src"], params["gat1"]["att_dst"],
        params["gat1"]["bias"].reshape(1, e),
        params["gat2"]["w"], params["gat2"]["att_src"], params["gat2"]["att_dst"],
        params["gat2"]["bias"].reshape(1, e),
        params["gat3"]["w"], params["gat3"]["att_src"], params["gat3"]["att_dst"],
        params["gat3"]["bias"].reshape(1, out_dim),
        params["mha"]["in_w"], params["mha"]["in_b"].reshape(1, 3 * e),
        params["mha"]["out_w"], params["mha"]["out_b"].reshape(1, e),
        params["ln_w"].reshape(1, e), params["ln_b"].reshape(1, e),
    )


# ---------------------------------------------------------------------------
# Pure-JAX reference (for in-script correctness check)
# ---------------------------------------------------------------------------
def _ref_gat(x, adj, p, heads, out_dim, concat):
    h = x @ p["w"]
    mask = adj > 0
    outs = []
    for hd in range(heads):
        xh = h[:, hd * out_dim:(hd + 1) * out_dim]
        a_src = xh @ p["att_src"][hd]
        a_dst = xh @ p["att_dst"][hd]
        e = a_dst[:, None] + a_src[None, :]
        e = jnp.where(e > 0, e, 0.2 * e)
        e = jnp.where(mask, e, NEG_INF)
        e = e - e.max(axis=-1, keepdims=True)
        pm = jnp.where(mask, jnp.exp(e), 0.0)
        alpha = pm / pm.sum(axis=-1, keepdims=True)
        outs.append(alpha @ xh)
    out = jnp.concatenate(outs, -1) if concat else sum(outs) / heads
    return out + p["bias"]


def _ref_mha_ln(x2, p, ln_w, ln_b, num_heads, eps=1e-5):
    n, e = x2.shape
    dh = e // num_heads
    qkv = x2 @ p["in_w"] + p["in_b"]
    q, k, v = qkv[:, :e], qkv[:, e:2 * e], qkv[:, 2 * e:]
    q = q.reshape(n, num_heads, dh).transpose(1, 0, 2)
    k = k.reshape(n, num_heads, dh).transpose(1, 0, 2)
    v = v.reshape(n, num_heads, dh).transpose(1, 0, 2)
    s = jnp.einsum("hqd,hkd->hqk", q, k) / math.sqrt(dh)
    a = jax.nn.softmax(s, axis=-1)
    o = jnp.einsum("hqk,hkd->hqd", a, v).transpose(1, 0, 2).reshape(n, e)
    y = (o @ p["out_w"] + p["out_b"]) + x2
    mu = y.mean(-1, keepdims=True)
    var = ((y - mu) ** 2).mean(-1, keepdims=True)
    return (y - mu) / jnp.sqrt(var + eps) * ln_w + ln_b


def reference_forward(params, x, adj, heads, hidden, out_dim):
    x1 = jax.nn.elu(_ref_gat(x, adj, params["gat1"], heads, hidden, True))
    x2 = jax.nn.elu(_ref_gat(x1, adj, params["gat2"], heads, hidden, True))
    x2a = _ref_mha_ln(x2, params["mha"], params["ln_w"], params["ln_b"], heads)
    return _ref_gat(x2a, adj, params["gat3"], 1, out_dim, False)


# ---------------------------------------------------------------------------
# Synthetic parameters / graph helpers
# ---------------------------------------------------------------------------
def init_params(key, input_dim, hidden, heads, output_dim):
    kit = iter(jax.random.split(key, 32))

    def rnd(shape, scale=0.1):
        return (scale * jax.random.normal(next(kit), shape)).astype(jnp.float32)

    def gat_params(in_dim, out_dim, h):
        return {"w": rnd((in_dim, h * out_dim)),
                "att_src": rnd((h, out_dim)),
                "att_dst": rnd((h, out_dim)),
                "bias": rnd((h * out_dim,))}

    e = hidden * heads
    return {
        "gat1": gat_params(input_dim, hidden, heads),
        "gat2": gat_params(e, hidden, heads),
        "gat3": gat_params(e, output_dim, 1),
        "mha": {"in_w": rnd((e, 3 * e)), "in_b": rnd((3 * e,)),
                "out_w": rnd((e, e)), "out_b": rnd((e,))},
        "ln_w": jnp.ones((e,), jnp.float32),
        "ln_b": jnp.zeros((e,), jnp.float32),
    }


def edge_index_to_dense_adj(edge_index, num_nodes):
    """adj[i, j] = 1 iff edge j -> i exists, plus self-loops (GATConv default)."""
    src, dst = edge_index[0], edge_index[1]
    adj = jnp.zeros((num_nodes, num_nodes), jnp.float32)
    adj = adj.at[dst, src].set(1.0)
    return jnp.maximum(adj, jnp.eye(num_nodes, dtype=jnp.float32))


# ---------------------------------------------------------------------------
if __name__ == "__main__":
    input_dim, hidden, heads, output_dim = 16, 32, 4, 32
    num_nodes = 16

    key = jax.random.PRNGKey(0)
    k_param, k_x = jax.random.split(key)
    params = init_params(k_param, input_dim, hidden, heads, output_dim)
    x = jax.random.normal(k_x, (num_nodes, input_dim), jnp.float32)

    # deterministic bidirectional ring graph, edge_index: [2, num_edges]
    idx = jnp.arange(num_nodes)
    src = jnp.concatenate([idx, (idx + 1) % num_nodes])
    dst = jnp.concatenate([(idx + 1) % num_nodes, idx])
    edge_index = jnp.stack([src, dst]).astype(jnp.int32)
    adj = edge_index_to_dense_adj(edge_index, num_nodes)

    out = temporal_graph_attention(params, x, adj, heads=heads,
                                   hidden=hidden, out_dim=output_dim)
    out = jax.block_until_ready(out)
    assert out.shape == (num_nodes, output_dim)
    assert bool(jnp.all(jnp.isfinite(out)))

    ref = reference_forward(params, x, adj, heads, hidden, output_dim)
    rel_err = float(jnp.max(jnp.abs(out - ref)) / (jnp.max(jnp.abs(ref)) + 1e-6))
    assert rel_err < 5e-2, f"mismatch vs reference: rel err {rel_err}"
    print("KERNEL_OK")
</pallas_src>

<mosaic_0001>
module attributes {stable_mosaic.version = 11 : i64} {
  func.func @_tga_kernel(%arg0: memref<16x16xf32, #tpu.memory_space<vmem>>, %arg1: memref<16x16xf32, #tpu.memory_space<vmem>>, %arg2: memref<16x128xf32, #tpu.memory_space<vmem>>, %arg3: memref<4x32xf32, #tpu.memory_space<vmem>>, %arg4: memref<4x32xf32, #tpu.memory_space<vmem>>, %arg5: memref<1x128xf32, #tpu.memory_space<vmem>>, %arg6: memref<128x128xf32, #tpu.memory_space<vmem>>, %arg7: memref<4x32xf32, #tpu.memory_space<vmem>>, %arg8: memref<4x32xf32, #tpu.memory_space<vmem>>, %arg9: memref<1x128xf32, #tpu.memory_space<vmem>>, %arg10: memref<128x32xf32, #tpu.memory_space<vmem>>, %arg11: memref<1x32xf32, #tpu.memory_space<vmem>>, %arg12: memref<1x32xf32, #tpu.memory_space<vmem>>, %arg13: memref<1x32xf32, #tpu.memory_space<vmem>>, %arg14: memref<128x384xf32, #tpu.memory_space<vmem>>, %arg15: memref<1x384xf32, #tpu.memory_space<vmem>>, %arg16: memref<128x128xf32, #tpu.memory_space<vmem>>, %arg17: memref<1x128xf32, #tpu.memory_space<vmem>>, %arg18: memref<1x128xf32, #tpu.memory_space<vmem>>, %arg19: memref<1x128xf32, #tpu.memory_space<vmem>>, %arg20: memref<16x32xf32, #tpu.memory_space<vmem>>) attributes {dimension_semantics = [], scalar_prefetch = 0 : i64, scratch_operands = 0 : i64, tpu.core_type = #tpu.core_type<tc>} {
    %c0 = arith.constant 0 : index
    %c0_0 = arith.constant 0 : index
    %0 = vector.load %arg1[%c0, %c0_0] : memref<16x16xf32, #tpu.memory_space<vmem>>, vector<16x16xf32>
    %cst = arith.constant 0.000000e+00 : f32
    %1 = vector.broadcast %cst : f32 to vector<16x16xf32>
    %2 = arith.cmpf ogt, %0, %1 : vector<16x16xf32>
    %c0_1 = arith.constant 0 : index
    %c0_2 = arith.constant 0 : index
    %3 = vector.load %arg0[%c0_1, %c0_2] : memref<16x16xf32, #tpu.memory_space<vmem>>, vector<16x16xf32>
    %c0_3 = arith.constant 0 : index
    %c0_4 = arith.constant 0 : index
    %4 = vector.load %arg2[%c0_3, %c0_4] : memref<16x128xf32, #tpu.memory_space<vmem>>, vector<16x128xf32>
    %c0_5 = arith.constant 0 : index
    %c0_6 = arith.constant 0 : index
    %5 = vector.load %arg3[%c0_5, %c0_6] : memref<4x32xf32, #tpu.memory_space<vmem>>, vector<4x32xf32>
    %c0_7 = arith.constant 0 : index
    %c0_8 = arith.constant 0 : index
    %6 = vector.load %arg4[%c0_7, %c0_8] : memref<4x32xf32, #tpu.memory_space<vmem>>, vector<4x32xf32>
    %c0_9 = arith.constant 0 : index
    %c0_10 = arith.constant 0 : index
    %7 = vector.load %arg5[%c0_9, %c0_10] : memref<1x128xf32, #tpu.memory_space<vmem>>, vector<1x128xf32>
    %cst_11 = arith.constant dense<0.000000e+00> : vector<16x128xf32>
    %8 = tpu.matmul %3, %4, %cst_11 {dimension_numbers = #tpu.dot_dimension_numbers<[1], [0], [0], [1], [0, 0, 1, 1], [], []>} : vector<16x16xf32>, vector<16x128xf32>, vector<16x128xf32> -> vector<16x128xf32>
    %9 = vector.extract_strided_slice %8 {offsets = [0, 0], sizes = [16, 32], strides = [1, 1]} : vector<16x128xf32> to vector<16x32xf32>
    %10 = vector.extract_strided_slice %5 {offsets = [0, 0], sizes = [1, 32], strides = [1, 1]} : vector<4x32xf32> to vector<1x32xf32>
    %11 = vector.extract_strided_slice %6 {offsets = [0, 0], sizes = [1, 32], strides = [1, 1]} : vector<4x32xf32> to vector<1x32xf32>
    %cst_12 = arith.constant dense<0.000000e+00> : vector<16x1xf32>
    %12 = tpu.matmul %9, %11, %cst_12 {dimension_numbers = #tpu.dot_dimension_numbers<[1], [1], [0], [0], [0, 0, 1, 0], [], []>} : vector<16x32xf32>, vector<1x32xf32>, vector<16x1xf32> -> vector<16x1xf32>
    %cst_13 = arith.constant dense<0.000000e+00> : vector<1x16xf32>
    %13 = tpu.matmul %10, %9, %cst_13 {dimension_numbers = #tpu.dot_dimension_numbers<[1], [1], [0], [0], [0, 0, 1, 0], [], []>} : vector<1x32xf32>, vector<16x32xf32>, vector<1x16xf32> -> vector<1x16xf32>
    %14 = vector.broadcast %12 : vector<16x1xf32> to vector<16x16xf32>
    %15 = vector.broadcast %13 : vector<1x16xf32> to vector<16x16xf32>
    %16 = arith.addf %14, %15 : vector<16x16xf32>
    %cst_14 = arith.constant 0.000000e+00 : f32
    %17 = vector.broadcast %cst_14 : f32 to vector<16x16xf32>
    %18 = arith.cmpf ogt, %16, %17 : vector<16x16xf32>
    %cst_15 = arith.constant 2.000000e-01 : f32
    %19 = vector.broadcast %cst_15 : f32 to vector<16x16xf32>
    %20 = arith.mulf %19, %16 : vector<16x16xf32>
    %21 = arith.select %18, %16, %20 : vector<16x16xi1>, vector<16x16xf32>
    %cst_16 = arith.constant -1.000000e+30 : f32
    %22 = vector.broadcast %cst_16 : f32 to vector<16x16xf32>
    %23 = arith.select %2, %21, %22 : vector<16x16xi1>, vector<16x16xf32>
    %cst_17 = arith.constant dense<0xFF800000> : vector<16xf32>
    %24 = vector.multi_reduction <maximumf>, %23, %cst_17 [1] : vector<16x16xf32> to vector<16xf32>
    %25 = vector.shape_cast %24 : vector<16xf32> to vector<16x1xf32>
    %26 = vector.broadcast %25 : vector<16x1xf32> to vector<16x16xf32>
    %27 = arith.subf %23, %26 : vector<16x16xf32>
    %28 = math.exp %27 : vector<16x16xf32>
    %cst_18 = arith.constant 0.000000e+00 : f32
    %29 = vector.broadcast %cst_18 : f32 to vector<16x16xf32>
    %30 = arith.select %2, %28, %29 : vector<16x16xi1>, vector<16x16xf32>
    %cst_19 = arith.constant dense<0.000000e+00> : vector<16xf32>
    %31 = vector.multi_reduction <add>, %30, %cst_19 [1] : vector<16x16xf32> to vector<16xf32>
    %32 = vector.shape_cast %31 : vector<16xf32> to vector<16x1xf32>
    %33 = tpu.reciprocal %32 {approx = true} : vector<16x1xf32> -> vector<16x1xf32>
    %34 = vector.broadcast %33 : vector<16x1xf32> to vector<16x16xf32>
    %35 = arith.mulf %30, %34 : vector<16x16xf32>
    %cst_20 = arith.constant dense<0.000000e+00> : vector<16x32xf32>
    %36 = tpu.matmul %35, %9, %cst_20 {dimension_numbers = #tpu.dot_dimension_numbers<[1], [0], [0], [1], [0, 0, 1, 1], [], []>} : vector<16x16xf32>, vector<16x32xf32>, vector<16x32xf32> -> vector<16x32xf32>
    %37 = vector.extract_strided_slice %8 {offsets = [0, 32], sizes = [16, 32], strides = [1, 1]} : vector<16x128xf32> to vector<16x32xf32>
    %38 = vector.extract_strided_slice %5 {offsets = [1, 0], sizes = [1, 32], strides = [1, 1]} : vector<4x32xf32> to vector<1x32xf32>
    %39 = vector.extract_strided_slice %6 {offsets = [1, 0], sizes = [1, 32], strides = [1, 1]} : vector<4x32xf32> to vector<1x32xf32>
    %cst_21 = arith.constant dense<0.000000e+00> : vector<16x1xf32>
    %40 = tpu.matmul %37, %39, %cst_21 {dimension_numbers = #tpu.dot_dimension_numbers<[1], [1], [0], [0], [0, 0, 1, 0], [], []>} : vector<16x32xf32>, vector<1x32xf32>, vector<16x1xf32> -> vector<16x1xf32>
    %cst_22 = arith.constant dense<0.000000e+00> : vector<1x16xf32>
    %41 = tpu.matmul %38, %37, %cst_22 {dimension_numbers = #tpu.dot_dimension_numbers<[1], [1], [0], [0], [0, 0, 1, 0], [], []>} : vector<1x32xf32>, vector<16x32xf32>, vector<1x16xf32> -> vector<1x16xf32>
    %42 = vector.broadcast %40 : vector<16x1xf32> to vector<16x16xf32>
    %43 = vector.broadcast %41 : vector<1x16xf32> to vector<16x16xf32>
    %44 = arith.addf %42, %43 : vector<16x16xf32>
    %cst_23 = arith.constant 0.000000e+00 : f32
    %45 = vector.broadcast %cst_23 : f32 to vector<16x16xf32>
    %46 = arith.cmpf ogt, %44, %45 : vector<16x16xf32>
    %cst_24 = arith.constant 2.000000e-01 : f32
    %47 = vector.broadcast %cst_24 : f32 to vector<16x16xf32>
    %48 = arith.mulf %47, %44 : vector<16x16xf32>
    %49 = arith.select %46, %44, %48 : vector<16x16xi1>, vector<16x16xf32>
    %cst_25 = arith.constant -1.000000e+30 : f32
    %50 = vector.broadcast %cst_25 : f32 to vector<16x16xf32>
    %51 = arith.select %2, %49, %50 : vector<16x16xi1>, vector<16x16xf32>
    %cst_26 = arith.constant dense<0xFF800000> : vector<16xf32>
    %52 = vector.multi_reduction <maximumf>, %51, %cst_26 [1] : vector<16x16xf32> to vector<16xf32>
    %53 = vector.shape_cast %52 : vector<16xf32> to vector<16x1xf32>
    %54 = vector.broadcast %53 : vector<16x1xf32> to vector<16x16xf32>
    %55 = arith.subf %51, %54 : vector<16x16xf32>
    %56 = math.exp %55 : vector<16x16xf32>
    %cst_27 = arith.constant 0.000000e+00 : f32
    %57 = vector.broadcast %cst_27 : f32 to vector<16x16xf32>
    %58 = arith.select %2, %56, %57 : vector<16x16xi1>, vector<16x16xf32>
    %cst_28 = arith.constant dense<0.000000e+00> : vector<16xf32>
    %59 = vector.multi_reduction <add>, %58, %cst_28 [1] : vector<16x16xf32> to vector<16xf32>
    %60 = vector.shape_cast %59 : vector<16xf32> to vector<16x1xf32>
    %61 = tpu.reciprocal %60 {approx = true} : vector<16x1xf32> -> vector<16x1xf32>
    %62 = vector.broadcast %61 : vector<16x1xf32> to vector<16x16xf32>
    %63 = arith.mulf %58, %62 : vector<16x16xf32>
    %cst_29 = arith.constant dense<0.000000e+00> : vector<16x32xf32>
    %64 = tpu.matmul %63, %37, %cst_29 {dimension_numbers = #tpu.dot_dimension_numbers<[1], [0], [0], [1], [0, 0, 1, 1], [], []>} : vector<16x16xf32>, vector<16x32xf32>, vector<16x32xf32> -> vector<16x32xf32>
    %65 = vector.extract_strided_slice %8 {offsets = [0, 64], sizes = [16, 32], strides = [1, 1]} : vector<16x128xf32> to vector<16x32xf32>
    %66 = vector.extract_strided_slice %5 {offsets = [2, 0], sizes = [1, 32], strides = [1, 1]} : vector<4x32xf32> to vector<1x32xf32>
    %67 = vector.extract_strided_slice %6 {offsets = [2, 0], sizes = [1, 32], strides = [1, 1]} : vector<4x32xf32> to vector<1x32xf32>
    %cst_30 = arith.constant dense<0.000000e+00> : vector<16x1xf32>
    %68 = tpu.matmul %65, %67, %cst_30 {dimension_numbers = #tpu.dot_dimension_numbers<[1], [1], [0], [0], [0, 0, 1, 0], [], []>} : vector<16x32xf32>, vector<1x32xf32>, vector<16x1xf32> -> vector<16x1xf32>
    %cst_31 = arith.constant dense<0.000000e+00> : vector<1x16xf32>
    %69 = tpu.matmul %66, %65, %cst_31 {dimension_numbers = #tpu.dot_dimension_numbers<[1], [1], [0], [0], [0, 0, 1, 0], [], []>} : vector<1x32xf32>, vector<16x32xf32>, vector<1x16xf32> -> vector<1x16xf32>
    %70 = vector.broadcast %68 : vector<16x1xf32> to vector<16x16xf32>
    %71 = vector.broadcast %69 : vector<1x16xf32> to vector<16x16xf32>
    %72 = arith.addf %70, %71 : vector<16x16xf32>
    %cst_32 = arith.constant 0.000000e+00 : f32
    %73 = vector.broadcast %cst_32 : f32 to vector<16x16xf32>
    %74 = arith.cmpf ogt, %72, %73 : vector<16x16xf32>
    %cst_33 = arith.constant 2.000000e-01 : f32
    %75 = vector.broadcast %cst_33 : f32 to vector<16x16xf32>
    %76 = arith.mulf %75, %72 : vector<16x16xf32>
    %77 = arith.select %74, %72, %76 : vector<16x16xi1>, vector<16x16xf32>
    %cst_34 = arith.constant -1.000000e+30 : f32
    %78 = vector.broadcast %cst_34 : f32 to vector<16x16xf32>
    %79 = arith.select %2, %77, %78 : vector<16x16xi1>, vector<16x16xf32>
    %cst_35 = arith.constant dense<0xFF800000> : vector<16xf32>
    %80 = vector.multi_reduction <maximumf>, %79, %cst_35 [1] : vector<16x16xf32> to vector<16xf32>
    %81 = vector.shape_cast %80 : vector<16xf32> to vector<16x1xf32>
    %82 = vector.broadcast %81 : vector<16x1xf32> to vector<16x16xf32>
    %83 = arith.subf %79, %82 : vector<16x16xf32>
    %84 = math.exp %83 : vector<16x16xf32>
    %cst_36 = arith.constant 0.000000e+00 : f32
    %85 = vector.broadcast %cst_36 : f32 to vector<16x16xf32>
    %86 = arith.select %2, %84, %85 : vector<16x16xi1>, vector<16x16xf32>
    %cst_37 = arith.constant dense<0.000000e+00> : vector<16xf32>
    %87 = vector.multi_reduction <add>, %86, %cst_37 [1] : vector<16x16xf32> to vector<16xf32>
    %88 = vector.shape_cast %87 : vector<16xf32> to vector<16x1xf32>
    %89 = tpu.reciprocal %88 {approx = true} : vector<16x1xf32> -> vector<16x1xf32>
    %90 = vector.broadcast %89 : vector<16x1xf32> to vector<16x16xf32>
    %91 = arith.mulf %86, %90 : vector<16x16xf32>
    %cst_38 = arith.constant dense<0.000000e+00> : vector<16x32xf32>
    %92 = tpu.matmul %91, %65, %cst_38 {dimension_numbers = #tpu.dot_dimension_numbers<[1], [0], [0], [1], [0, 0, 1, 1], [], []>} : vector<16x16xf32>, vector<16x32xf32>, vector<16x32xf32> -> vector<16x32xf32>
    %93 = vector.extract_strided_slice %8 {offsets = [0, 96], sizes = [16, 32], strides = [1, 1]} : vector<16x128xf32> to vector<16x32xf32>
    %94 = vector.extract_strided_slice %5 {offsets = [3, 0], sizes = [1, 32], strides = [1, 1]} : vector<4x32xf32> to vector<1x32xf32>
    %95 = vector.extract_strided_slice %6 {offsets = [3, 0], sizes = [1, 32], strides = [1, 1]} : vector<4x32xf32> to vector<1x32xf32>
    %cst_39 = arith.constant dense<0.000000e+00> : vector<16x1xf32>
    %96 = tpu.matmul %93, %95, %cst_39 {dimension_numbers = #tpu.dot_dimension_numbers<[1], [1], [0], [0], [0, 0, 1, 0], [], []>} : vector<16x32xf32>, vector<1x32xf32>, vector<16x1xf32> -> vector<16x1xf32>
    %cst_40 = arith.constant dense<0.000000e+00> : vector<1x16xf32>
    %97 = tpu.matmul %94, %93, %cst_40 {dimension_numbers = #tpu.dot_dimension_numbers<[1], [1], [0], [0], [0, 0, 1, 0], [], []>} : vector<1x32xf32>, vector<16x32xf32>, vector<1x16xf32> -> vector<1x16xf32>
    %98 = vector.broadcast %96 : vector<16x1xf32> to vector<16x16xf32>
    %99 = vector.broadcast %97 : vector<1x16xf32> to vector<16x16xf32>
    %100 = arith.addf %98, %99 : vector<16x16xf32>
    %cst_41 = arith.constant 0.000000e+00 : f32
    %101 = vector.broadcast %cst_41 : f32 to vector<16x16xf32>
    %102 = arith.cmpf ogt, %100, %101 : vector<16x16xf32>
    %cst_42 = arith.constant 2.000000e-01 : f32
    %103 = vector.broadcast %cst_42 : f32 to vector<16x16xf32>
    %104 = arith.mulf %103, %100 : vector<16x16xf32>
    %105 = arith.select %102, %100, %104 : vector<16x16xi1>, vector<16x16xf32>
    %cst_43 = arith.constant -1.000000e+30 : f32
    %106 = vector.broadcast %cst_43 : f32 to vector<16x16xf32>
    %107 = arith.select %2, %105, %106 : vector<16x16xi1>, vector<16x16xf32>
    %cst_44 = arith.constant dense<0xFF800000> : vector<16xf32>
    %108 = vector.multi_reduction <maximumf>, %107, %cst_44 [1] : vector<16x16xf32> to vector<16xf32>
    %109 = vector.shape_cast %108 : vector<16xf32> to vector<16x1xf32>
    %110 = vector.broadcast %109 : vector<16x1xf32> to vector<16x16xf32>
    %111 = arith.subf %107, %110 : vector<16x16xf32>
    %112 = math.exp %111 : vector<16x16xf32>
    %cst_45 = arith.constant 0.000000e+00 : f32
    %113 = vector.broadcast %cst_45 : f32 to vector<16x16xf32>
    %114 = arith.select %2, %112, %113 : vector<16x16xi1>, vector<16x16xf32>
    %cst_46 = arith.constant dense<0.000000e+00> : vector<16xf32>
    %115 = vector.multi_reduction <add>, %114, %cst_46 [1] : vector<16x16xf32> to vector<16xf32>
    %116 = vector.shape_cast %115 : vector<16xf32> to vector<16x1xf32>
    %117 = tpu.reciprocal %116 {approx = true} : vector<16x1xf32> -> vector<16x1xf32>
    %118 = vector.broadcast %117 : vector<16x1xf32> to vector<16x16xf32>
    %119 = arith.mulf %114, %118 : vector<16x16xf32>
    %cst_47 = arith.constant dense<0.000000e+00> : vector<16x32xf32>
    %120 = tpu.matmul %119, %93, %cst_47 {dimension_numbers = #tpu.dot_dimension_numbers<[1], [0], [0], [1], [0, 0, 1, 1], [], []>} : vector<16x16xf32>, vector<16x32xf32>, vector<16x32xf32> -> vector<16x32xf32>
    %121 = tpu.concatenate %36, %64, %92, %120 in 1 : vector<16x32xf32>, vector<16x32xf32>, vector<16x32xf32>, vector<16x32xf32> -> vector<16x128xf32>
    %122 = vector.broadcast %7 : vector<1x128xf32> to vector<16x128xf32>
    %123 = arith.addf %121, %122 : vector<16x128xf32>
    %cst_48 = arith.constant 0.000000e+00 : f32
    %124 = vector.broadcast %cst_48 : f32 to vector<16x128xf32>
    %125 = arith.cmpf ogt, %123, %124 : vector<16x128xf32>
    %cst_49 = arith.constant 0.000000e+00 : f32
    %126 = vector.broadcast %cst_49 : f32 to vector<16x128xf32>
    %127 = arith.minimumf %123, %126 : vector<16x128xf32>
    %128 = math.exp %127 : vector<16x128xf32>
    %cst_50 = arith.constant 1.000000e+00 : f32
    %129 = vector.broadcast %cst_50 : f32 to vector<16x128xf32>
    %130 = arith.subf %128, %129 : vector<16x128xf32>
    %131 = arith.select %125, %123, %130 : vector<16x128xi1>, vector<16x128xf32>
    %c0_51 = arith.constant 0 : index
    %c0_52 = arith.constant 0 : index
    %132 = vector.load %arg6[%c0_51, %c0_52] : memref<128x128xf32, #tpu.memory_space<vmem>>, vector<128x128xf32>
    %c0_53 = arith.constant 0 : index
    %c0_54 = arith.constant 0 : index
    %133 = vector.load %arg7[%c0_53, %c0_54] : memref<4x32xf32, #tpu.memory_space<vmem>>, vector<4x32xf32>
    %c0_55 = arith.constant 0 : index
    %c0_56 = arith.constant 0 : index
    %134 = vector.load %arg8[%c0_55, %c0_56] : memref<4x32xf32, #tpu.memory_space<vmem>>, vector<4x32xf32>
    %c0_57 = arith.constant 0 : index
    %c0_58 = arith.constant 0 : index
    %135 = vector.load %arg9[%c0_57, %c0_58] : memref<1x128xf32, #tpu.memory_space<vmem>>, vector<1x128xf32>
    %cst_59 = arith.constant dense<0.000000e+00> : vector<16x128xf32>
    %136 = tpu.matmul %131, %132, %cst_59 {dimension_numbers = #tpu.dot_dimension_numbers<[1], [0], [0], [1], [0, 0, 1, 1], [], []>} : vector<16x128xf32>, vector<128x128xf32>, vector<16x128xf32> -> vector<16x128xf32>
    %137 = vector.extract_strided_slice %136 {offsets = [0, 0], sizes = [16, 32], strides = [1, 1]} : vector<16x128xf32> to vector<16x32xf32>
    %138 = vector.extract_strided_slice %133 {offsets = [0, 0], sizes = [1, 32], strides = [1, 1]} : vector<4x32xf32> to vector<1x32xf32>
    %139 = vector.extract_strided_slice %134 {offsets = [0, 0], sizes = [1, 32], strides = [1, 1]} : vector<4x32xf32> to vector<1x32xf32>
    %cst_60 = arith.constant dense<0.000000e+00> : vector<16x1xf32>
    %140 = tpu.matmul %137, %139, %cst_60 {dimension_numbers = #tpu.dot_dimension_numbers<[1], [1], [0], [0], [0, 0, 1, 0], [], []>} : vector<16x32xf32>, vector<1x32xf32>, vector<16x1xf32> -> vector<16x1xf32>
    %cst_61 = arith.constant dense<0.000000e+00> : vector<1x16xf32>
    %141 = tpu.matmul %138, %137, %cst_61 {dimension_numbers = #tpu.dot_dimension_numbers<[1], [1], [0], [0], [0, 0, 1, 0], [], []>} : vector<1x32xf32>, vector<16x32xf32>, vector<1x16xf32> -> vector<1x16xf32>
    %142 = vector.broadcast %140 : vector<16x1xf32> to vector<16x16xf32>
    %143 = vector.broadcast %141 : vector<1x16xf32> to vector<16x16xf32>
    %144 = arith.addf %142, %143 : vector<16x16xf32>
    %cst_62 = arith.constant 0.000000e+00 : f32
    %145 = vector.broadcast %cst_62 : f32 to vector<16x16xf32>
    %146 = arith.cmpf ogt, %144, %145 : vector<16x16xf32>
    %cst_63 = arith.constant 2.000000e-01 : f32
    %147 = vector.broadcast %cst_63 : f32 to vector<16x16xf32>
    %148 = arith.mulf %147, %144 : vector<16x16xf32>
    %149 = arith.select %146, %144, %148 : vector<16x16xi1>, vector<16x16xf32>
    %cst_64 = arith.constant -1.000000e+30 : f32
    %150 = vector.broadcast %cst_64 : f32 to vector<16x16xf32>
    %151 = arith.select %2, %149, %150 : vector<16x16xi1>, vector<16x16xf32>
    %cst_65 = arith.constant dense<0xFF800000> : vector<16xf32>
    %152 = vector.multi_reduction <maximumf>, %151, %cst_65 [1] : vector<16x16xf32> to vector<16xf32>
    %153 = vector.shape_cast %152 : vector<16xf32> to vector<16x1xf32>
    %154 = vector.broadcast %153 : vector<16x1xf32> to vector<16x16xf32>
    %155 = arith.subf %151, %154 : vector<16x16xf32>
    %156 = math.exp %155 : vector<16x16xf32>
    %cst_66 = arith.constant 0.000000e+00 : f32
    %157 = vector.broadcast %cst_66 : f32 to vector<16x16xf32>
    %158 = arith.select %2, %156, %157 : vector<16x16xi1>, vector<16x16xf32>
    %cst_67 = arith.constant dense<0.000000e+00> : vector<16xf32>
    %159 = vector.multi_reduction <add>, %158, %cst_67 [1] : vector<16x16xf32> to vector<16xf32>
    %160 = vector.shape_cast %159 : vector<16xf32> to vector<16x1xf32>
    %161 = tpu.reciprocal %160 {approx = true} : vector<16x1xf32> -> vector<16x1xf32>
    %162 = vector.broadcast %161 : vector<16x1xf32> to vector<16x16xf32>
    %163 = arith.mulf %158, %162 : vector<16x16xf32>
    %cst_68 = arith.constant dense<0.000000e+00> : vector<16x32xf32>
    %164 = tpu.matmul %163, %137, %cst_68 {dimension_numbers = #tpu.dot_dimension_numbers<[1], [0], [0], [1], [0, 0, 1, 1], [], []>} : vector<16x16xf32>, vector<16x32xf32>, vector<16x32xf32> -> vector<16x32xf32>
    %165 = vector.extract_strided_slice %136 {offsets = [0, 32], sizes = [16, 32], strides = [1, 1]} : vector<16x128xf32> to vector<16x32xf32>
    %166 = vector.extract_strided_slice %133 {offsets = [1, 0], sizes = [1, 32], strides = [1, 1]} : vector<4x32xf32> to vector<1x32xf32>
    %167 = vector.extract_strided_slice %134 {offsets = [1, 0], sizes = [1, 32], strides = [1, 1]} : vector<4x32xf32> to vector<1x32xf32>
    %cst_69 = arith.constant dense<0.000000e+00> : vector<16x1xf32>
    %168 = tpu.matmul %165, %167, %cst_69 {dimension_numbers = #tpu.dot_dimension_numbers<[1], [1], [0], [0], [0, 0, 1, 0], [], []>} : vector<16x32xf32>, vector<1x32xf32>, vector<16x1xf32> -> vector<16x1xf32>
    %cst_70 = arith.constant dense<0.000000e+00> : vector<1x16xf32>
    %169 = tpu.matmul %166, %165, %cst_70 {dimension_numbers = #tpu.dot_dimension_numbers<[1], [1], [0], [0], [0, 0, 1, 0], [], []>} : vector<1x32xf32>, vector<16x32xf32>, vector<1x16xf32> -> vector<1x16xf32>
    %170 = vector.broadcast %168 : vector<16x1xf32> to vector<16x16xf32>
    %171 = vector.broadcast %169 : vector<1x16xf32> to vector<16x16xf32>
    %172 = arith.addf %170, %171 : vector<16x16xf32>
    %cst_71 = arith.constant 0.000000e+00 : f32
    %173 = vector.broadcast %cst_71 : f32 to vector<16x16xf32>
    %174 = arith.cmpf ogt, %172, %173 : vector<16x16xf32>
    %cst_72 = arith.constant 2.000000e-01 : f32
    %175 = vector.broadcast %cst_72 : f32 to vector<16x16xf32>
    %176 = arith.mulf %175, %172 : vector<16x16xf32>
    %177 = arith.select %174, %172, %176 : vector<16x16xi1>, vector<16x16xf32>
    %cst_73 = arith.constant -1.000000e+30 : f32
    %178 = vector.broadcast %cst_73 : f32 to vector<16x16xf32>
    %179 = arith.select %2, %177, %178 : vector<16x16xi1>, vector<16x16xf32>
    %cst_74 = arith.constant dense<0xFF800000> : vector<16xf32>
    %180 = vector.multi_reduction <maximumf>, %179, %cst_74 [1] : vector<16x16xf32> to vector<16xf32>
    %181 = vector.shape_cast %180 : vector<16xf32> to vector<16x1xf32>
    %182 = vector.broadcast %181 : vector<16x1xf32> to vector<16x16xf32>
    %183 = arith.subf %179, %182 : vector<16x16xf32>
    %184 = math.exp %183 : vector<16x16xf32>
    %cst_75 = arith.constant 0.000000e+00 : f32
    %185 = vector.broadcast %cst_75 : f32 to vector<16x16xf32>
    %186 = arith.select %2, %184, %185 : vector<16x16xi1>, vector<16x16xf32>
    %cst_76 = arith.constant dense<0.000000e+00> : vector<16xf32>
    %187 = vector.multi_reduction <add>, %186, %cst_76 [1] : vector<16x16xf32> to vector<16xf32>
    %188 = vector.shape_cast %187 : vector<16xf32> to vector<16x1xf32>
    %189 = tpu.reciprocal %188 {approx = true} : vector<16x1xf32> -> vector<16x1xf32>
    %190 = vector.broadcast %189 : vector<16x1xf32> to vector<16x16xf32>
    %191 = arith.mulf %186, %190 : vector<16x16xf32>
    %cst_77 = arith.constant dense<0.000000e+00> : vector<16x32xf32>
    %192 = tpu.matmul %191, %165, %cst_77 {dimension_numbers = #tpu.dot_dimension_numbers<[1], [0], [0], [1], [0, 0, 1, 1], [], []>} : vector<16x16xf32>, vector<16x32xf32>, vector<16x32xf32> -> vector<16x32xf32>
    %193 = vector.extract_strided_slice %136 {offsets = [0, 64], sizes = [16, 32], strides = [1, 1]} : vector<16x128xf32> to vector<16x32xf32>
    %194 = vector.extract_strided_slice %133 {offsets = [2, 0], sizes = [1, 32], strides = [1, 1]} : vector<4x32xf32> to vector<1x32xf32>
    %195 = vector.extract_strided_slice %134 {offsets = [2, 0], sizes = [1, 32], strides = [1, 1]} : vector<4x32xf32> to vector<1x32xf32>
    %cst_78 = arith.constant dense<0.000000e+00> : vector<16x1xf32>
    %196 = tpu.matmul %193, %195, %cst_78 {dimension_numbers = #tpu.dot_dimension_numbers<[1], [1], [0], [0], [0, 0, 1, 0], [], []>} : vector<16x32xf32>, vector<1x32xf32>, vector<16x1xf32> -> vector<16x1xf32>
    %cst_79 = arith.constant dense<0.000000e+00> : vector<1x16xf32>
    %197 = tpu.matmul %194, %193, %cst_79 {dimension_numbers = #tpu.dot_dimension_numbers<[1], [1], [0], [0], [0, 0, 1, 0], [], []>} : vector<1x32xf32>, vector<16x32xf32>, vector<1x16xf32> -> vector<1x16xf32>
    %198 = vector.broadcast %196 : vector<16x1xf32> to vector<16x16xf32>
    %199 = vector.broadcast %197 : vector<1x16xf32> to vector<16x16xf32>
    %200 = arith.addf %198, %199 : vector<16x16xf32>
    %cst_80 = arith.constant 0.000000e+00 : f32
    %201 = vector.broadcast %cst_80 : f32 to vector<16x16xf32>
    %202 = arith.cmpf ogt, %200, %201 : vector<16x16xf32>
    %cst_81 = arith.constant 2.000000e-01 : f32
    %203 = vector.broadcast %cst_81 : f32 to vector<16x16xf32>
    %204 = arith.mulf %203, %200 : vector<16x16xf32>
    %205 = arith.select %202, %200, %204 : vector<16x16xi1>, vector<16x16xf32>
    %cst_82 = arith.constant -1.000000e+30 : f32
    %206 = vector.broadcast %cst_82 : f32 to vector<16x16xf32>
    %207 = arith.select %2, %205, %206 : vector<16x16xi1>, vector<16x16xf32>
    %cst_83 = arith.constant dense<0xFF800000> : vector<16xf32>
    %208 = vector.multi_reduction <maximumf>, %207, %cst_83 [1] : vector<16x16xf32> to vector<16xf32>
    %209 = vector.shape_cast %208 : vector<16xf32> to vector<16x1xf32>
    %210 = vector.broadcast %209 : vector<16x1xf32> to vector<16x16xf32>
    %211 = arith.subf %207, %210 : vector<16x16xf32>
    %212 = math.exp %211 : vector<16x16xf32>
    %cst_84 = arith.constant 0.000000e+00 : f32
    %213 = vector.broadcast %cst_84 : f32 to vector<16x16xf32>
    %214 = arith.select %2, %212, %213 : vector<16x16xi1>, vector<16x16xf32>
    %cst_85 = arith.constant dense<0.000000e+00> : vector<16xf32>
    %215 = vector.multi_reduction <add>, %214, %cst_85 [1] : vector<16x16xf32> to vector<16xf32>
    %216 = vector.shape_cast %215 : vector<16xf32> to vector<16x1xf32>
    %217 = tpu.reciprocal %216 {approx = true} : vector<16x1xf32> -> vector<16x1xf32>
    %218 = vector.broadcast %217 : vector<16x1xf32> to vector<16x16xf32>
    %219 = arith.mulf %214, %218 : vector<16x16xf32>
    %cst_86 = arith.constant dense<0.000000e+00> : vector<16x32xf32>
    %220 = tpu.matmul %219, %193, %cst_86 {dimension_numbers = #tpu.dot_dimension_numbers<[1], [0], [0], [1], [0, 0, 1, 1], [], []>} : vector<16x16xf32>, vector<16x32xf32>, vector<16x32xf32> -> vector<16x32xf32>
    %221 = vector.extract_strided_slice %136 {offsets = [0, 96], sizes = [16, 32], strides = [1, 1]} : vector<16x128xf32> to vector<16x32xf32>
    %222 = vector.extract_strided_slice %133 {offsets = [3, 0], sizes = [1, 32], strides = [1, 1]} : vector<4x32xf32> to vector<1x32xf32>
    %223 = vector.extract_strided_slice %134 {offsets = [3, 0], sizes = [1, 32], strides = [1, 1]} : vector<4x32xf32> to vector<1x32xf32>
    %cst_87 = arith.constant dense<0.000000e+00> : vector<16x1xf32>
    %224 = tpu.matmul %221, %223, %cst_87 {dimension_numbers = #tpu.dot_dimension_numbers<[1], [1], [0], [0], [0, 0, 1, 0], [], []>} : vector<16x32xf32>, vector<1x32xf32>, vector<16x1xf32> -> vector<16x1xf32>
    %cst_88 = arith.constant dense<0.000000e+00> : vector<1x16xf32>
    %225 = tpu.matmul %222, %221, %cst_88 {dimension_numbers = #tpu.dot_dimension_numbers<[1], [1], [0], [0], [0, 0, 1, 0], [], []>} : vector<1x32xf32>, vector<16x32xf32>, vector<1x16xf32> -> vector<1x16xf32>
    %226 = vector.broadcast %224 : vector<16x1xf32> to vector<16x16xf32>
    %227 = vector.broadcast %225 : vector<1x16xf32> to vector<16x16xf32>
    %228 = arith.addf %226, %227 : vector<16x16xf32>
    %cst_89 = arith.constant 0.000000e+00 : f32
    %229 = vector.broadcast %cst_89 : f32 to vector<16x16xf32>
    %230 = arith.cmpf ogt, %228, %229 : vector<16x16xf32>
    %cst_90 = arith.constant 2.000000e-01 : f32
    %231 = vector.broadcast %cst_90 : f32 to vector<16x16xf32>
    %232 = arith.mulf %231, %228 : vector<16x16xf32>
    %233 = arith.select %230, %228, %232 : vector<16x16xi1>, vector<16x16xf32>
    %cst_91 = arith.constant -1.000000e+30 : f32
    %234 = vector.broadcast %cst_91 : f32 to vector<16x16xf32>
    %235 = arith.select %2, %233, %234 : vector<16x16xi1>, vector<16x16xf32>
    %cst_92 = arith.constant dense<0xFF800000> : vector<16xf32>
    %236 = vector.multi_reduction <maximumf>, %235, %cst_92 [1] : vector<16x16xf32> to vector<16xf32>
    %237 = vector.shape_cast %236 : vector<16xf32> to vector<16x1xf32>
    %238 = vector.broadcast %237 : vector<16x1xf32> to vector<16x16xf32>
    %239 = arith.subf %235, %238 : vector<16x16xf32>
    %240 = math.exp %239 : vector<16x16xf32>
    %cst_93 = arith.constant 0.000000e+00 : f32
    %241 = vector.broadcast %cst_93 : f32 to vector<16x16xf32>
    %242 = arith.select %2, %240, %241 : vector<16x16xi1>, vector<16x16xf32>
    %cst_94 = arith.constant dense<0.000000e+00> : vector<16xf32>
    %243 = vector.multi_reduction <add>, %242, %cst_94 [1] : vector<16x16xf32> to vector<16xf32>
    %244 = vector.shape_cast %243 : vector<16xf32> to vector<16x1xf32>
    %245 = tpu.reciprocal %244 {approx = true} : vector<16x1xf32> -> vector<16x1xf32>
    %246 = vector.broadcast %245 : vector<16x1xf32> to vector<16x16xf32>
    %247 = arith.mulf %242, %246 : vector<16x16xf32>
    %cst_95 = arith.constant dense<0.000000e+00> : vector<16x32xf32>
    %248 = tpu.matmul %247, %221, %cst_95 {dimension_numbers = #tpu.dot_dimension_numbers<[1], [0], [0], [1], [0, 0, 1, 1], [], []>} : vector<16x16xf32>, vector<16x32xf32>, vector<16x32xf32> -> vector<16x32xf32>
    %249 = tpu.concatenate %164, %192, %220, %248 in 1 : vector<16x32xf32>, vector<16x32xf32>, vector<16x32xf32>, vector<16x32xf32> -> vector<16x128xf32>
    %250 = vector.broadcast %135 : vector<1x128xf32> to vector<16x128xf32>
    %251 = arith.addf %249, %250 : vector<16x128xf32>
    %cst_96 = arith.constant 0.000000e+00 : f32
    %252 = vector.broadcast %cst_96 : f32 to vector<16x128xf32>
    %253 = arith.cmpf ogt, %251, %252 : vector<16x128xf32>
    %cst_97 = arith.constant 0.000000e+00 : f32
    %254 = vector.broadcast %cst_97 : f32 to vector<16x128xf32>
    %255 = arith.minimumf %251, %254 : vector<16x128xf32>
    %256 = math.exp %255 : vector<16x128xf32>
    %cst_98 = arith.constant 1.000000e+00 : f32
    %257 = vector.broadcast %cst_98 : f32 to vector<16x128xf32>
    %258 = arith.subf %256, %257 : vector<16x128xf32>
    %259 = arith.select %253, %251, %258 : vector<16x128xi1>, vector<16x128xf32>
    %c0_99 = arith.constant 0 : index
    %c0_100 = arith.constant 0 : index
    %260 = vector.load %arg14[%c0_99, %c0_100] : memref<128x384xf32, #tpu.memory_space<vmem>>, vector<128x384xf32>
    %c0_101 = arith.constant 0 : index
    %c0_102 = arith.constant 0 : index
    %261 = vector.load %arg15[%c0_101, %c0_102] : memref<1x384xf32, #tpu.memory_space<vmem>>, vector<1x384xf32>
    %c0_103 = arith.constant 0 : index
    %c0_104 = arith.constant 0 : index
    %262 = vector.load %arg16[%c0_103, %c0_104] : memref<128x128xf32, #tpu.memory_space<vmem>>, vector<128x128xf32>
    %c0_105 = arith.constant 0 : index
    %c0_106 = arith.constant 0 : index
    %263 = vector.load %arg17[%c0_105, %c0_106] : memref<1x128xf32, #tpu.memory_space<vmem>>, vector<1x128xf32>
    %c0_107 = arith.constant 0 : index
    %c0_108 = arith.constant 0 : index
    %264 = vector.load %arg18[%c0_107, %c0_108] : memref<1x128xf32, #tpu.memory_space<vmem>>, vector<1x128xf32>
    %c0_109 = arith.constant 0 : index
    %c0_110 = arith.constant 0 : index
    %265 = vector.load %arg19[%c0_109, %c0_110] : memref<1x128xf32, #tpu.memory_space<vmem>>, vector<1x128xf32>
    %cst_111 = arith.constant dense<0.000000e+00> : vector<16x384xf32>
    %266 = tpu.matmul %259, %260, %cst_111 {dimension_numbers = #tpu.dot_dimension_numbers<[1], [0], [0], [1], [0, 0, 1, 1], [], []>} : vector<16x128xf32>, vector<128x384xf32>, vector<16x384xf32> -> vector<16x384xf32>
    %267 = vector.broadcast %261 : vector<1x384xf32> to vector<16x384xf32>
    %268 = arith.addf %266, %267 : vector<16x384xf32>
    %269 = vector.extract_strided_slice %268 {offsets = [0, 0], sizes = [16, 32], strides = [1, 1]} : vector<16x384xf32> to vector<16x32xf32>
    %270 = vector.extract_strided_slice %268 {offsets = [0, 128], sizes = [16, 32], strides = [1, 1]} : vector<16x384xf32> to vector<16x32xf32>
    %271 = vector.extract_strided_slice %268 {offsets = [0, 256], sizes = [16, 32], strides = [1, 1]} : vector<16x384xf32> to vector<16x32xf32>
    %cst_112 = arith.constant dense<0.000000e+00> : vector<16x16xf32>
    %272 = tpu.matmul %269, %270, %cst_112 {dimension_numbers = #tpu.dot_dimension_numbers<[1], [1], [0], [0], [0, 0, 1, 0], [], []>} : vector<16x32xf32>, vector<16x32xf32>, vector<16x16xf32> -> vector<16x16xf32>
    %cst_113 = arith.constant 0.176776692 : f32
    %273 = vector.broadcast %cst_113 : f32 to vector<16x16xf32>
    %274 = arith.mulf %272, %273 : vector<16x16xf32>
    %cst_114 = arith.constant dense<0xFF800000> : vector<16xf32>
    %275 = vector.multi_reduction <maximumf>, %274, %cst_114 [1] : vector<16x16xf32> to vector<16xf32>
    %276 = vector.shape_cast %275 : vector<16xf32> to vector<16x1xf32>
    %277 = vector.broadcast %276 : vector<16x1xf32> to vector<16x16xf32>
    %278 = arith.subf %274, %277 : vector<16x16xf32>
    %279 = math.exp %278 : vector<16x16xf32>
    %cst_115 = arith.constant dense<0.000000e+00> : vector<16xf32>
    %280 = vector.multi_reduction <add>, %279, %cst_115 [1] : vector<16x16xf32> to vector<16xf32>
    %281 = vector.shape_cast %280 : vector<16xf32> to vector<16x1xf32>
    %282 = tpu.reciprocal %281 {approx = true} : vector<16x1xf32> -> vector<16x1xf32>
    %283 = vector.broadcast %282 : vector<16x1xf32> to vector<16x16xf32>
    %284 = arith.mulf %279, %283 : vector<16x16xf32>
    %cst_116 = arith.constant dense<0.000000e+00> : vector<16x32xf32>
    %285 = tpu.matmul %284, %271, %cst_116 {dimension_numbers = #tpu.dot_dimension_numbers<[1], [0], [0], [1], [0, 0, 1, 1], [], []>} : vector<16x16xf32>, vector<16x32xf32>, vector<16x32xf32> -> vector<16x32xf32>
    %286 = vector.extract_strided_slice %268 {offsets = [0, 32], sizes = [16, 32], strides = [1, 1]} : vector<16x384xf32> to vector<16x32xf32>
    %287 = vector.extract_strided_slice %268 {offsets = [0, 160], sizes = [16, 32], strides = [1, 1]} : vector<16x384xf32> to vector<16x32xf32>
    %288 = vector.extract_strided_slice %268 {offsets = [0, 288], sizes = [16, 32], strides = [1, 1]} : vector<16x384xf32> to vector<16x32xf32>
    %cst_117 = arith.constant dense<0.000000e+00> : vector<16x16xf32>
    %289 = tpu.matmul %286, %287, %cst_117 {dimension_numbers = #tpu.dot_dimension_numbers<[1], [1], [0], [0], [0, 0, 1, 0], [], []>} : vector<16x32xf32>, vector<16x32xf32>, vector<16x16xf32> -> vector<16x16xf32>
    %cst_118 = arith.constant 0.176776692 : f32
    %290 = vector.broadcast %cst_118 : f32 to vector<16x16xf32>
    %291 = arith.mulf %289, %290 : vector<16x16xf32>
    %cst_119 = arith.constant dense<0xFF800000> : vector<16xf32>
    %292 = vector.multi_reduction <maximumf>, %291, %cst_119 [1] : vector<16x16xf32> to vector<16xf32>
    %293 = vector.shape_cast %292 : vector<16xf32> to vector<16x1xf32>
    %294 = vector.broadcast %293 : vector<16x1xf32> to vector<16x16xf32>
    %295 = arith.subf %291, %294 : vector<16x16xf32>
    %296 = math.exp %295 : vector<16x16xf32>
    %cst_120 = arith.constant dense<0.000000e+00> : vector<16xf32>
    %297 = vector.multi_reduction <add>, %296, %cst_120 [1] : vector<16x16xf32> to vector<16xf32>
    %298 = vector.shape_cast %297 : vector<16xf32> to vector<16x1xf32>
    %299 = tpu.reciprocal %298 {approx = true} : vector<16x1xf32> -> vector<16x1xf32>
    %300 = vector.broadcast %299 : vector<16x1xf32> to vector<16x16xf32>
    %301 = arith.mulf %296, %300 : vector<16x16xf32>
    %cst_121 = arith.constant dense<0.000000e+00> : vector<16x32xf32>
    %302 = tpu.matmul %301, %288, %cst_121 {dimension_numbers = #tpu.dot_dimension_numbers<[1], [0], [0], [1], [0, 0, 1, 1], [], []>} : vector<16x16xf32>, vector<16x32xf32>, vector<16x32xf32> -> vector<16x32xf32>
    %303 = vector.extract_strided_slice %268 {offsets = [0, 64], sizes = [16, 32], strides = [1, 1]} : vector<16x384xf32> to vector<16x32xf32>
    %304 = vector.extract_strided_slice %268 {offsets = [0, 192], sizes = [16, 32], strides = [1, 1]} : vector<16x384xf32> to vector<16x32xf32>
    %305 = vector.extract_strided_slice %268 {offsets = [0, 320], sizes = [16, 32], strides = [1, 1]} : vector<16x384xf32> to vector<16x32xf32>
    %cst_122 = arith.constant dense<0.000000e+00> : vector<16x16xf32>
    %306 = tpu.matmul %303, %304, %cst_122 {dimension_numbers = #tpu.dot_dimension_numbers<[1], [1], [0], [0], [0, 0, 1, 0], [], []>} : vector<16x32xf32>, vector<16x32xf32>, vector<16x16xf32> -> vector<16x16xf32>
    %cst_123 = arith.constant 0.176776692 : f32
    %307 = vector.broadcast %cst_123 : f32 to vector<16x16xf32>
    %308 = arith.mulf %306, %307 : vector<16x16xf32>
    %cst_124 = arith.constant dense<0xFF800000> : vector<16xf32>
    %309 = vector.multi_reduction <maximumf>, %308, %cst_124 [1] : vector<16x16xf32> to vector<16xf32>
    %310 = vector.shape_cast %309 : vector<16xf32> to vector<16x1xf32>
    %311 = vector.broadcast %310 : vector<16x1xf32> to vector<16x16xf32>
    %312 = arith.subf %308, %311 : vector<16x16xf32>
    %313 = math.exp %312 : vector<16x16xf32>
    %cst_125 = arith.constant dense<0.000000e+00> : vector<16xf32>
    %314 = vector.multi_reduction <add>, %313, %cst_125 [1] : vector<16x16xf32> to vector<16xf32>
    %315 = vector.shape_cast %314 : vector<16xf32> to vector<16x1xf32>
    %316 = tpu.reciprocal %315 {approx = true} : vector<16x1xf32> -> vector<16x1xf32>
    %317 = vector.broadcast %316 : vector<16x1xf32> to vector<16x16xf32>
    %318 = arith.mulf %313, %317 : vector<16x16xf32>
    %cst_126 = arith.constant dense<0.000000e+00> : vector<16x32xf32>
    %319 = tpu.matmul %318, %305, %cst_126 {dimension_numbers = #tpu.dot_dimension_numbers<[1], [0], [0], [1], [0, 0, 1, 1], [], []>} : vector<16x16xf32>, vector<16x32xf32>, vector<16x32xf32> -> vector<16x32xf32>
    %320 = vector.extract_strided_slice %268 {offsets = [0, 96], sizes = [16, 32], strides = [1, 1]} : vector<16x384xf32> to vector<16x32xf32>
    %321 = vector.extract_strided_slice %268 {offsets = [0, 224], sizes = [16, 32], strides = [1, 1]} : vector<16x384xf32> to vector<16x32xf32>
    %322 = vector.extract_strided_slice %268 {offsets = [0, 352], sizes = [16, 32], strides = [1, 1]} : vector<16x384xf32> to vector<16x32xf32>
    %cst_127 = arith.constant dense<0.000000e+00> : vector<16x16xf32>
    %323 = tpu.matmul %320, %321, %cst_127 {dimension_numbers = #tpu.dot_dimension_numbers<[1], [1], [0], [0], [0, 0, 1, 0], [], []>} : vector<16x32xf32>, vector<16x32xf32>, vector<16x16xf32> -> vector<16x16xf32>
    %cst_128 = arith.constant 0.176776692 : f32
    %324 = vector.broadcast %cst_128 : f32 to vector<16x16xf32>
    %325 = arith.mulf %323, %324 : vector<16x16xf32>
    %cst_129 = arith.constant dense<0xFF800000> : vector<16xf32>
    %326 = vector.multi_reduction <maximumf>, %325, %cst_129 [1] : vector<16x16xf32> to vector<16xf32>
    %327 = vector.shape_cast %326 : vector<16xf32> to vector<16x1xf32>
    %328 = vector.broadcast %327 : vector<16x1xf32> to vector<16x16xf32>
    %329 = arith.subf %325, %328 : vector<16x16xf32>
    %330 = math.exp %329 : vector<16x16xf32>
    %cst_130 = arith.constant dense<0.000000e+00> : vector<16xf32>
    %331 = vector.multi_reduction <add>, %330, %cst_130 [1] : vector<16x16xf32> to vector<16xf32>
    %332 = vector.shape_cast %331 : vector<16xf32> to vector<16x1xf32>
    %333 = tpu.reciprocal %332 {approx = true} : vector<16x1xf32> -> vector<16x1xf32>
    %334 = vector.broadcast %333 : vector<16x1xf32> to vector<16x16xf32>
    %335 = arith.mulf %330, %334 : vector<16x16xf32>
    %cst_131 = arith.constant dense<0.000000e+00> : vector<16x32xf32>
    %336 = tpu.matmul %335, %322, %cst_131 {dimension_numbers = #tpu.dot_dimension_numbers<[1], [0], [0], [1], [0, 0, 1, 1], [], []>} : vector<16x16xf32>, vector<16x32xf32>, vector<16x32xf32> -> vector<16x32xf32>
    %337 = tpu.concatenate %285, %302, %319, %336 in 1 : vector<16x32xf32>, vector<16x32xf32>, vector<16x32xf32>, vector<16x32xf32> -> vector<16x128xf32>
    %cst_132 = arith.constant dense<0.000000e+00> : vector<16x128xf32>
    %338 = tpu.matmul %337, %262, %cst_132 {dimension_numbers = #tpu.dot_dimension_numbers<[1], [0], [0], [1], [0, 0, 1, 1], [], []>} : vector<16x128xf32>, vector<128x128xf32>, vector<16x128xf32> -> vector<16x128xf32>
    %339 = vector.broadcast %263 : vector<1x128xf32> to vector<16x128xf32>
    %340 = arith.addf %338, %339 : vector<16x128xf32>
    %341 = arith.addf %340, %259 : vector<16x128xf32>
    %cst_133 = arith.constant dense<0.000000e+00> : vector<16xf32>
    %342 = vector.multi_reduction <add>, %341, %cst_133 [1] : vector<16x128xf32> to vector<16xf32>
    %343 = vector.shape_cast %342 : vector<16xf32> to vector<16x1xf32>
    %cst_134 = arith.constant 1.280000e+02 : f32
    %344 = vector.broadcast %cst_134 : f32 to vector<16x1xf32>
    %345 = arith.divf %343, %344 : vector<16x1xf32>
    %346 = vector.broadcast %345 : vector<16x1xf32> to vector<16x128xf32>
    %347 = arith.subf %341, %346 : vector<16x128xf32>
    %348 = arith.mulf %347, %347 : vector<16x128xf32>
    %cst_135 = arith.constant dense<0.000000e+00> : vector<16xf32>
    %349 = vector.multi_reduction <add>, %348, %cst_135 [1] : vector<16x128xf32> to vector<16xf32>
    %350 = vector.shape_cast %349 : vector<16xf32> to vector<16x1xf32>
    %cst_136 = arith.constant 1.280000e+02 : f32
    %351 = vector.broadcast %cst_136 : f32 to vector<16x1xf32>
    %352 = arith.divf %350, %351 : vector<16x1xf32>
    %353 = vector.broadcast %345 : vector<16x1xf32> to vector<16x128xf32>
    %354 = arith.subf %341, %353 : vector<16x128xf32>
    %cst_137 = arith.constant 9.99999974E-6 : f32
    %355 = vector.broadcast %cst_137 : f32 to vector<16x1xf32>
    %356 = arith.addf %352, %355 : vector<16x1xf32>
    %357 = math.rsqrt %356 : vector<16x1xf32>
    %358 = vector.broadcast %357 : vector<16x1xf32> to vector<16x128xf32>
    %359 = arith.mulf %354, %358 : vector<16x128xf32>
    %360 = vector.broadcast %264 : vector<1x128xf32> to vector<16x128xf32>
    %361 = arith.mulf %359, %360 : vector<16x128xf32>
    %362 = vector.broadcast %265 : vector<1x128xf32> to vector<16x128xf32>
    %363 = arith.addf %361, %362 : vector<16x128xf32>
    %c0_138 = arith.constant 0 : index
    %c0_139 = arith.constant 0 : index
    %364 = vector.load %arg10[%c0_138, %c0_139] : memref<128x32xf32, #tpu.memory_space<vmem>>, vector<128x32xf32>
    %c0_140 = arith.constant 0 : index
    %c0_141 = arith.constant 0 : index
    %365 = vector.load %arg11[%c0_140, %c0_141] : memref<1x32xf32, #tpu.memory_space<vmem>>, vector<1x32xf32>
    %c0_142 = arith.constant 0 : index
    %c0_143 = arith.constant 0 : index
    %366 = vector.load %arg12[%c0_142, %c0_143] : memref<1x32xf32, #tpu.memory_space<vmem>>, vector<1x32xf32>
    %c0_144 = arith.constant 0 : index
    %c0_145 = arith.constant 0 : index
    %367 = vector.load %arg13[%c0_144, %c0_145] : memref<1x32xf32, #tpu.memory_space<vmem>>, vector<1x32xf32>
    %cst_146 = arith.constant dense<0.000000e+00> : vector<16x32xf32>
    %368 = tpu.matmul %363, %364, %cst_146 {dimension_numbers = #tpu.dot_dimension_numbers<[1], [0], [0], [1], [0, 0, 1, 1], [], []>} : vector<16x128xf32>, vector<128x32xf32>, vector<16x32xf32> -> vector<16x32xf32>
    %cst_147 = arith.constant dense<0.000000e+00> : vector<16x1xf32>
    %369 = tpu.matmul %368, %366, %cst_147 {dimension_numbers = #tpu.dot_dimension_numbers<[1], [1], [0], [0], [0, 0, 1, 0], [], []>} : vector<16x32xf32>, vector<1x32xf32>, vector<16x1xf32> -> vector<16x1xf32>
    %cst_148 = arith.constant dense<0.000000e+00> : vector<1x16xf32>
    %370 = tpu.matmul %365, %368, %cst_148 {dimension_numbers = #tpu.dot_dimension_numbers<[1], [1], [0], [0], [0, 0, 1, 0], [], []>} : vector<1x32xf32>, vector<16x32xf32>, vector<1x16xf32> -> vector<1x16xf32>
    %371 = vector.broadcast %369 : vector<16x1xf32> to vector<16x16xf32>
    %372 = vector.broadcast %370 : vector<1x16xf32> to vector<16x16xf32>
    %373 = arith.addf %371, %372 : vector<16x16xf32>
    %cst_149 = arith.constant 0.000000e+00 : f32
    %374 = vector.broadcast %cst_149 : f32 to vector<16x16xf32>
    %375 = arith.cmpf ogt, %373, %374 : vector<16x16xf32>
    %cst_150 = arith.constant 2.000000e-01 : f32
    %376 = vector.broadcast %cst_150 : f32 to vector<16x16xf32>
    %377 = arith.mulf %376, %373 : vector<16x16xf32>
    %378 = arith.select %375, %373, %377 : vector<16x16xi1>, vector<16x16xf32>
    %cst_151 = arith.constant -1.000000e+30 : f32
    %379 = vector.broadcast %cst_151 : f32 to vector<16x16xf32>
    %380 = arith.select %2, %378, %379 : vector<16x16xi1>, vector<16x16xf32>
    %cst_152 = arith.constant dense<0xFF800000> : vector<16xf32>
    %381 = vector.multi_reduction <maximumf>, %380, %cst_152 [1] : vector<16x16xf32> to vector<16xf32>
    %382 = vector.shape_cast %381 : vector<16xf32> to vector<16x1xf32>
    %383 = vector.broadcast %382 : vector<16x1xf32> to vector<16x16xf32>
    %384 = arith.subf %380, %383 : vector<16x16xf32>
    %385 = math.exp %384 : vector<16x16xf32>
    %cst_153 = arith.constant 0.000000e+00 : f32
    %386 = vector.broadcast %cst_153 : f32 to vector<16x16xf32>
    %387 = arith.select %2, %385, %386 : vector<16x16xi1>, vector<16x16xf32>
    %cst_154 = arith.constant dense<0.000000e+00> : vector<16xf32>
    %388 = vector.multi_reduction <add>, %387, %cst_154 [1] : vector<16x16xf32> to vector<16xf32>
    %389 = vector.shape_cast %388 : vector<16xf32> to vector<16x1xf32>
    %390 = tpu.reciprocal %389 {approx = true} : vector<16x1xf32> -> vector<16x1xf32>
    %391 = vector.broadcast %390 : vector<16x1xf32> to vector<16x16xf32>
    %392 = arith.mulf %387, %391 : vector<16x16xf32>
    %cst_155 = arith.constant dense<0.000000e+00> : vector<16x32xf32>
    %393 = tpu.matmul %392, %368, %cst_155 {dimension_numbers = #tpu.dot_dimension_numbers<[1], [0], [0], [1], [0, 0, 1, 1], [], []>} : vector<16x16xf32>, vector<16x32xf32>, vector<16x32xf32> -> vector<16x32xf32>
    %cst_156 = arith.constant 1.000000e+00 : f32
    %394 = vector.broadcast %cst_156 : f32 to vector<16x32xf32>
    %395 = arith.mulf %393, %394 : vector<16x32xf32>
    %396 = vector.broadcast %367 : vector<1x32xf32> to vector<16x32xf32>
    %397 = arith.addf %395, %396 : vector<16x32xf32>
    %c0_157 = arith.constant 0 : index
    %c0_158 = arith.constant 0 : index
    %398 = vector.load %arg20[%c0_157, %c0_158] : memref<16x32xf32, #tpu.memory_space<vmem>>, vector<16x32xf32>
    tpu.vector_store %arg20[%c0_157, %c0_158], %397 {strides = array<i32>} : memref<16x32xf32, #tpu.memory_space<vmem>>, vector<16x32xf32>,
    return
  }
}

</mosaic_0001>

<llo_original>
// kernel: tpu_custom_call.1
$region0: #{tpu_custom_call.1}
  #allocation0 [shape = 'u32[]', space=smem, size = 0x4, offset = 0x4, fixed_abs, tag = 'smem constant byte address 0x4 - core index']
  #allocation1 [shape = 'u32[144,128]{1,0:T(1,128)}', space=vmem, size = 0x12000, scoped, tag = 'internal scratch']
  %s0 = inlined_call_operand.vmem [shape: f32[16,16], index: 0, kind: input, shape index: {}]
  %s1 = inlined_call_operand.vmem [shape: f32[16,16], index: 1, kind: input, shape index: {}]
  %s2 = inlined_call_operand.hbm [shape: f32[16,128], index: 2, kind: input, shape index: {}]
  %s3 = inlined_call_operand.vmem [shape: f32[4,32], index: 3, kind: input, shape index: {}]
  %s4 = inlined_call_operand.vmem [shape: f32[4,32], index: 4, kind: input, shape index: {}]
  %s5 = inlined_call_operand.hbm [shape: f32[1,128], index: 5, kind: input, shape index: {}]
  %s6 = inlined_call_operand.vmem [shape: f32[128,128], index: 6, kind: input, shape index: {}]
  %s7 = inlined_call_operand.vmem [shape: f32[4,32], index: 7, kind: input, shape index: {}]
  %s8 = inlined_call_operand.hbm [shape: f32[4,32], index: 8, kind: input, shape index: {}]
  %s9 = inlined_call_operand.vmem [shape: f32[1,128], index: 9, kind: input, shape index: {}]
  %s10 = inlined_call_operand.vmem [shape: f32[128,32], index: 10, kind: input, shape index: {}]
  %s11 = inlined_call_operand.vmem [shape: f32[1,32], index: 11, kind: input, shape index: {}]
  %s12 = inlined_call_operand.vmem [shape: f32[1,32], index: 12, kind: input, shape index: {}]
  %s13 = inlined_call_operand.vmem [shape: f32[1,32], index: 13, kind: input, shape index: {}]
  %s14 = inlined_call_operand.hbm [shape: f32[128,384], index: 14, kind: input, shape index: {}]
  %s15 = inlined_call_operand.vmem [shape: f32[1,384], index: 15, kind: input, shape index: {}]
  %s16 = inlined_call_operand.hbm [shape: f32[128,128], index: 16, kind: input, shape index: {}]
  %s17 = inlined_call_operand.vmem [shape: f32[1,128], index: 17, kind: input, shape index: {}]
  %s18 = inlined_call_operand.vmem [shape: f32[1,128], index: 18, kind: input, shape index: {}]
  %s19 = inlined_call_operand.vmem [shape: f32[1,128], index: 19, kind: input, shape index: {}]
  %s20 = inlined_call_operand.hbm [shape: f32[16,32], index: 20, kind: output, shape index: {}]
  %s21 = sld [smem:[#allocation0]]
  $region110: #{tpu_custom_call.1} parent=0
    _
  %s23 = ssub.s32 1, %s21
  %s24 = scalar_select 0, %s23, %s21
  $region1: #{tpu_custom_call.1} parent=0
    #allocation2 [shape = 'u8[8192]{0}', space=vmem, size = 0x2000, scoped, tag = 'input window, operand 2, single buffered']
    #allocation3 [shape = 's32[1]{0}', space=sflag, size = 0x4, scoped, tag = 'scoped memory for tpu_custom_call.1']
    #allocation4 [shape = 's32[1]{0}', space=sflag, size = 0x4, scoped, tag = 'scoped memory for tpu_custom_call.1']
    #allocation5 [shape = 'u8[512]{0}', space=vmem, size = 0x400, scoped, tag = 'input window, operand 5, single buffered']
    #allocation6 [shape = 's32[1]{0}', space=sflag, size = 0x4, scoped, tag = 'scoped memory for tpu_custom_call.1']
    #allocation7 [shape = 'u8[2048]{0}', space=vmem, size = 0x800, scoped, tag = 'input window, operand 8, single buffered']
    #allocation8 [shape = 'u8[196608]{0}', space=vmem, size = 0x30000, scoped, tag = 'input window, operand 14, single buffered']
    #allocation9 [shape = 's32[1]{0}', space=sflag, size = 0x4, scoped, tag = 'scoped memory for tpu_custom_call.1']
    #allocation10 [shape = 'u8[65536]{0}', space=vmem, size = 0x10000, scoped, tag = 'input window, operand 16, single buffered']
    #allocation11 [shape = 'u8[8192]{0}', space=vmem, size = 0x2000, scoped, tag = 'output window, operand 0, single buffered']
    %25 = vsyncpa [#allocation3], 0
    %26 = vsyncpa [#allocation6], 0
    %27 = vsyncpa [#allocation9], 0
    %28 = vsyncpa [#allocation4], 0
    // Predicated region
    $region2: #{tpu_custom_call.1} parent=1 // pred_check
      _
    $region3: #{tpu_custom_call.1} parent=1 // pred_check_branch
      %30 = sbr.rel (0) target = $region5
    $region4: #{tpu_custom_call.1} parent=1 // pred_region
      _
    $region5: #{tpu_custom_call.1} parent=1 // pred_fallthru
      _
    // Predicated region
    $region6: #{tpu_custom_call.1} parent=1 // pred_check
      _
    $region7: #{tpu_custom_call.1} parent=1 // pred_check_branch
      %32 = sbr.rel (0) target = $region9
    $region8: #{tpu_custom_call.1} parent=1 // pred_region
      _
    $region9: #{tpu_custom_call.1} parent=1 // pred_fallthru
      _
    // Predicated region
    $region10: #{tpu_custom_call.1} parent=1 // pred_check
      _
    $region11: #{tpu_custom_call.1} parent=1 // pred_check_branch
      %34 = sbr.rel (0) target = $region13
    $region12: #{tpu_custom_call.1} parent=1 // pred_region
      %s36 = ssub.s32 256, 256
      %37 = vsyncadd [#allocation3], %s36
      %s38 = sshll.u32 [#allocation2], 4
      %s39 = int_to_ptr.vmem [resolvable:$true] %s38
      %44 = dma.hbm_to_vmem [thread:$0]  %s2, 256, %s39, [#allocation3], 128, 128, 8
    $region13: #{tpu_custom_call.1} parent=1 // pred_fallthru
      _
    // Predicated region
    $region14: #{tpu_custom_call.1} parent=1 // pred_check
      _
    $region15: #{tpu_custom_call.1} parent=1 // pred_check_branch
      %46 = sbr.rel (0) target = $region17
    $region16: #{tpu_custom_call.1} parent=1 // pred_region
      _
    $region17: #{tpu_custom_call.1} parent=1 // pred_fallthru
      _
    // Predicated region
    $region18: #{tpu_custom_call.1} parent=1 // pred_check
      _
    $region19: #{tpu_custom_call.1} parent=1 // pred_check_branch
      %48 = sbr.rel (0) target = $region21
    $region20: #{tpu_custom_call.1} parent=1 // pred_region
      _
    $region21: #{tpu_custom_call.1} parent=1 // pred_fallthru
      _
    // Predicated region
    $region22: #{tpu_custom_call.1} parent=1 // pred_check
      _
    $region23: #{tpu_custom_call.1} parent=1 // pred_check_branch
      %50 = sbr.rel (0) target = $region25
    $region24: #{tpu_custom_call.1} parent=1 // pred_region
      %s52 = ssub.s32 16, 16
      %53 = vsyncadd [#allocation6], %s52
      %s55 = sshll.u32 [#allocation5], 4
      %s56 = int_to_ptr.vmem [resolvable:$true] %s55
      %58 = dma.hbm_to_vmem [thread:$0]  %s5, 16, %s56, [#allocation6]
    $region25: #{tpu_custom_call.1} parent=1 // pred_fallthru
      _
    // Predicated region
    $region26: #{tpu_custom_call.1} parent=1 // pred_check
      _
    $region27: #{tpu_custom_call.1} parent=1 // pred_check_branch
      %60 = sbr.rel (0) target = $region29
    $region28: #{tpu_custom_call.1} parent=1 // pred_region
      _
    $region29: #{tpu_custom_call.1} parent=1 // pred_fallthru
      _
    // Predicated region
    $region30: #{tpu_custom_call.1} parent=1 // pred_check
      _
    $region31: #{tpu_custom_call.1} parent=1 // pred_check_branch
      %62 = sbr.rel (0) target = $region33
    $region32: #{tpu_custom_call.1} parent=1 // pred_region
      _
    $region33: #{tpu_custom_call.1} parent=1 // pred_fallthru
      _
    // Predicated region
    $region34: #{tpu_custom_call.1} parent=1 // pred_check
      _
    $region35: #{tpu_custom_call.1} parent=1 // pred_check_branch
      %64 = sbr.rel (0) target = $region37
    $region36: #{tpu_custom_call.1} parent=1 // pred_region
      %s66 = ssub.s32 64, 64
      %67 = vsyncadd [#allocation6], %s66
      %s69 = sshll.u32 [#allocation7], 4
      %s70 = int_to_ptr.vmem [resolvable:$true] %s69
      %72 = dma.hbm_to_vmem [thread:$0]  %s8, 64, %s70, [#allocation6]
    $region37: #{tpu_custom_call.1} parent=1 // pred_fallthru
      _
    // Predicated region
    $region38: #{tpu_custom_call.1} parent=1 // pred_check
      _
    $region39: #{tpu_custom_call.1} parent=1 // pred_check_branch
      %74 = sbr.rel (0) target = $region41
    $region40: #{tpu_custom_call.1} parent=1 // pred_region
      _
    $region41: #{tpu_custom_call.1} parent=1 // pred_fallthru
      _
    // Predicated region
    $region42: #{tpu_custom_call.1} parent=1 // pred_check
      _
    $region43: #{tpu_custom_call.1} parent=1 // pred_check_branch
      %76 = sbr.rel (0) target = $region45
    $region44: #{tpu_custom_call.1} parent=1 // pred_region
      _
    $region45: #{tpu_custom_call.1} parent=1 // pred_fallthru
      _
    // Predicated region
    $region46: #{tpu_custom_call.1} parent=1 // pred_check
      _
    $region47: #{tpu_custom_call.1} parent=1 // pred_check_branch
      %78 = sbr.rel (0) target = $region49
    $region48: #{tpu_custom_call.1} parent=1 // pred_region
      _
    $region49: #{tpu_custom_call.1} parent=1 // pred_fallthru
      _
    // Predicated region
    $region50: #{tpu_custom_call.1} parent=1 // pred_check
      _
    $region51: #{tpu_custom_call.1} parent=1 // pred_check_branch
      %80 = sbr.rel (0) target = $region53
    $region52: #{tpu_custom_call.1} parent=1 // pred_region
      _
    $region53: #{tpu_custom_call.1} parent=1 // pred_fallthru
      _
    // Predicated region
    $region54: #{tpu_custom_call.1} parent=1 // pred_check
      _
    $region55: #{tpu_custom_call.1} parent=1 // pred_check_branch
      %82 = sbr.rel (0) target = $region57
    $region56: #{tpu_custom_call.1} parent=1 // pred_region
      _
    $region57: #{tpu_custom_call.1} parent=1 // pred_fallthru
      _
    // Predicated region
    $region58: #{tpu_custom_call.1} parent=1 // pred_check
      _
    $region59: #{tpu_custom_call.1} parent=1 // pred_check_branch
      %84 = sbr.rel (0) target = $region61
    $region60: #{tpu_custom_call.1} parent=1 // pred_region
      %s86 = ssub.s32 6144, 6144
      %87 = vsyncadd [#allocation9], %s86
      %s88 = sshll.u32 [#allocation8], 4
      %s89 = int_to_ptr.vmem [resolvable:$true] %s88
      %94 = dma.hbm_to_vmem [thread:$0]  %s14, 6144, %s89, [#allocation9], 384, 384, 24
    $region61: #{tpu_custom_call.1} parent=1 // pred_fallthru
      _
    // Predicated region
    $region62: #{tpu_custom_call.1} parent=1 // pred_check
      _
    $region63: #{tpu_custom_call.1} parent=1 // pred_check_branch
      %96 = sbr.rel (0) target = $region65
    $region64: #{tpu_custom_call.1} parent=1 // pred_region
      _
    $region65: #{tpu_custom_call.1} parent=1 // pred_fallthru
      _
    // Predicated region
    $region66: #{tpu_custom_call.1} parent=1 // pred_check
      _
    $region67: #{tpu_custom_call.1} parent=1 // pred_check_branch
      %98 = sbr.rel (0) target = $region69
    $region68: #{tpu_custom_call.1} parent=1 // pred_region
      %s100 = ssub.s32 2048, 2048
      %101 = vsyncadd [#allocation9], %s100
      %s102 = sshll.u32 [#allocation10], 4
      %s103 = int_to_ptr.vmem [resolvable:$true] %s102
      %108 = dma.hbm_to_vmem [thread:$0]  %s16, 2048, %s103, [#allocation9], 128, 128, 8
    $region69: #{tpu_custom_call.1} parent=1 // pred_fallthru
      _
    // Predicated region
    $region70: #{tpu_custom_call.1} parent=1 // pred_check
      _
    $region71: #{tpu_custom_call.1} parent=1 // pred_check_branch
      %110 = sbr.rel (0) target = $region73
    $region72: #{tpu_custom_call.1} parent=1 // pred_region
      _
    $region73: #{tpu_custom_call.1} parent=1 // pred_fallthru
      _
    // Predicated region
    $region74: #{tpu_custom_call.1} parent=1 // pred_check
      _
    $region75: #{tpu_custom_call.1} parent=1 // pred_check_branch
      %112 = sbr.rel (0) target = $region77
    $region76: #{tpu_custom_call.1} parent=1 // pred_region
      _
    $region77: #{tpu_custom_call.1} parent=1 // pred_fallthru
      _
    // Predicated region
    $region78: #{tpu_custom_call.1} parent=1 // pred_check
      _
    $region79: #{tpu_custom_call.1} parent=1 // pred_check_branch
      %114 = sbr.rel (0) target = $region81
    $region80: #{tpu_custom_call.1} parent=1 // pred_region
      _
    $region81: #{tpu_custom_call.1} parent=1 // pred_fallthru
      _
    // Predicated region
    $region82: #{tpu_custom_call.1} parent=1 // pred_check
      _
    $region83: #{tpu_custom_call.1} parent=1 // pred_check_branch
      %116 = sbr.rel (0) target = $region85
    $region84: #{tpu_custom_call.1} parent=1 // pred_region
      %117 = dma.done [#allocation3], 256
    $region85: #{tpu_custom_call.1} parent=1 // pred_fallthru
      _
    // Predicated region
    $region86: #{tpu_custom_call.1} parent=1 // pred_check
      _
    $region87: #{tpu_custom_call.1} parent=1 // pred_check_branch
      %119 = sbr.rel (0) target = $region89
    $region88: #{tpu_custom_call.1} parent=1 // pred_region
      %120 = dma.done [#allocation6], 16
    $region89: #{tpu_custom_call.1} parent=1 // pred_fallthru
      _
    // Predicated region
    $region90: #{tpu_custom_call.1} parent=1 // pred_check
      _
    $region91: #{tpu_custom_call.1} parent=1 // pred_check_branch
      %122 = sbr.rel (0) target = $region93
    $region92: #{tpu_custom_call.1} parent=1 // pred_region
      %123 = dma.done [#allocation6], 64
    $region93: #{tpu_custom_call.1} parent=1 // pred_fallthru
      _
    // Predicated region
    $region94: #{tpu_custom_call.1} parent=1 // pred_check
      _
    $region95: #{tpu_custom_call.1} parent=1 // pred_check_branch
      %125 = sbr.rel (0) target = $region97
    $region96: #{tpu_custom_call.1} parent=1 // pred_region
      %126 = dma.done [#allocation9], 6144
    $region97: #{tpu_custom_call.1} parent=1 // pred_fallthru
      _
    // Predicated region
    $region98: #{tpu_custom_call.1} parent=1 // pred_check
      _
    $region99: #{tpu_custom_call.1} parent=1 // pred_check_branch
      %128 = sbr.rel (0) target = $region101
    $region100: #{tpu_custom_call.1} parent=1 // pred_region
      %129 = dma.done [#allocation9], 2048
    $region101: #{tpu_custom_call.1} parent=1 // pred_fallthru
      _
    %v130 = vld [vmem:[%s1] sm:$0xff]
    %v131 = vld [vmem:[%s1 + $0x8] sm:$0xff]
    %vm132 = vcmp.gt.f32.partialorder %v130, 0.0
    %vm133 = vcmp.gt.f32.partialorder %v131, 0.0
    %v134 = vld [vmem:[%s0] sm:$0xff]
    %v135 = vld [vmem:[%s0 + $0x8] sm:$0xff]
    %v136 = vld [vmem:[#allocation2] sm:$0xff]
    %v137 = vld [vmem:[#allocation2 + $0x8] sm:$0xff]
    %v138 = vld [vmem:[%s3] sm:$0xf]
    %v139 = vld [vmem:[%s4] sm:$0xf]
    %v140 = vld [vmem:[#allocation5] sm:$0x1]
    %vm141 = vcmask 130048
    %v143 = vsel %vm141, %v134, 0
    %v146 = vsel %vm141, %v135, 0
    %148 = vmatprep.subr.mxu0 0.0
    %149 = vmatpush1.msra.mxu0 0.0
    %150 = vmatprep.subr.mxu0 0.0
    %151 = vmatpush1.msra.mxu0 0.0
    %152 = vmatprep.subr.mxu0 0.0
    %153 = vmatpush1.msra.mxu0 0.0
    %154 = vmatprep.subr.mxu0 0.0
    %155 = vmatpush1.msra.mxu0 0.0
    %156 = vmatprep.subr.mxu0 0.0
    %157 = vmatpush1.msra.mxu0 0.0
    %158 = vmatprep.subr.mxu0 0.0
    %159 = vmatpush1.msra.mxu0 0.0
    %160 = vmatprep.subr.mxu0 0.0
    %161 = vmatpush1.msra.mxu0 0.0
    %162 = vmatprep.subr.mxu0 0.0
    %163 = vmatpush1.msra.mxu0 0.0
    %164 = vmatprep.subr.mxu0 0.0
    %165 = vmatpush1.msra.mxu0 0.0
    %166 = vmatprep.subr.mxu0 0.0
    %167 = vmatpush1.msra.mxu0 0.0
    %168 = vmatprep.subr.mxu0 0.0
    %169 = vmatpush1.msra.mxu0 0.0
    %170 = vmatprep.subr.mxu0 0.0
    %171 = vmatpush1.msra.mxu0 0.0
    %172 = vmatprep.subr.mxu0 0.0
    %173 = vmatpush1.msra.mxu0 0.0
    %174 = vmatprep.subr.mxu0 0.0
    %175 = vmatpush1.msra.mxu0 0.0
    %176 = vmatprep.subr.mxu0 0.0
    %177 = vmatpush1.msra.mxu0 %v137
    %178 = vmatprep.subr.mxu0 0.0
    %179 = vmatpush1.msra.mxu0 %v136
    %180 = vmatprep.subr.mxu0 0.0
    %181 = vmatpush2.msra.mxu0 0.0
    %182 = vmatprep.subr.mxu0 0.0
    %183 = vmatpush2.msra.mxu0 0.0
    %184 = vmatprep.subr.mxu0 0.0
    %185 = vmatpush2.msra.mxu0 0.0
    %186 = vmatprep.subr.mxu0 0.0
    %187 = vmatpush2.msra.mxu0 0.0
    %188 = vmatprep.subr.mxu0 0.0
    %189 = vmatpush2.msra.mxu0 0.0
    %190 = vmatprep.subr.mxu0 0.0
    %191 = vmatpush2.msra.mxu0 0.0
    %192 = vmatprep.subr.mxu0 0.0
    %193 = vmatpush2.msra.mxu0 0.0
    %194 = vmatprep.subr.mxu0 0.0
    %195 = vmatpush2.msra.mxu0 0.0
    %196 = vmatprep.subr.mxu0 0.0
    %197 = vmatpush2.msra.mxu0 0.0
    %198 = vmatprep.subr.mxu0 0.0
    %199 = vmatpush2.msra.mxu0 0.0
    %200 = vmatprep.subr.mxu0 0.0
    %201 = vmatpush2.msra.mxu0 0.0
    %202 = vmatprep.subr.mxu0 0.0
    %203 = vmatpush2.msra.mxu0 0.0
    %204 = vmatprep.subr.mxu0 0.0
    %205 = vmatpush2.msra.mxu0 0.0
    %206 = vmatprep.subr.mxu0 0.0
    %207 = vmatpush2.msra.mxu0 0.0
    %208 = vmatprep.subr.mxu0 0.0
    %209 = vmatpush2.msra.mxu0 0.0
    %210 = vmatprep.subr.mxu0 0.0
    %211 = vmatpush2.msra.mxu0 0.0
    %212 = vmatprep.mubr.f32.mxu0 0.0
    %213 = vmatmul.mubr.f32.gmra.mxu0 %v143
    %v214 = vpop.f32.mrf.mxu0
    %v215 = vadd.f32 0.0, %v214
    %v216 = vpop.f32.mrf.mxu0
    %217 = vmatprep.mubr.f32.mxu0 0.0
    %218 = vmatmul.mubr.f32.gmra.mxu0 %v146
    %v219 = vpop.f32.mrf.mxu0
    %v220 = vadd.f32 0.0, %v219
    %v221 = vpop.f32.mrf.mxu0
    %222 = vdwg.mxu0
    %v223 = vlaneseq
    %v224 = vshrl.u32 %v223, 7
    %v225 = vsub.s32 0, %v224
    %v226 = vrot.slane %v139, %v225
    %v227 = vmul.f32 %v215, %v226
    %v228 = vmul.f32 %v220, %v226
    %vm229 = vcmask 261120
    %v230 = vsel %vm229, %v227, 0.0
    %231 = vadd.xlane.f32.xlu0 %v230
    %v232 = vpop.xlane.xlu0 %231
    %v233 = vsel %vm229, %v228, 0.0
    %234 = vadd.xlane.f32.xlu0 %v233
    %v235 = vpop.xlane.xlu0 %234
    %v237 = vsel %vm229, %v138, 0
    %v240 = vsel %vm229, %v215, 0
    %v243 = vsel %vm229, %v220, 0
    %245 = vmatprep.subr.mxu0 0.0
    %246 = vmatpush1.xpose.msra.mxu0 0.0
    %247 = vmatprep.subr.mxu0 0.0
    %248 = vmatpush1.xpose.msra.mxu0 0.0
    %249 = vmatprep.subr.mxu0 0.0
    %250 = vmatpush1.xpose.msra.mxu0 0.0
    %251 = vmatprep.subr.mxu0 0.0
    %252 = vmatpush1.xpose.msra.mxu0 0.0
    %253 = vmatprep.subr.mxu0 0.0
    %254 = vmatpush1.xpose.msra.mxu0 0.0
    %255 = vmatprep.subr.mxu0 0.0
    %256 = vmatpush1.xpose.msra.mxu0 0.0
    %257 = vmatprep.subr.mxu0 0.0
    %258 = vmatpush1.xpose.msra.mxu0 0.0
    %259 = vmatprep.subr.mxu0 0.0
    %260 = vmatpush1.xpose.msra.mxu0 0.0
    %261 = vmatprep.subr.mxu0 0.0
    %262 = vmatpush1.xpose.msra.mxu0 0.0
    %263 = vmatprep.subr.mxu0 0.0
    %264 = vmatpush1.xpose.msra.mxu0 0.0
    %265 = vmatprep.subr.mxu0 0.0
    %266 = vmatpush1.xpose.msra.mxu0 0.0
    %267 = vmatprep.subr.mxu0 0.0
    %268 = vmatpush1.xpose.msra.mxu0 0.0
    %269 = vmatprep.subr.mxu0 0.0
    %270 = vmatpush1.xpose.msra.mxu0 0.0
    %271 = vmatprep.subr.mxu0 0.0
    %272 = vmatpush1.xpose.msra.mxu0 0.0
    %273 = vmatprep.subr.mxu0 0.0
    %274 = vmatpush1.xpose.msra.mxu0 %v243
    %275 = vmatprep.subr.mxu0 0.0
    %276 = vmatpush1.xpose.msra.mxu0 %v240
    %277 = vmatprep.subr.mxu0 0.0
    %278 = vmatpush2.xpose.msra.mxu0 0.0
    %279 = vmatprep.subr.mxu0 0.0
    %280 = vmatpush2.xpose.msra.mxu0 0.0
    %281 = vmatprep.subr.mxu0 0.0
    %282 = vmatpush2.xpose.msra.mxu0 0.0
    %283 = vmatprep.subr.mxu0 0.0
    %284 = vmatpush2.xpose.msra.mxu0 0.0
    %285 = vmatprep.subr.mxu0 0.0
    %286 = vmatpush2.xpose.msra.mxu0 0.0
    %287 = vmatprep.subr.mxu0 0.0
    %288 = vmatpush2.xpose.msra.mxu0 0.0
    %289 = vmatprep.subr.mxu0 0.0
    %290 = vmatpush2.xpose.msra.mxu0 0.0
    %291 = vmatprep.subr.mxu0 0.0
    %292 = vmatpush2.xpose.msra.mxu0 0.0
    %293 = vmatprep.subr.mxu0 0.0
    %294 = vmatpush2.xpose.msra.mxu0 0.0
    %295 = vmatprep.subr.mxu0 0.0
    %296 = vmatpush2.xpose.msra.mxu0 0.0
    %297 = vmatprep.subr.mxu0 0.0
    %298 = vmatpush2.xpose.msra.mxu0 0.0
    %299 = vmatprep.subr.mxu0 0.0
    %300 = vmatpush2.xpose.msra.mxu0 0.0
    %301 = vmatprep.subr.mxu0 0.0
    %302 = vmatpush2.xpose.msra.mxu0 0.0
    %303 = vmatprep.subr.mxu0 0.0
    %304 = vmatpush2.xpose.msra.mxu0 0.0
    %305 = vmatprep.subr.mxu0 0.0
    %306 = vmatpush2.xpose.msra.mxu0 0.0
    %307 = vmatprep.subr.mxu0 0.0
    %308 = vmatpush2.xpose.msra.mxu0 0.0
    %309 = vmatprep.mubr.f32.mxu0 0.0
    %310 = vmatmul.mubr.f32.gmra.mxu0 %v237
    %v311 = vpop.f32.mrf.mxu0
    %v312 = vadd.f32 0.0, %v311
    %v313 = vpop.f32.mrf.mxu0
    %314 = vdwg.mxu0
    %v315 = vlaneseq
    %v316 = vshrl.u32 %v315, 7
    %v317 = vsub.s32 0, %v316
    %v318 = vrot.slane %v312, %v317
    %v319 = vadd.f32 %v232, %v318
    %v320 = vadd.f32 %v235, %v318
    %vm321 = vcmp.gt.f32.partialorder %v319, 0.0
    %vm322 = vcmp.gt.f32.partialorder %v320, 0.0
    %v323 = vmul.f32 %v319, 0.2
    %v324 = vmul.f32 %v320, 0.2
    %v325 = vsel %vm321, %v319, %v323
    %v326 = vsel %vm322, %v320, %v324
    %v327 = vsel %vm132, %v325, -1e+30
    %v328 = vsel %vm133, %v326, -1e+30
    %v329 = vsel %vm141, %v327, -inf
    %330 = vmax.xlane.f32.xlu0 %v329
    %v331 = vpop.xlane.xlu0 %330
    %v332 = vsel %vm141, %v328, -inf
    %333 = vmax.xlane.f32.xlu0 %v332
    %v334 = vpop.xlane.xlu0 %333
    %v335 = vsub.f32 %v327, %v331
    %v336 = vsub.f32 %v328, %v334
    %v337 = vmul.f32 %v335, 1.442695
    %v338 = vpow.pop %v337
    %v339 = vmul.f32 %v336, 1.442695
    %v340 = vpow.pop %v339
    %v341 = vsel %vm132, %v338, 0.0
    %v342 = vsel %vm133, %v340, 0.0
    %v343 = vsel %vm141, %v341, 0.0
    %344 = vadd.xlane.f32.xlu0 %v343
    %v345 = vpop.xlane.xlu0 %344
    %v346 = vsel %vm141, %v342, 0.0
    %347 = vadd.xlane.f32.xlu0 %v346
    %v348 = vpop.xlane.xlu0 %347
    %v349 = vrcp.pop %v345
    %v350 = vrcp.pop %v348
    %v351 = vmul.f32 %v341, %v349
    %v352 = vmul.f32 %v342, %v350
    %v354 = vsel %vm141, %v351, 0
    %v357 = vsel %vm141, %v352, 0
    %359 = vmatprep.subr.mxu0 0.0
    %360 = vmatpush1.msra.mxu0 0.0
    %361 = vmatprep.subr.mxu0 0.0
    %362 = vmatpush1.msra.mxu0 0.0
    %363 = vmatprep.subr.mxu0 0.0
    %364 = vmatpush1.msra.mxu0 0.0
    %365 = vmatprep.subr.mxu0 0.0
    %366 = vmatpush1.msra.mxu0 0.0
    %367 = vmatprep.subr.mxu0 0.0
    %368 = vmatpush1.msra.mxu0 0.0
    %369 = vmatprep.subr.mxu0 0.0
    %370 = vmatpush1.msra.mxu0 0.0
    %371 = vmatprep.subr.mxu0 0.0
    %372 = vmatpush1.msra.mxu0 0.0
    %373 = vmatprep.subr.mxu0 0.0
    %374 = vmatpush1.msra.mxu0 0.0
    %375 = vmatprep.subr.mxu0 0.0
    %376 = vmatpush1.msra.mxu0 0.0
    %377 = vmatprep.subr.mxu0 0.0
    %378 = vmatpush1.msra.mxu0 0.0
    %379 = vmatprep.subr.mxu0 0.0
    %380 = vmatpush1.msra.mxu0 0.0
    %381 = vmatprep.subr.mxu0 0.0
    %382 = vmatpush1.msra.mxu0 0.0
    %383 = vmatprep.subr.mxu0 0.0
    %384 = vmatpush1.msra.mxu0 0.0
    %385 = vmatprep.subr.mxu0 0.0
    %386 = vmatpush1.msra.mxu0 0.0
    %387 = vmatprep.subr.mxu0 0.0
    %388 = vmatpush1.msra.mxu0 %v220
    %389 = vmatprep.subr.mxu0 0.0
    %390 = vmatpush1.msra.mxu0 %v215
    %391 = vmatprep.subr.mxu0 0.0
    %392 = vmatpush2.msra.mxu0 0.0
    %393 = vmatprep.subr.mxu0 0.0
    %394 = vmatpush2.msra.mxu0 0.0
    %395 = vmatprep.subr.mxu0 0.0
    %396 = vmatpush2.msra.mxu0 0.0
    %397 = vmatprep.subr.mxu0 0.0
    %398 = vmatpush2.msra.mxu0 0.0
    %399 = vmatprep.subr.mxu0 0.0
    %400 = vmatpush2.msra.mxu0 0.0
    %401 = vmatprep.subr.mxu0 0.0
    %402 = vmatpush2.msra.mxu0 0.0
    %403 = vmatprep.subr.mxu0 0.0
    %404 = vmatpush2.msra.mxu0 0.0
    %405 = vmatprep.subr.mxu0 0.0
    %406 = vmatpush2.msra.mxu0 0.0
    %407 = vmatprep.subr.mxu0 0.0
    %408 = vmatpush2.msra.mxu0 0.0
    %409 = vmatprep.subr.mxu0 0.0
    %410 = vmatpush2.msra.mxu0 0.0
    %411 = vmatprep.subr.mxu0 0.0
    %412 = vmatpush2.msra.mxu0 0.0
    %413 = vmatprep.subr.mxu0 0.0
    %414 = vmatpush2.msra.mxu0 0.0
    %415 = vmatprep.subr.mxu0 0.0
    %416 = vmatpush2.msra.mxu0 0.0
    %417 = vmatprep.subr.mxu0 0.0
    %418 = vmatpush2.msra.mxu0 0.0
    %419 = vmatprep.subr.mxu0 0.0
    %420 = vmatpush2.msra.mxu0 0.0
    %421 = vmatprep.subr.mxu0 0.0
    %422 = vmatpush2.msra.mxu0 0.0
    %423 = vmatprep.mubr.f32.mxu0 0.0
    %424 = vmatmul.mubr.f32.gmra.mxu0 %v354
    %v425 = vpop.f32.mrf.mxu0
    %v426 = vadd.f32 0.0, %v425
    %v427 = vpop.f32.mrf.mxu0
    %428 = vmatprep.mubr.f32.mxu0 0.0
    %429 = vmatmul.mubr.f32.gmra.mxu0 %v357
    %v430 = vpop.f32.mrf.mxu0
    %v431 = vadd.f32 0.0, %v430
    %v432 = vpop.f32.mrf.mxu0
    %433 = vdwg.mxu0
    %v434 = vlaneseq
    %v435 = vshrl.u32 %v434, 7
    %v436 = vsub.s32 1, %v435
    %v437 = vrot.slane %v139, %v436
    %439 = vrot.lane.b32.xlu0 %v437, 32
    %v440 = vpop.permute.xlu0 %439
    %v442 = vmul.f32 %v215, %v440
    %v443 = vmul.f32 %v220, %v440
    %446 = vrot.lane.b32.xlu0 %v442, 96
    %v447 = vpop.permute.xlu0 %446
    %448 = vrot.lane.b32.xlu0 %v443, 96
    %v449 = vpop.permute.xlu0 %448
    %v452 = vsel %vm229, %v447, 0.0
    %453 = vadd.xlane.f32.xlu0 %v452
    %v454 = vpop.xlane.xlu0 %453
    %v455 = vsel %vm229, %v449, 0.0
    %456 = vadd.xlane.f32.xlu0 %v455
    %v457 = vpop.xlane.xlu0 %456
    %v458 = vrot.slane %v138, 1
    %459 = vrot.lane.b32.xlu0 %v215, 96
    %v460 = vpop.permute.xlu0 %459
    %461 = vrot.lane.b32.xlu0 %v220, 96
    %v462 = vpop.permute.xlu0 %461
    %v463 = vsel %vm229, %v458, 0
    %v465 = vsel %vm229, %v460, 0
    %v467 = vsel %vm229, %v462, 0
    %469 = vmatprep.subr.mxu0 0.0
    %470 = vmatpush1.xpose.msra.mxu0 0.0
    %471 = vmatprep.subr.mxu0 0.0
    %472 = vmatpush1.xpose.msra.mxu0 0.0
    %473 = vmatprep.subr.mxu0 0.0
    %474 = vmatpush1.xpose.msra.mxu0 0.0
    %475 = vmatprep.subr.mxu0 0.0
    %476 = vmatpush1.xpose.msra.mxu0 0.0
    %477 = vmatprep.subr.mxu0 0.0
    %478 = vmatpush1.xpose.msra.mxu0 0.0
    %479 = vmatprep.subr.mxu0 0.0
    %480 = vmatpush1.xpose.msra.mxu0 0.0
    %481 = vmatprep.subr.mxu0 0.0
    %482 = vmatpush1.xpose.msra.mxu0 0.0
    %483 = vmatprep.subr.mxu0 0.0
    %484 = vmatpush1.xpose.msra.mxu0 0.0
    %485 = vmatprep.subr.mxu0 0.0
    %486 = vmatpush1.xpose.msra.mxu0 0.0
    %487 = vmatprep.subr.mxu0 0.0
    %488 = vmatpush1.xpose.msra.mxu0 0.0
    %489 = vmatprep.subr.mxu0 0.0
    %490 = vmatpush1.xpose.msra.mxu0 0.0
    %491 = vmatprep.subr.mxu0 0.0
    %492 = vmatpush1.xpose.msra.mxu0 0.0
    %493 = vmatprep.subr.mxu0 0.0
    %494 = vmatpush1.xpose.msra.mxu0 0.0
    %495 = vmatprep.subr.mxu0 0.0
    %496 = vmatpush1.xpose.msra.mxu0 0.0
    %497 = vmatprep.subr.mxu0 0.0
    %498 = vmatpush1.xpose.msra.mxu0 %v467
    %499 = vmatprep.subr.mxu0 0.0
    %500 = vmatpush1.xpose.msra.mxu0 %v465
    %501 = vmatprep.subr.mxu0 0.0
    %502 = vmatpush2.xpose.msra.mxu0 0.0
    %503 = vmatprep.subr.mxu0 0.0
    %504 = vmatpush2.xpose.msra.mxu0 0.0
    %505 = vmatprep.subr.mxu0 0.0
    %506 = vmatpush2.xpose.msra.mxu0 0.0
    %507 = vmatprep.subr.mxu0 0.0
    %508 = vmatpush2.xpose.msra.mxu0 0.0
    %509 = vmatprep.subr.mxu0 0.0
    %510 = vmatpush2.xpose.msra.mxu0 0.0
    %511 = vmatprep.subr.mxu0 0.0
    %512 = vmatpush2.xpose.msra.mxu0 0.0
    %513 = vmatprep.subr.mxu0 0.0
    %514 = vmatpush2.xpose.msra.mxu0 0.0
    %515 = vmatprep.subr.mxu0 0.0
    %516 = vmatpush2.xpose.msra.mxu0 0.0
    %517 = vmatprep.subr.mxu0 0.0
    %518 = vmatpush2.xpose.msra.mxu0 0.0
    %519 = vmatprep.subr.mxu0 0.0
    %520 = vmatpush2.xpose.msra.mxu0 0.0
    %521 = vmatprep.subr.mxu0 0.0
    %522 = vmatpush2.xpose.msra.mxu0 0.0
    %523 = vmatprep.subr.mxu0 0.0
    %524 = vmatpush2.xpose.msra.mxu0 0.0
    %525 = vmatprep.subr.mxu0 0.0
    %526 = vmatpush2.xpose.msra.mxu0 0.0
    %527 = vmatprep.subr.mxu0 0.0
    %528 = vmatpush2.xpose.msra.mxu0 0.0
    %529 = vmatprep.subr.mxu0 0.0
    %530 = vmatpush2.xpose.msra.mxu0 0.0
    %531 = vmatprep.subr.mxu0 0.0
    %532 = vmatpush2.xpose.msra.mxu0 0.0
    %533 = vmatprep.mubr.f32.mxu0 0.0
    %534 = vmatmul.mubr.f32.gmra.mxu0 %v463
    %v535 = vpop.f32.mrf.mxu0
    %v536 = vadd.f32 0.0, %v535
    %v537 = vpop.f32.mrf.mxu0
    %538 = vdwg.mxu0
    %v539 = vlaneseq
    %v540 = vshrl.u32 %v539, 7
    %v541 = vsub.s32 0, %v540
    %v542 = vrot.slane %v536, %v541
    %v543 = vadd.f32 %v454, %v542
    %v544 = vadd.f32 %v457, %v542
    %vm545 = vcmp.gt.f32.partialorder %v543, 0.0
    %vm546 = vcmp.gt.f32.partialorder %v544, 0.0
    %v547 = vmul.f32 %v543, 0.2
    %v548 = vmul.f32 %v544, 0.2
    %v549 = vsel %vm545, %v543, %v547
    %v550 = vsel %vm546, %v544, %v548
    %v551 = vsel %vm132, %v549, -1e+30
    %v552 = vsel %vm133, %v550, -1e+30
    %v553 = vsel %vm141, %v551, -inf
    %554 = vmax.xlane.f32.xlu0 %v553
    %v555 = vpop.xlane.xlu0 %554
    %v556 = vsel %vm141, %v552, -inf
    %557 = vmax.xlane.f32.xlu0 %v556
    %v558 = vpop.xlane.xlu0 %557
    %v559 = vsub.f32 %v551, %v555
    %v560 = vsub.f32 %v552, %v558
    %v561 = vmul.f32 %v559, 1.442695
    %v562 = vpow.pop %v561
    %v563 = vmul.f32 %v560, 1.442695
    %v564 = vpow.pop %v563
    %v565 = vsel %vm132, %v562, 0.0
    %v566 = vsel %vm133, %v564, 0.0
    %v567 = vsel %vm141, %v565, 0.0
    %568 = vadd.xlane.f32.xlu0 %v567
    %v569 = vpop.xlane.xlu0 %568
    %v570 = vsel %vm141, %v566, 0.0
    %571 = vadd.xlane.f32.xlu0 %v570
    %v572 = vpop.xlane.xlu0 %571
    %v573 = vrcp.pop %v569
    %v574 = vrcp.pop %v572
    %v575 = vmul.f32 %v565, %v573
    %v576 = vmul.f32 %v566, %v574
    %v580 = vsel %vm141, %v575, 0
    %v583 = vsel %vm141, %v576, 0
    %585 = vmatprep.subr.mxu0 0.0
    %586 = vmatpush1.msra.mxu0 0.0
    %587 = vmatprep.subr.mxu0 0.0
    %588 = vmatpush1.msra.mxu0 0.0
    %589 = vmatprep.subr.mxu0 0.0
    %590 = vmatpush1.msra.mxu0 0.0
    %591 = vmatprep.subr.mxu0 0.0
    %592 = vmatpush1.msra.mxu0 0.0
    %593 = vmatprep.subr.mxu0 0.0
    %594 = vmatpush1.msra.mxu0 0.0
    %595 = vmatprep.subr.mxu0 0.0
    %596 = vmatpush1.msra.mxu0 0.0
    %597 = vmatprep.subr.mxu0 0.0
    %598 = vmatpush1.msra.mxu0 0.0
    %599 = vmatprep.subr.mxu0 0.0
    %600 = vmatpush1.msra.mxu0 0.0
    %601 = vmatprep.subr.mxu0 0.0
    %602 = vmatpush1.msra.mxu0 0.0
    %603 = vmatprep.subr.mxu0 0.0
    %604 = vmatpush1.msra.mxu0 0.0
    %605 = vmatprep.subr.mxu0 0.0
    %606 = vmatpush1.msra.mxu0 0.0
    %607 = vmatprep.subr.mxu0 0.0
    %608 = vmatpush1.msra.mxu0 0.0
    %609 = vmatprep.subr.mxu0 0.0
    %610 = vmatpush1.msra.mxu0 0.0
    %611 = vmatprep.subr.mxu0 0.0
    %612 = vmatpush1.msra.mxu0 0.0
    %613 = vmatprep.subr.mxu0 0.0
    %614 = vmatpush1.msra.mxu0 %v462
    %615 = vmatprep.subr.mxu0 0.0
    %616 = vmatpush1.msra.mxu0 %v460
    %617 = vmatprep.subr.mxu0 0.0
    %618 = vmatpush2.msra.mxu0 0.0
    %619 = vmatprep.subr.mxu0 0.0
    %620 = vmatpush2.msra.mxu0 0.0
    %621 = vmatprep.subr.mxu0 0.0
    %622 = vmatpush2.msra.mxu0 0.0
    %623 = vmatprep.subr.mxu0 0.0
    %624 = vmatpush2.msra.mxu0 0.0
    %625 = vmatprep.subr.mxu0 0.0
    %626 = vmatpush2.msra.mxu0 0.0
    %627 = vmatprep.subr.mxu0 0.0
    %628 = vmatpush2.msra.mxu0 0.0
    %629 = vmatprep.subr.mxu0 0.0
    %630 = vmatpush2.msra.mxu0 0.0
    %631 = vmatprep.subr.mxu0 0.0
    %632 = vmatpush2.msra.mxu0 0.0
    %633 = vmatprep.subr.mxu0 0.0
    %634 = vmatpush2.msra.mxu0 0.0
    %635 = vmatprep.subr.mxu0 0.0
    %636 = vmatpush2.msra.mxu0 0.0
    %637 = vmatprep.subr.mxu0 0.0
    %638 = vmatpush2.msra.mxu0 0.0
    %639 = vmatprep.subr.mxu0 0.0
    %640 = vmatpush2.msra.mxu0 0.0
    %641 = vmatprep.subr.mxu0 0.0
    %642 = vmatpush2.msra.mxu0 0.0
    %643 = vmatprep.subr.mxu0 0.0
    %644 = vmatpush2.msra.mxu0 0.0
    %645 = vmatprep.subr.mxu0 0.0
    %646 = vmatpush2.msra.mxu0 0.0
    %647 = vmatprep.subr.mxu0 0.0
    %648 = vmatpush2.msra.mxu0 0.0
    %649 = vmatprep.mubr.f32.mxu0 0.0
    %650 = vmatmul.mubr.f32.gmra.mxu0 %v580
    %v651 = vpop.f32.mrf.mxu0
    %v652 = vadd.f32 0.0, %v651
    %v653 = vpop.f32.mrf.mxu0
    %654 = vmatprep.mubr.f32.mxu0 0.0
    %655 = vmatmul.mubr.f32.gmra.mxu0 %v583
    %v656 = vpop.f32.mrf.mxu0
    %v657 = vadd.f32 0.0, %v656
    %v658 = vpop.f32.mrf.mxu0
    %659 = vdwg.mxu0
    %v660 = vlaneseq
    %v661 = vshrl.u32 %v660, 7
    %v662 = vsub.s32 2, %v661
    %v663 = vrot.slane %v139, %v662
    %665 = vrot.lane.b32.xlu0 %v663, 64
    %v666 = vpop.permute.xlu0 %665
    %v668 = vmul.f32 %v215, %v666
    %v669 = vmul.f32 %v220, %v666
    %672 = vrot.lane.b32.xlu0 %v668, 64
    %v673 = vpop.permute.xlu0 %672
    %674 = vrot.lane.b32.xlu0 %v669, 64
    %v675 = vpop.permute.xlu0 %674
    %v678 = vsel %vm229, %v673, 0.0
    %679 = vadd.xlane.f32.xlu0 %v678
    %v680 = vpop.xlane.xlu0 %679
    %v681 = vsel %vm229, %v675, 0.0
    %682 = vadd.xlane.f32.xlu0 %v681
    %v683 = vpop.xlane.xlu0 %682
    %v684 = vrot.slane %v138, 2
    %685 = vrot.lane.b32.xlu0 %v215, 64
    %v686 = vpop.permute.xlu0 %685
    %687 = vrot.lane.b32.xlu0 %v220, 64
    %v688 = vpop.permute.xlu0 %687
    %v689 = vsel %vm229, %v684, 0
    %v691 = vsel %vm229, %v686, 0
    %v693 = vsel %vm229, %v688, 0
    %695 = vmatprep.subr.mxu0 0.0
    %696 = vmatpush1.xpose.msra.mxu0 0.0
    %697 = vmatprep.subr.mxu0 0.0
    %698 = vmatpush1.xpose.msra.mxu0 0.0
    %699 = vmatprep.subr.mxu0 0.0
    %700 = vmatpush1.xpose.msra.mxu0 0.0
    %701 = vmatprep.subr.mxu0 0.0
    %702 = vmatpush1.xpose.msra.mxu0 0.0
    %703 = vmatprep.subr.mxu0 0.0
    %704 = vmatpush1.xpose.msra.mxu0 0.0
    %705 = vmatprep.subr.mxu0 0.0
    %706 = vmatpush1.xpose.msra.mxu0 0.0
    %707 = vmatprep.subr.mxu0 0.0
    %708 = vmatpush1.xpose.msra.mxu0 0.0
    %709 = vmatprep.subr.mxu0 0.0
    %710 = vmatpush1.xpose.msra.mxu0 0.0
    %711 = vmatprep.subr.mxu0 0.0
    %712 = vmatpush1.xpose.msra.mxu0 0.0
    %713 = vmatprep.subr.mxu0 0.0
    %714 = vmatpush1.xpose.msra.mxu0 0.0
    %715 = vmatprep.subr.mxu0 0.0
    %716 = vmatpush1.xpose.msra.mxu0 0.0
    %717 = vmatprep.subr.mxu0 0.0
    %718 = vmatpush1.xpose.msra.mxu0 0.0
    %719 = vmatprep.subr.mxu0 0.0
    %720 = vmatpush1.xpose.msra.mxu0 0.0
    %721 = vmatprep.subr.mxu0 0.0
    %722 = vmatpush1.xpose.msra.mxu0 0.0
    %723 = vmatprep.subr.mxu0 0.0
    %724 = vmatpush1.xpose.msra.mxu0 %v693
    %725 = vmatprep.subr.mxu0 0.0
    %726 = vmatpush1.xpose.msra.mxu0 %v691
    %727 = vmatprep.subr.mxu0 0.0
    %728 = vmatpush2.xpose.msra.mxu0 0.0
    %729 = vmatprep.subr.mxu0 0.0
    %730 = vmatpush2.xpose.msra.mxu0 0.0
    %731 = vmatprep.subr.mxu0 0.0
    %732 = vmatpush2.xpose.msra.mxu0 0.0
    %733 = vmatprep.subr.mxu0 0.0
    %734 = vmatpush2.xpose.msra.mxu0 0.0
    %735 = vmatprep.subr.mxu0 0.0
    %736 = vmatpush2.xpose.msra.mxu0 0.0
    %737 = vmatprep.subr.mxu0 0.0
    %738 = vmatpush2.xpose.msra.mxu0 0.0
    %739 = vmatprep.subr.mxu0 0.0
    %740 = vmatpush2.xpose.msra.mxu0 0.0
    %741 = vmatprep.subr.mxu0 0.0
    %742 = vmatpush2.xpose.msra.mxu0 0.0
    %743 = vmatprep.subr.mxu0 0.0
    %744 = vmatpush2.xpose.msra.mxu0 0.0
    %745 = vmatprep.subr.mxu0 0.0
    %746 = vmatpush2.xpose.msra.mxu0 0.0
    %747 = vmatprep.subr.mxu0 0.0
    %748 = vmatpush2.xpose.msra.mxu0 0.0
    %749 = vmatprep.subr.mxu0 0.0
    %750 = vmatpush2.xpose.msra.mxu0 0.0
    %751 = vmatprep.subr.mxu0 0.0
    %752 = vmatpush2.xpose.msra.mxu0 0.0
    %753 = vmatprep.subr.mxu0 0.0
    %754 = vmatpush2.xpose.msra.mxu0 0.0
    %755 = vmatprep.subr.mxu0 0.0
    %756 = vmatpush2.xpose.msra.mxu0 0.0
    %757 = vmatprep.subr.mxu0 0.0
    %758 = vmatpush2.xpose.msra.mxu0 0.0
    %759 = vmatprep.mubr.f32.mxu0 0.0
    %760 = vmatmul.mubr.f32.gmra.mxu0 %v689
    %v761 = vpop.f32.mrf.mxu0
    %v762 = vadd.f32 0.0, %v761
    %v763 = vpop.f32.mrf.mxu0
    %764 = vdwg.mxu0
    %v765 = vlaneseq
    %v766 = vshrl.u32 %v765, 7
    %v767 = vsub.s32 0, %v766
    %v768 = vrot.slane %v762, %v767
    %v769 = vadd.f32 %v680, %v768
    %v770 = vadd.f32 %v683, %v768
    %vm771 = vcmp.gt.f32.partialorder %v769, 0.0
    %vm772 = vcmp.gt.f32.partialorder %v770, 0.0
    %v773 = vmul.f32 %v769, 0.2
    %v774 = vmul.f32 %v770, 0.2
    %v775 = vsel %vm771, %v769, %v773
    %v776 = vsel %vm772, %v770, %v774
    %v777 = vsel %vm132, %v775, -1e+30
    %v778 = vsel %vm133, %v776, -1e+30
    %v779 = vsel %vm141, %v777, -inf
    %780 = vmax.xlane.f32.xlu0 %v779
    %v781 = vpop.xlane.xlu0 %780
    %v782 = vsel %vm141, %v778, -inf
    %783 = vmax.xlane.f32.xlu0 %v782
    %v784 = vpop.xlane.xlu0 %783
    %v785 = vsub.f32 %v777, %v781
    %v786 = vsub.f32 %v778, %v784
    %v787 = vmul.f32 %v785, 1.442695
    %v788 = vpow.pop %v787
    %v789 = vmul.f32 %v786, 1.442695
    %v790 = vpow.pop %v789
    %v791 = vsel %vm132, %v788, 0.0
    %v792 = vsel %vm133, %v790, 0.0
    %v793 = vsel %vm141, %v791, 0.0
    %794 = vadd.xlane.f32.xlu0 %v793
    %v795 = vpop.xlane.xlu0 %794
    %v796 = vsel %vm141, %v792, 0.0
    %797 = vadd.xlane.f32.xlu0 %v796
    %v798 = vpop.xlane.xlu0 %797
    %v799 = vrcp.pop %v795
    %v800 = vrcp.pop %v798
    %v801 = vmul.f32 %v791, %v799
    %v802 = vmul.f32 %v792, %v800
    %v806 = vsel %vm141, %v801, 0
    %v809 = vsel %vm141, %v802, 0
    %811 = vmatprep.subr.mxu0 0.0
    %812 = vmatpush1.msra.mxu0 0.0
    %813 = vmatprep.subr.mxu0 0.0
    %814 = vmatpush1.msra.mxu0 0.0
    %815 = vmatprep.subr.mxu0 0.0
    %816 = vmatpush1.msra.mxu0 0.0
    %817 = vmatprep.subr.mxu0 0.0
    %818 = vmatpush1.msra.mxu0 0.0
    %819 = vmatprep.subr.mxu0 0.0
    %820 = vmatpush1.msra.mxu0 0.0
    %821 = vmatprep.subr.mxu0 0.0
    %822 = vmatpush1.msra.mxu0 0.0
    %823 = vmatprep.subr.mxu0 0.0
    %824 = vmatpush1.msra.mxu0 0.0
    %825 = vmatprep.subr.mxu0 0.0
    %826 = vmatpush1.msra.mxu0 0.0
    %827 = vmatprep.subr.mxu0 0.0
    %828 = vmatpush1.msra.mxu0 0.0
    %829 = vmatprep.subr.mxu0 0.0
    %830 = vmatpush1.msra.mxu0 0.0
    %831 = vmatprep.subr.mxu0 0.0
    %832 = vmatpush1.msra.mxu0 0.0
    %833 = vmatprep.subr.mxu0 0.0
    %834 = vmatpush1.msra.mxu0 0.0
    %835 = vmatprep.subr.mxu0 0.0
    %836 = vmatpush1.msra.mxu0 0.0
    %837 = vmatprep.subr.mxu0 0.0
    %838 = vmatpush1.msra.mxu0 0.0
    %839 = vmatprep.subr.mxu0 0.0
    %840 = vmatpush1.msra.mxu0 %v688
    %841 = vmatprep.subr.mxu0 0.0
    %842 = vmatpush1.msra.mxu0 %v686
    %843 = vmatprep.subr.mxu0 0.0
    %844 = vmatpush2.msra.mxu0 0.0
    %845 = vmatprep.subr.mxu0 0.0
    %846 = vmatpush2.msra.mxu0 0.0
    %847 = vmatprep.subr.mxu0 0.0
    %848 = vmatpush2.msra.mxu0 0.0
    %849 = vmatprep.subr.mxu0 0.0
    %850 = vmatpush2.msra.mxu0 0.0
    %851 = vmatprep.subr.mxu0 0.0
    %852 = vmatpush2.msra.mxu0 0.0
    %853 = vmatprep.subr.mxu0 0.0
    %854 = vmatpush2.msra.mxu0 0.0
    %855 = vmatprep.subr.mxu0 0.0
    %856 = vmatpush2.msra.mxu0 0.0
    %857 = vmatprep.subr.mxu0 0.0
    %858 = vmatpush2.msra.mxu0 0.0
    %859 = vmatprep.subr.mxu0 0.0
    %860 = vmatpush2.msra.mxu0 0.0
    %861 = vmatprep.subr.mxu0 0.0
    %862 = vmatpush2.msra.mxu0 0.0
    %863 = vmatprep.subr.mxu0 0.0
    %864 = vmatpush2.msra.mxu0 0.0
    %865 = vmatprep.subr.mxu0 0.0
    %866 = vmatpush2.msra.mxu0 0.0
    %867 = vmatprep.subr.mxu0 0.0
    %868 = vmatpush2.msra.mxu0 0.0
    %869 = vmatprep.subr.mxu0 0.0
    %870 = vmatpush2.msra.mxu0 0.0
    %871 = vmatprep.subr.mxu0 0.0
    %872 = vmatpush2.msra.mxu0 0.0
    %873 = vmatprep.subr.mxu0 0.0
    %874 = vmatpush2.msra.mxu0 0.0
    %875 = vmatprep.mubr.f32.mxu0 0.0
    %876 = vmatmul.mubr.f32.gmra.mxu0 %v806
    %v877 = vpop.f32.mrf.mxu0
    %v878 = vadd.f32 0.0, %v877
    %v879 = vpop.f32.mrf.mxu0
    %880 = vmatprep.mubr.f32.mxu0 0.0
    %881 = vmatmul.mubr.f32.gmra.mxu0 %v809
    %v882 = vpop.f32.mrf.mxu0
    %v883 = vadd.f32 0.0, %v882
    %v884 = vpop.f32.mrf.mxu0
    %885 = vdwg.mxu0
    %v886 = vlaneseq
    %v887 = vshrl.u32 %v886, 7
    %v888 = vsub.s32 3, %v887
    %v889 = vrot.slane %v139, %v888
    %891 = vrot.lane.b32.xlu0 %v889, 96
    %v892 = vpop.permute.xlu0 %891
    %v894 = vmul.f32 %v215, %v892
    %v895 = vmul.f32 %v220, %v892
    %898 = vrot.lane.b32.xlu0 %v894, 32
    %v899 = vpop.permute.xlu0 %898
    %900 = vrot.lane.b32.xlu0 %v895, 32
    %v901 = vpop.permute.xlu0 %900
    %v904 = vsel %vm229, %v899, 0.0
    %905 = vadd.xlane.f32.xlu0 %v904
    %v906 = vpop.xlane.xlu0 %905
    %v907 = vsel %vm229, %v901, 0.0
    %908 = vadd.xlane.f32.xlu0 %v907
    %v909 = vpop.xlane.xlu0 %908
    %v910 = vrot.slane %v138, 3
    %911 = vrot.lane.b32.xlu0 %v215, 32
    %v912 = vpop.permute.xlu0 %911
    %913 = vrot.lane.b32.xlu0 %v220, 32
    %v914 = vpop.permute.xlu0 %913
    %v915 = vsel %vm229, %v910, 0
    %v917 = vsel %vm229, %v912, 0
    %v919 = vsel %vm229, %v914, 0
    %921 = vmatprep.subr.mxu0 0.0
    %922 = vmatpush1.xpose.msra.mxu0 0.0
    %923 = vmatprep.subr.mxu0 0.0
    %924 = vmatpush1.xpose.msra.mxu0 0.0
    %925 = vmatprep.subr.mxu0 0.0
    %926 = vmatpush1.xpose.msra.mxu0 0.0
    %927 = vmatprep.subr.mxu0 0.0
    %928 = vmatpush1.xpose.msra.mxu0 0.0
    %929 = vmatprep.subr.mxu0 0.0
    %930 = vmatpush1.xpose.msra.mxu0 0.0
    %931 = vmatprep.subr.mxu0 0.0
    %932 = vmatpush1.xpose.msra.mxu0 0.0
    %933 = vmatprep.subr.mxu0 0.0
    %934 = vmatpush1.xpose.msra.mxu0 0.0
    %935 = vmatprep.subr.mxu0 0.0
    %936 = vmatpush1.xpose.msra.mxu0 0.0
    %937 = vmatprep.subr.mxu0 0.0
    %938 = vmatpush1.xpose.msra.mxu0 0.0
    %939 = vmatprep.subr.mxu0 0.0
    %940 = vmatpush1.xpose.msra.mxu0 0.0
    %941 = vmatprep.subr.mxu0 0.0
    %942 = vmatpush1.xpose.msra.mxu0 0.0
    %943 = vmatprep.subr.mxu0 0.0
    %944 = vmatpush1.xpose.msra.mxu0 0.0
    %945 = vmatprep.subr.mxu0 0.0
    %946 = vmatpush1.xpose.msra.mxu0 0.0
    %947 = vmatprep.subr.mxu0 0.0
    %948 = vmatpush1.xpose.msra.mxu0 0.0
    %949 = vmatprep.subr.mxu0 0.0
    %950 = vmatpush1.xpose.msra.mxu0 %v919
    %951 = vmatprep.subr.mxu0 0.0
    %952 = vmatpush1.xpose.msra.mxu0 %v917
    %953 = vmatprep.subr.mxu0 0.0
    %954 = vmatpush2.xpose.msra.mxu0 0.0
    %955 = vmatprep.subr.mxu0 0.0
    %956 = vmatpush2.xpose.msra.mxu0 0.0
    %957 = vmatprep.subr.mxu0 0.0
    %958 = vmatpush2.xpose.msra.mxu0 0.0
    %959 = vmatprep.subr.mxu0 0.0
    %960 = vmatpush2.xpose.msra.mxu0 0.0
    %961 = vmatprep.subr.mxu0 0.0
    %962 = vmatpush2.xpose.msra.mxu0 0.0
    %963 = vmatprep.subr.mxu0 0.0
    %964 = vmatpush2.xpose.msra.mxu0 0.0
    %965 = vmatprep.subr.mxu0 0.0
    %966 = vmatpush2.xpose.msra.mxu0 0.0
    %967 = vmatprep.subr.mxu0 0.0
    %968 = vmatpush2.xpose.msra.mxu0 0.0
    %969 = vmatprep.subr.mxu0 0.0
    %970 = vmatpush2.xpose.msra.mxu0 0.0
    %971 = vmatprep.subr.mxu0 0.0
    %972 = vmatpush2.xpose.msra.mxu0 0.0
    %973 = vmatprep.subr.mxu0 0.0
    %974 = vmatpush2.xpose.msra.mxu0 0.0
    %975 = vmatprep.subr.mxu0 0.0
    %976 = vmatpush2.xpose.msra.mxu0 0.0
    %977 = vmatprep.subr.mxu0 0.0
    %978 = vmatpush2.xpose.msra.mxu0 0.0
    %979 = vmatprep.subr.mxu0 0.0
    %980 = vmatpush2.xpose.msra.mxu0 0.0
    %981 = vmatprep.subr.mxu0 0.0
    %982 = vmatpush2.xpose.msra.mxu0 0.0
    %983 = vmatprep.subr.mxu0 0.0
    %984 = vmatpush2.xpose.msra.mxu0 0.0
    %985 = vmatprep.mubr.f32.mxu0 0.0
    %986 = vmatmul.mubr.f32.gmra.mxu0 %v915
    %v987 = vpop.f32.mrf.mxu0
    %v988 = vadd.f32 0.0, %v987
    %v989 = vpop.f32.mrf.mxu0
    %990 = vdwg.mxu0
    %v991 = vlaneseq
    %v992 = vshrl.u32 %v991, 7
    %v993 = vsub.s32 0, %v992
    %v994 = vrot.slane %v988, %v993
    %v995 = vadd.f32 %v906, %v994
    %v996 = vadd.f32 %v909, %v994
    %vm997 = vcmp.gt.f32.partialorder %v995, 0.0
    %vm998 = vcmp.gt.f32.partialorder %v996, 0.0
    %v999 = vmul.f32 %v995, 0.2
    %v1000 = vmul.f32 %v996, 0.2
    %v1001 = vsel %vm997, %v995, %v999
    %v1002 = vsel %vm998, %v996, %v1000
    %v1003 = vsel %vm132, %v1001, -1e+30
    %v1004 = vsel %vm133, %v1002, -1e+30
    %v1005 = vsel %vm141, %v1003, -inf
    %1006 = vmax.xlane.f32.xlu0 %v1005
    %v1007 = vpop.xlane.xlu0 %1006
    %v1008 = vsel %vm141, %v1004, -inf
    %1009 = vmax.xlane.f32.xlu0 %v1008
    %v1010 = vpop.xlane.xlu0 %1009
    %v1011 = vsub.f32 %v1003, %v1007
    %v1012 = vsub.f32 %v1004, %v1010
    %v1013 = vmul.f32 %v1011, 1.442695
    %v1014 = vpow.pop %v1013
    %v1015 = vmul.f32 %v1012, 1.442695
    %v1016 = vpow.pop %v1015
    %v1017 = vsel %vm132, %v1014, 0.0
    %v1018 = vsel %vm133, %v1016, 0.0
    %v1019 = vsel %vm141, %v1017, 0.0
    %1020 = vadd.xlane.f32.xlu0 %v1019
    %v1021 = vpop.xlane.xlu0 %1020
    %v1022 = vsel %vm141, %v1018, 0.0
    %1023 = vadd.xlane.f32.xlu0 %v1022
    %v1024 = vpop.xlane.xlu0 %1023
    %v1025 = vrcp.pop %v1021
    %v1026 = vrcp.pop %v1024
    %v1027 = vmul.f32 %v1017, %v1025
    %v1028 = vmul.f32 %v1018, %v1026
    %v1032 = vsel %vm141, %v1027, 0
    %v1035 = vsel %vm141, %v1028, 0
    %1037 = vmatprep.subr.mxu0 0.0
    %1038 = vmatpush1.msra.mxu0 0.0
    %1039 = vmatprep.subr.mxu0 0.0
    %1040 = vmatpush1.msra.mxu0 0.0
    %1041 = vmatprep.subr.mxu0 0.0
    %1042 = vmatpush1.msra.mxu0 0.0
    %1043 = vmatprep.subr.mxu0 0.0
    %1044 = vmatpush1.msra.mxu0 0.0
    %1045 = vmatprep.subr.mxu0 0.0
    %1046 = vmatpush1.msra.mxu0 0.0
    %1047 = vmatprep.subr.mxu0 0.0
    %1048 = vmatpush1.msra.mxu0 0.0
    %1049 = vmatprep.subr.mxu0 0.0
    %1050 = vmatpush1.msra.mxu0 0.0
    %1051 = vmatprep.subr.mxu0 0.0
    %1052 = vmatpush1.msra.mxu0 0.0
    %1053 = vmatprep.subr.mxu0 0.0
    %1054 = vmatpush1.msra.mxu0 0.0
    %1055 = vmatprep.subr.mxu0 0.0
    %1056 = vmatpush1.msra.mxu0 0.0
    %1057 = vmatprep.subr.mxu0 0.0
    %1058 = vmatpush1.msra.mxu0 0.0
    %1059 = vmatprep.subr.mxu0 0.0
    %1060 = vmatpush1.msra.mxu0 0.0
    %1061 = vmatprep.subr.mxu0 0.0
    %1062 = vmatpush1.msra.mxu0 0.0
    %1063 = vmatprep.subr.mxu0 0.0
    %1064 = vmatpush1.msra.mxu0 0.0
    %1065 = vmatprep.subr.mxu0 0.0
    %1066 = vmatpush1.msra.mxu0 %v914
    %1067 = vmatprep.subr.mxu0 0.0
    %1068 = vmatpush1.msra.mxu0 %v912
    %1069 = vmatprep.subr.mxu0 0.0
    %1070 = vmatpush2.msra.mxu0 0.0
    %1071 = vmatprep.subr.mxu0 0.0
    %1072 = vmatpush2.msra.mxu0 0.0
    %1073 = vmatprep.subr.mxu0 0.0
    %1074 = vmatpush2.msra.mxu0 0.0
    %1075 = vmatprep.subr.mxu0 0.0
    %1076 = vmatpush2.msra.mxu0 0.0
    %1077 = vmatprep.subr.mxu0 0.0
    %1078 = vmatpush2.msra.mxu0 0.0
    %1079 = vmatprep.subr.mxu0 0.0
    %1080 = vmatpush2.msra.mxu0 0.0
    %1081 = vmatprep.subr.mxu0 0.0
    %1082 = vmatpush2.msra.mxu0 0.0
    %1083 = vmatprep.subr.mxu0 0.0
    %1084 = vmatpush2.msra.mxu0 0.0
    %1085 = vmatprep.subr.mxu0 0.0
    %1086 = vmatpush2.msra.mxu0 0.0
    %1087 = vmatprep.subr.mxu0 0.0
    %1088 = vmatpush2.msra.mxu0 0.0
    %1089 = vmatprep.subr.mxu0 0.0
    %1090 = vmatpush2.msra.mxu0 0.0
    %1091 = vmatprep.subr.mxu0 0.0
    %1092 = vmatpush2.msra.mxu0 0.0
    %1093 = vmatprep.subr.mxu0 0.0
    %1094 = vmatpush2.msra.mxu0 0.0
    %1095 = vmatprep.subr.mxu0 0.0
    %1096 = vmatpush2.msra.mxu0 0.0
    %1097 = vmatprep.subr.mxu0 0.0
    %1098 = vmatpush2.msra.mxu0 0.0
    %1099 = vmatprep.subr.mxu0 0.0
    %1100 = vmatpush2.msra.mxu0 0.0
    %1101 = vmatprep.mubr.f32.mxu0 0.0
    %1102 = vmatmul.mubr.f32.gmra.mxu0 %v1032
    %v1103 = vpop.f32.mrf.mxu0
    %v1104 = vadd.f32 0.0, %v1103
    %v1105 = vpop.f32.mrf.mxu0
    %1106 = vmatprep.mubr.f32.mxu0 0.0
    %1107 = vmatmul.mubr.f32.gmra.mxu0 %v1035
    %v1108 = vpop.f32.mrf.mxu0
    %v1109 = vadd.f32 0.0, %v1108
    %v1110 = vpop.f32.mrf.mxu0
    %1111 = vdwg.mxu0
    %1114 = vrot.lane.b32.xlu0 %v652, 32
    %v1115 = vpop.permute.xlu0 %1114
    %1116 = vrot.lane.b32.xlu0 %v657, 32
    %v1117 = vpop.permute.xlu0 %1116
    %1122 = vrot.lane.b32.xlu0 %v878, 64
    %v1123 = vpop.permute.xlu0 %1122
    %1124 = vrot.lane.b32.xlu0 %v883, 64
    %v1125 = vpop.permute.xlu0 %1124
    %1130 = vrot.lane.b32.xlu0 %v1104, 96
    %v1131 = vpop.permute.xlu0 %1130
    %1132 = vrot.lane.b32.xlu0 %v1109, 96
    %v1133 = vpop.permute.xlu0 %1132
    %v1136 = vsel %vm229, %v426, %v1115
    %v1137 = vsel %vm229, %v431, %v1117
    %vm1138 = vcmask 523264
    %v1139 = vsel %vm1138, %v1136, %v1123
    %v1140 = vsel %vm1138, %v1137, %v1125
    %vm1141 = vcmask 785408
    %v1142 = vsel %vm1141, %v1139, %v1131
    %v1143 = vsel %vm1141, %v1140, %v1133
    %v1145 = vlaneseq
    %v1146 = vshrl.u32 %v1145, 7
    %v1147 = vsub.s32 0, %v1146
    %v1148 = vrot.slane %v140, %v1147
    %v1150 = vadd.f32 %v1142, %v1148
    %v1151 = vadd.f32 %v1143, %v1148
    %vm1152 = vcmp.gt.f32.partialorder %v1150, 0.0
    %vm1153 = vcmp.gt.f32.partialorder %v1151, 0.0
    %v1154 = vmin.f32 %v1150, 0.0
    %v1155 = vmin.f32 %v1151, 0.0
    %v1156 = vmul.f32 %v1154, 1.442695
    %v1157 = vpow.pop %v1156
    %v1158 = vmul.f32 %v1155, 1.442695
    %v1159 = vpow.pop %v1158
    %v1160 = vsub.f32 %v1157, 1.0
    %v1161 = vsub.f32 %v1159, 1.0
    %v1162 = vsel %vm1152, %v1150, %v1160
    %v1163 = vsel %vm1153, %v1151, %v1161
    %v1164 = vld [vmem:[%s6] sm:$0xff]
    %v1165 = vld [vmem:[%s6 + $0x8] sm:$0xff]
    %v1166 = vld [vmem:[%s6 + $0x10] sm:$0xff]
    %v1167 = vld [vmem:[%s6 + $0x18] sm:$0xff]
    %v1168 = vld [vmem:[%s6 + $0x20] sm:$0xff]
    %v1169 = vld [vmem:[%s6 + $0x28] sm:$0xff]
    %v1170 = vld [vmem:[%s6 + $0x30] sm:$0xff]
    %v1171 = vld [vmem:[%s6 + $0x38] sm:$0xff]
    %v1172 = vld [vmem:[%s6 + $0x40] sm:$0xff]
    %v1173 = vld [vmem:[%s6 + $0x48] sm:$0xff]
    %v1174 = vld [vmem:[%s6 + $0x50] sm:$0xff]
    %v1175 = vld [vmem:[%s6 + $0x58] sm:$0xff]
    %v1176 = vld [vmem:[%s6 + $0x60] sm:$0xff]
    %v1177 = vld [vmem:[%s6 + $0x68] sm:$0xff]
    %v1178 = vld [vmem:[%s6 + $0x70] sm:$0xff]
    %v1179 = vld [vmem:[%s6 + $0x78] sm:$0xff]
    %v1180 = vld [vmem:[%s7] sm:$0xf]
    %v1181 = vld [vmem:[#allocation7] sm:$0xf]
    %v1182 = vld [vmem:[%s9] sm:$0x1]
    %1183 = vmatprep.subr.mxu0 0.0
    %1184 = vmatpush1.msra.mxu0 %v1179
    %1185 = vmatprep.subr.mxu0 0.0
    %1186 = vmatpush1.msra.mxu0 %v1178
    %1187 = vmatprep.subr.mxu0 0.0
    %1188 = vmatpush1.msra.mxu0 %v1177
    %1189 = vmatprep.subr.mxu0 0.0
    %1190 = vmatpush1.msra.mxu0 %v1176
    %1191 = vmatprep.subr.mxu0 0.0
    %1192 = vmatpush1.msra.mxu0 %v1175
    %1193 = vmatprep.subr.mxu0 0.0
    %1194 = vmatpush1.msra.mxu0 %v1174
    %1195 = vmatprep.subr.mxu0 0.0
    %1196 = vmatpush1.msra.mxu0 %v1173
    %1197 = vmatprep.subr.mxu0 0.0
    %1198 = vmatpush1.msra.mxu0 %v1172
    %1199 = vmatprep.subr.mxu0 0.0
    %1200 = vmatpush1.msra.mxu0 %v1171
    %1201 = vmatprep.subr.mxu0 0.0
    %1202 = vmatpush1.msra.mxu0 %v1170
    %1203 = vmatprep.subr.mxu0 0.0
    %1204 = vmatpush1.msra.mxu0 %v1169
    %1205 = vmatprep.subr.mxu0 0.0
    %1206 = vmatpush1.msra.mxu0 %v1168
    %1207 = vmatprep.subr.mxu0 0.0
    %1208 = vmatpush1.msra.mxu0 %v1167
    %1209 = vmatprep.subr.mxu0 0.0
    %1210 = vmatpush1.msra.mxu0 %v1166
    %1211 = vmatprep.subr.mxu0 0.0
    %1212 = vmatpush1.msra.mxu0 %v1165
    %1213 = vmatprep.subr.mxu0 0.0
    %1214 = vmatpush1.msra.mxu0 %v1164
    %1215 = vmatprep.subr.mxu0 0.0
    %1216 = vmatpush2.msra.mxu0 0.0
    %1217 = vmatprep.subr.mxu0 0.0
    %1218 = vmatpush2.msra.mxu0 0.0
    %1219 = vmatprep.subr.mxu0 0.0
    %1220 = vmatpush2.msra.mxu0 0.0
    %1221 = vmatprep.subr.mxu0 0.0
    %1222 = vmatpush2.msra.mxu0 0.0
    %1223 = vmatprep.subr.mxu0 0.0
    %1224 = vmatpush2.msra.mxu0 0.0
    %1225 = vmatprep.subr.mxu0 0.0
    %1226 = vmatpush2.msra.mxu0 0.0
    %1227 = vmatprep.subr.mxu0 0.0
    %1228 = vmatpush2.msra.mxu0 0.0
    %1229 = vmatprep.subr.mxu0 0.0
    %1230 = vmatpush2.msra.mxu0 0.0
    %1231 = vmatprep.subr.mxu0 0.0
    %1232 = vmatpush2.msra.mxu0 0.0
    %1233 = vmatprep.subr.mxu0 0.0
    %1234 = vmatpush2.msra.mxu0 0.0
    %1235 = vmatprep.subr.mxu0 0.0
    %1236 = vmatpush2.msra.mxu0 0.0
    %1237 = vmatprep.subr.mxu0 0.0
    %1238 = vmatpush2.msra.mxu0 0.0
    %1239 = vmatprep.subr.mxu0 0.0
    %1240 = vmatpush2.msra.mxu0 0.0
    %1241 = vmatprep.subr.mxu0 0.0
    %1242 = vmatpush2.msra.mxu0 0.0
    %1243 = vmatprep.subr.mxu0 0.0
    %1244 = vmatpush2.msra.mxu0 0.0
    %1245 = vmatprep.subr.mxu0 0.0
    %1246 = vmatpush2.msra.mxu0 0.0
    %1247 = vmatprep.mubr.f32.mxu0 0.0
    %1248 = vmatmul.mubr.f32.gmra.mxu0 %v1162
    %v1249 = vpop.f32.mrf.mxu0
    %v1250 = vadd.f32 0.0, %v1249
    %v1251 = vpop.f32.mrf.mxu0
    %1252 = vmatprep.mubr.f32.mxu0 0.0
    %1253 = vmatmul.mubr.f32.gmra.mxu0 %v1163
    %v1254 = vpop.f32.mrf.mxu0
    %v1255 = vadd.f32 0.0, %v1254
    %v1256 = vpop.f32.mrf.mxu0
    %1257 = vdwg.mxu0
    %v1258 = vlaneseq
    %v1259 = vshrl.u32 %v1258, 7
    %v1260 = vsub.s32 0, %v1259
    %v1261 = vrot.slane %v1181, %v1260
    %v1262 = vmul.f32 %v1250, %v1261
    %v1263 = vmul.f32 %v1255, %v1261
    %v1264 = vsel %vm229, %v1262, 0.0
    %1265 = vadd.xlane.f32.xlu0 %v1264
    %v1266 = vpop.xlane.xlu0 %1265
    %v1267 = vsel %vm229, %v1263, 0.0
    %1268 = vadd.xlane.f32.xlu0 %v1267
    %v1269 = vpop.xlane.xlu0 %1268
    %v1271 = vsel %vm229, %v1180, 0
    %v1274 = vsel %vm229, %v1250, 0
    %v1277 = vsel %vm229, %v1255, 0
    %1279 = vmatprep.subr.mxu0 0.0
    %1280 = vmatpush1.xpose.msra.mxu0 0.0
    %1281 = vmatprep.subr.mxu0 0.0
    %1282 = vmatpush1.xpose.msra.mxu0 0.0
    %1283 = vmatprep.subr.mxu0 0.0
    %1284 = vmatpush1.xpose.msra.mxu0 0.0
    %1285 = vmatprep.subr.mxu0 0.0
    %1286 = vmatpush1.xpose.msra.mxu0 0.0
    %1287 = vmatprep.subr.mxu0 0.0
    %1288 = vmatpush1.xpose.msra.mxu0 0.0
    %1289 = vmatprep.subr.mxu0 0.0
    %1290 = vmatpush1.xpose.msra.mxu0 0.0
    %1291 = vmatprep.subr.mxu0 0.0
    %1292 = vmatpush1.xpose.msra.mxu0 0.0
    %1293 = vmatprep.subr.mxu0 0.0
    %1294 = vmatpush1.xpose.msra.mxu0 0.0
    %1295 = vmatprep.subr.mxu0 0.0
    %1296 = vmatpush1.xpose.msra.mxu0 0.0
    %1297 = vmatprep.subr.mxu0 0.0
    %1298 = vmatpush1.xpose.msra.mxu0 0.0
    %1299 = vmatprep.subr.mxu0 0.0
    %1300 = vmatpush1.xpose.msra.mxu0 0.0
    %1301 = vmatprep.subr.mxu0 0.0
    %1302 = vmatpush1.xpose.msra.mxu0 0.0
    %1303 = vmatprep.subr.mxu0 0.0
    %1304 = vmatpush1.xpose.msra.mxu0 0.0
    %1305 = vmatprep.subr.mxu0 0.0
    %1306 = vmatpush1.xpose.msra.mxu0 0.0
    %1307 = vmatprep.subr.mxu0 0.0
    %1308 = vmatpush1.xpose.msra.mxu0 %v1277
    %1309 = vmatprep.subr.mxu0 0.0
    %1310 = vmatpush1.xpose.msra.mxu0 %v1274
    %1311 = vmatprep.subr.mxu0 0.0
    %1312 = vmatpush2.xpose.msra.mxu0 0.0
    %1313 = vmatprep.subr.mxu0 0.0
    %1314 = vmatpush2.xpose.msra.mxu0 0.0
    %1315 = vmatprep.subr.mxu0 0.0
    %1316 = vmatpush2.xpose.msra.mxu0 0.0
    %1317 = vmatprep.subr.mxu0 0.0
    %1318 = vmatpush2.xpose.msra.mxu0 0.0
    %1319 = vmatprep.subr.mxu0 0.0
    %1320 = vmatpush2.xpose.msra.mxu0 0.0
    %1321 = vmatprep.subr.mxu0 0.0
    %1322 = vmatpush2.xpose.msra.mxu0 0.0
    %1323 = vmatprep.subr.mxu0 0.0
    %1324 = vmatpush2.xpose.msra.mxu0 0.0
    %1325 = vmatprep.subr.mxu0 0.0
    %1326 = vmatpush2.xpose.msra.mxu0 0.0
    %1327 = vmatprep.subr.mxu0 0.0
    %1328 = vmatpush2.xpose.msra.mxu0 0.0
    %1329 = vmatprep.subr.mxu0 0.0
    %1330 = vmatpush2.xpose.msra.mxu0 0.0
    %1331 = vmatprep.subr.mxu0 0.0
    %1332 = vmatpush2.xpose.msra.mxu0 0.0
    %1333 = vmatprep.subr.mxu0 0.0
    %1334 = vmatpush2.xpose.msra.mxu0 0.0
    %1335 = vmatprep.subr.mxu0 0.0
    %1336 = vmatpush2.xpose.msra.mxu0 0.0
    %1337 = vmatprep.subr.mxu0 0.0
    %1338 = vmatpush2.xpose.msra.mxu0 0.0
    %1339 = vmatprep.subr.mxu0 0.0
    %1340 = vmatpush2.xpose.msra.mxu0 0.0
    %1341 = vmatprep.subr.mxu0 0.0
    %1342 = vmatpush2.xpose.msra.mxu0 0.0
    %1343 = vmatprep.mubr.f32.mxu0 0.0
    %1344 = vmatmul.mubr.f32.gmra.mxu0 %v1271
    %v1345 = vpop.f32.mrf.mxu0
    %v1346 = vadd.f32 0.0, %v1345
    %v1347 = vpop.f32.mrf.mxu0
    %1348 = vdwg.mxu0
    %v1349 = vlaneseq
    %v1350 = vshrl.u32 %v1349, 7
    %v1351 = vsub.s32 0, %v1350
    %v1352 = vrot.slane %v1346, %v1351
    %v1353 = vadd.f32 %v1266, %v1352
    %v1354 = vadd.f32 %v1269, %v1352
    %vm1355 = vcmp.gt.f32.partialorder %v1353, 0.0
    %vm1356 = vcmp.gt.f32.partialorder %v1354, 0.0
    %v1357 = vmul.f32 %v1353, 0.2
    %v1358 = vmul.f32 %v1354, 0.2
    %v1359 = vsel %vm1355, %v1353, %v1357
    %v1360 = vsel %vm1356, %v1354, %v1358
    %v1361 = vsel %vm132, %v1359, -1e+30
    %v1362 = vsel %vm133, %v1360, -1e+30
    %v1363 = vsel %vm141, %v1361, -inf
    %1364 = vmax.xlane.f32.xlu0 %v1363
    %v1365 = vpop.xlane.xlu0 %1364
    %v1366 = vsel %vm141, %v1362, -inf
    %1367 = vmax.xlane.f32.xlu0 %v1366
    %v1368 = vpop.xlane.xlu0 %1367
    %v1369 = vsub.f32 %v1361, %v1365
    %v1370 = vsub.f32 %v1362, %v1368
    %v1371 = vmul.f32 %v1369, 1.442695
    %v1372 = vpow.pop %v1371
    %v1373 = vmul.f32 %v1370, 1.442695
    %v1374 = vpow.pop %v1373
    %v1375 = vsel %vm132, %v1372, 0.0
    %v1376 = vsel %vm133, %v1374, 0.0
    %v1377 = vsel %vm141, %v1375, 0.0
    %1378 = vadd.xlane.f32.xlu0 %v1377
    %v1379 = vpop.xlane.xlu0 %1378
    %v1380 = vsel %vm141, %v1376, 0.0
    %1381 = vadd.xlane.f32.xlu0 %v1380
    %v1382 = vpop.xlane.xlu0 %1381
    %v1383 = vrcp.pop %v1379
    %v1384 = vrcp.pop %v1382
    %v1385 = vmul.f32 %v1375, %v1383
    %v1386 = vmul.f32 %v1376, %v1384
    %v1388 = vsel %vm141, %v1385, 0
    %v1391 = vsel %vm141, %v1386, 0
    %1393 = vmatprep.subr.mxu0 0.0
    %1394 = vmatpush1.msra.mxu0 0.0
    %1395 = vmatprep.subr.mxu0 0.0
    %1396 = vmatpush1.msra.mxu0 0.0
    %1397 = vmatprep.subr.mxu0 0.0
    %1398 = vmatpush1.msra.mxu0 0.0
    %1399 = vmatprep.subr.mxu0 0.0
    %1400 = vmatpush1.msra.mxu0 0.0
    %1401 = vmatprep.subr.mxu0 0.0
    %1402 = vmatpush1.msra.mxu0 0.0
    %1403 = vmatprep.subr.mxu0 0.0
    %1404 = vmatpush1.msra.mxu0 0.0
    %1405 = vmatprep.subr.mxu0 0.0
    %1406 = vmatpush1.msra.mxu0 0.0
    %1407 = vmatprep.subr.mxu0 0.0
    %1408 = vmatpush1.msra.mxu0 0.0
    %1409 = vmatprep.subr.mxu0 0.0
    %1410 = vmatpush1.msra.mxu0 0.0
    %1411 = vmatprep.subr.mxu0 0.0
    %1412 = vmatpush1.msra.mxu0 0.0
    %1413 = vmatprep.subr.mxu0 0.0
    %1414 = vmatpush1.msra.mxu0 0.0
    %1415 = vmatprep.subr.mxu0 0.0
    %1416 = vmatpush1.msra.mxu0 0.0
    %1417 = vmatprep.subr.mxu0 0.0
    %1418 = vmatpush1.msra.mxu0 0.0
    %1419 = vmatprep.subr.mxu0 0.0
    %1420 = vmatpush1.msra.mxu0 0.0
    %1421 = vmatprep.subr.mxu0 0.0
    %1422 = vmatpush1.msra.mxu0 %v1255
    %1423 = vmatprep.subr.mxu0 0.0
    %1424 = vmatpush1.msra.mxu0 %v1250
    %1425 = vmatprep.subr.mxu0 0.0
    %1426 = vmatpush2.msra.mxu0 0.0
    %1427 = vmatprep.subr.mxu0 0.0
    %1428 = vmatpush2.msra.mxu0 0.0
    %1429 = vmatprep.subr.mxu0 0.0
    %1430 = vmatpush2.msra.mxu0 0.0
    %1431 = vmatprep.subr.mxu0 0.0
    %1432 = vmatpush2.msra.mxu0 0.0
    %1433 = vmatprep.subr.mxu0 0.0
    %1434 = vmatpush2.msra.mxu0 0.0
    %1435 = vmatprep.subr.mxu0 0.0
    %1436 = vmatpush2.msra.mxu0 0.0
    %1437 = vmatprep.subr.mxu0 0.0
    %1438 = vmatpush2.msra.mxu0 0.0
    %1439 = vmatprep.subr.mxu0 0.0
    %1440 = vmatpush2.msra.mxu0 0.0
    %1441 = vmatprep.subr.mxu0 0.0
    %1442 = vmatpush2.msra.mxu0 0.0
    %1443 = vmatprep.subr.mxu0 0.0
    %1444 = vmatpush2.msra.mxu0 0.0
    %1445 = vmatprep.subr.mxu0 0.0
    %1446 = vmatpush2.msra.mxu0 0.0
    %1447 = vmatprep.subr.mxu0 0.0
    %1448 = vmatpush2.msra.mxu0 0.0
    %1449 = vmatprep.subr.mxu0 0.0
    %1450 = vmatpush2.msra.mxu0 0.0
    %1451 = vmatprep.subr.mxu0 0.0
    %1452 = vmatpush2.msra.mxu0 0.0
    %1453 = vmatprep.subr.mxu0 0.0
    %1454 = vmatpush2.msra.mxu0 0.0
    %1455 = vmatprep.subr.mxu0 0.0
    %1456 = vmatpush2.msra.mxu0 0.0
    %1457 = vmatprep.mubr.f32.mxu0 0.0
    %1458 = vmatmul.mubr.f32.gmra.mxu0 %v1388
    %v1459 = vpop.f32.mrf.mxu0
    %v1460 = vadd.f32 0.0, %v1459
    %v1461 = vpop.f32.mrf.mxu0
    %1462 = vmatprep.mubr.f32.mxu0 0.0
    %1463 = vmatmul.mubr.f32.gmra.mxu0 %v1391
    %v1464 = vpop.f32.mrf.mxu0
    %v1465 = vadd.f32 0.0, %v1464
    %v1466 = vpop.f32.mrf.mxu0
    %1467 = vdwg.mxu0
    %v1468 = vlaneseq
    %v1469 = vshrl.u32 %v1468, 7
    %v1470 = vsub.s32 1, %v1469
    %v1471 = vrot.slane %v1181, %v1470
    %1473 = vrot.lane.b32.xlu0 %v1471, 32
    %v1474 = vpop.permute.xlu0 %1473
    %v1476 = vmul.f32 %v1250, %v1474
    %v1477 = vmul.f32 %v1255, %v1474
    %1480 = vrot.lane.b32.xlu0 %v1476, 96
    %v1481 = vpop.permute.xlu0 %1480
    %1482 = vrot.lane.b32.xlu0 %v1477, 96
    %v1483 = vpop.permute.xlu0 %1482
    %v1486 = vsel %vm229, %v1481, 0.0
    %1487 = vadd.xlane.f32.xlu0 %v1486
    %v1488 = vpop.xlane.xlu0 %1487
    %v1489 = vsel %vm229, %v1483, 0.0
    %1490 = vadd.xlane.f32.xlu0 %v1489
    %v1491 = vpop.xlane.xlu0 %1490
    %v1492 = vrot.slane %v1180, 1
    %1493 = vrot.lane.b32.xlu0 %v1250, 96
    %v1494 = vpop.permute.xlu0 %1493
    %1495 = vrot.lane.b32.xlu0 %v1255, 96
    %v1496 = vpop.permute.xlu0 %1495
    %v1497 = vsel %vm229, %v1492, 0
    %v1499 = vsel %vm229, %v1494, 0
    %v1501 = vsel %vm229, %v1496, 0
    %1503 = vmatprep.subr.mxu0 0.0
    %1504 = vmatpush1.xpose.msra.mxu0 0.0
    %1505 = vmatprep.subr.mxu0 0.0
    %1506 = vmatpush1.xpose.msra.mxu0 0.0
    %1507 = vmatprep.subr.mxu0 0.0
    %1508 = vmatpush1.xpose.msra.mxu0 0.0
    %1509 = vmatprep.subr.mxu0 0.0
    %1510 = vmatpush1.xpose.msra.mxu0 0.0
    %1511 = vmatprep.subr.mxu0 0.0
    %1512 = vmatpush1.xpose.msra.mxu0 0.0
    %1513 = vmatprep.subr.mxu0 0.0
    %1514 = vmatpush1.xpose.msra.mxu0 0.0
    %1515 = vmatprep.subr.mxu0 0.0
    %1516 = vmatpush1.xpose.msra.mxu0 0.0
    %1517 = vmatprep.subr.mxu0 0.0
    %1518 = vmatpush1.xpose.msra.mxu0 0.0
    %1519 = vmatprep.subr.mxu0 0.0
    %1520 = vmatpush1.xpose.msra.mxu0 0.0
    %1521 = vmatprep.subr.mxu0 0.0
    %1522 = vmatpush1.xpose.msra.mxu0 0.0
    %1523 = vmatprep.subr.mxu0 0.0
    %1524 = vmatpush1.xpose.msra.mxu0 0.0
    %1525 = vmatprep.subr.mxu0 0.0
    %1526 = vmatpush1.xpose.msra.mxu0 0.0
    %1527 = vmatprep.subr.mxu0 0.0
    %1528 = vmatpush1.xpose.msra.mxu0 0.0
    %1529 = vmatprep.subr.mxu0 0.0
    %1530 = vmatpush1.xpose.msra.mxu0 0.0
    %1531 = vmatprep.subr.mxu0 0.0
    %1532 = vmatpush1.xpose.msra.mxu0 %v1501
    %1533 = vmatprep.subr.mxu0 0.0
    %1534 = vmatpush1.xpose.msra.mxu0 %v1499
    %1535 = vmatprep.subr.mxu0 0.0
    %1536 = vmatpush2.xpose.msra.mxu0 0.0
    %1537 = vmatprep.subr.mxu0 0.0
    %1538 = vmatpush2.xpose.msra.mxu0 0.0
    %1539 = vmatprep.subr.mxu0 0.0
    %1540 = vmatpush2.xpose.msra.mxu0 0.0
    %1541 = vmatprep.subr.mxu0 0.0
    %1542 = vmatpush2.xpose.msra.mxu0 0.0
    %1543 = vmatprep.subr.mxu0 0.0
    %1544 = vmatpush2.xpose.msra.mxu0 0.0
    %1545 = vmatprep.subr.mxu0 0.0
    %1546 = vmatpush2.xpose.msra.mxu0 0.0
    %1547 = vmatprep.subr.mxu0 0.0
    %1548 = vmatpush2.xpose.msra.mxu0 0.0
    %1549 = vmatprep.subr.mxu0 0.0
    %1550 = vmatpush2.xpose.msra.mxu0 0.0
    %1551 = vmatprep.subr.mxu0 0.0
    %1552 = vmatpush2.xpose.msra.mxu0 0.0
    %1553 = vmatprep.subr.mxu0 0.0
    %1554 = vmatpush2.xpose.msra.mxu0 0.0
    %1555 = vmatprep.subr.mxu0 0.0
    %1556 = vmatpush2.xpose.msra.mxu0 0.0
    %1557 = vmatprep.subr.mxu0 0.0
    %1558 = vmatpush2.xpose.msra.mxu0 0.0
    %1559 = vmatprep.subr.mxu0 0.0
    %1560 = vmatpush2.xpose.msra.mxu0 0.0
    %1561 = vmatprep.subr.mxu0 0.0
    %1562 = vmatpush2.xpose.msra.mxu0 0.0
    %1563 = vmatprep.subr.mxu0 0.0
    %1564 = vmatpush2.xpose.msra.mxu0 0.0
    %1565 = vmatprep.subr.mxu0 0.0
    %1566 = vmatpush2.xpose.msra.mxu0 0.0
    %1567 = vmatprep.mubr.f32.mxu0 0.0
    %1568 = vmatmul.mubr.f32.gmra.mxu0 %v1497
    %v1569 = vpop.f32.mrf.mxu0
    %v1570 = vadd.f32 0.0, %v1569
    %v1571 = vpop.f32.mrf.mxu0
    %1572 = vdwg.mxu0
    %v1573 = vlaneseq
    %v1574 = vshrl.u32 %v1573, 7
    %v1575 = vsub.s32 0, %v1574
    %v1576 = vrot.slane %v1570, %v1575
    %v1577 = vadd.f32 %v1488, %v1576
    %v1578 = vadd.f32 %v1491, %v1576
    %vm1579 = vcmp.gt.f32.partialorder %v1577, 0.0
    %vm1580 = vcmp.gt.f32.partialorder %v1578, 0.0
    %v1581 = vmul.f32 %v1577, 0.2
    %v1582 = vmul.f32 %v1578, 0.2
    %v1583 = vsel %vm1579, %v1577, %v1581
    %v1584 = vsel %vm1580, %v1578, %v1582
    %v1585 = vsel %vm132, %v1583, -1e+30
    %v1586 = vsel %vm133, %v1584, -1e+30
    %v1587 = vsel %vm141, %v1585, -inf
    %1588 = vmax.xlane.f32.xlu0 %v1587
    %v1589 = vpop.xlane.xlu0 %1588
    %v1590 = vsel %vm141, %v1586, -inf
    %1591 = vmax.xlane.f32.xlu0 %v1590
    %v1592 = vpop.xlane.xlu0 %1591
    %v1593 = vsub.f32 %v1585, %v1589
    %v1594 = vsub.f32 %v1586, %v1592
    %v1595 = vmul.f32 %v1593, 1.442695
    %v1596 = vpow.pop %v1595
    %v1597 = vmul.f32 %v1594, 1.442695
    %v1598 = vpow.pop %v1597
    %v1599 = vsel %vm132, %v1596, 0.0
    %v1600 = vsel %vm133, %v1598, 0.0
    %v1601 = vsel %vm141, %v1599, 0.0
    %1602 = vadd.xlane.f32.xlu0 %v1601
    %v1603 = vpop.xlane.xlu0 %1602
    %v1604 = vsel %vm141, %v1600, 0.0
    %1605 = vadd.xlane.f32.xlu0 %v1604
    %v1606 = vpop.xlane.xlu0 %1605
    %v1607 = vrcp.pop %v1603
    %v1608 = vrcp.pop %v1606
    %v1609 = vmul.f32 %v1599, %v1607
    %v1610 = vmul.f32 %v1600, %v1608
    %v1614 = vsel %vm141, %v1609, 0
    %v1617 = vsel %vm141, %v1610, 0
    %1619 = vmatprep.subr.mxu0 0.0
    %1620 = vmatpush1.msra.mxu0 0.0
    %1621 = vmatprep.subr.mxu0 0.0
    %1622 = vmatpush1.msra.mxu0 0.0
    %1623 = vmatprep.subr.mxu0 0.0
    %1624 = vmatpush1.msra.mxu0 0.0
    %1625 = vmatprep.subr.mxu0 0.0
    %1626 = vmatpush1.msra.mxu0 0.0
    %1627 = vmatprep.subr.mxu0 0.0
    %1628 = vmatpush1.msra.mxu0 0.0
    %1629 = vmatprep.subr.mxu0 0.0
    %1630 = vmatpush1.msra.mxu0 0.0
    %1631 = vmatprep.subr.mxu0 0.0
    %1632 = vmatpush1.msra.mxu0 0.0
    %1633 = vmatprep.subr.mxu0 0.0
    %1634 = vmatpush1.msra.mxu0 0.0
    %1635 = vmatprep.subr.mxu0 0.0
    %1636 = vmatpush1.msra.mxu0 0.0
    %1637 = vmatprep.subr.mxu0 0.0
    %1638 = vmatpush1.msra.mxu0 0.0
    %1639 = vmatprep.subr.mxu0 0.0
    %1640 = vmatpush1.msra.mxu0 0.0
    %1641 = vmatprep.subr.mxu0 0.0
    %1642 = vmatpush1.msra.mxu0 0.0
    %1643 = vmatprep.subr.mxu0 0.0
    %1644 = vmatpush1.msra.mxu0 0.0
    %1645 = vmatprep.subr.mxu0 0.0
    %1646 = vmatpush1.msra.mxu0 0.0
    %1647 = vmatprep.subr.mxu0 0.0
    %1648 = vmatpush1.msra.mxu0 %v1496
    %1649 = vmatprep.subr.mxu0 0.0
    %1650 = vmatpush1.msra.mxu0 %v1494
    %1651 = vmatprep.subr.mxu0 0.0
    %1652 = vmatpush2.msra.mxu0 0.0
    %1653 = vmatprep.subr.mxu0 0.0
    %1654 = vmatpush2.msra.mxu0 0.0
    %1655 = vmatprep.subr.mxu0 0.0
    %1656 = vmatpush2.msra.mxu0 0.0
    %1657 = vmatprep.subr.mxu0 0.0
    %1658 = vmatpush2.msra.mxu0 0.0
    %1659 = vmatprep.subr.mxu0 0.0
    %1660 = vmatpush2.msra.mxu0 0.0
    %1661 = vmatprep.subr.mxu0 0.0
    %1662 = vmatpush2.msra.mxu0 0.0
    %1663 = vmatprep.subr.mxu0 0.0
    %1664 = vmatpush2.msra.mxu0 0.0
    %1665 = vmatprep.subr.mxu0 0.0
    %1666 = vmatpush2.msra.mxu0 0.0
    %1667 = vmatprep.subr.mxu0 0.0
    %1668 = vmatpush2.msra.mxu0 0.0
    %1669 = vmatprep.subr.mxu0 0.0
    %1670 = vmatpush2.msra.mxu0 0.0
    %1671 = vmatprep.subr.mxu0 0.0
    %1672 = vmatpush2.msra.mxu0 0.0
    %1673 = vmatprep.subr.mxu0 0.0
    %1674 = vmatpush2.msra.mxu0 0.0
    %1675 = vmatprep.subr.mxu0 0.0
    %1676 = vmatpush2.msra.mxu0 0.0
    %1677 = vmatprep.subr.mxu0 0.0
    %1678 = vmatpush2.msra.mxu0 0.0
    %1679 = vmatprep.subr.mxu0 0.0
    %1680 = vmatpush2.msra.mxu0 0.0
    %1681 = vmatprep.subr.mxu0 0.0
    %1682 = vmatpush2.msra.mxu0 0.0
    %1683 = vmatprep.mubr.f32.mxu0 0.0
    %1684 = vmatmul.mubr.f32.gmra.mxu0 %v1614
    %v1685 = vpop.f32.mrf.mxu0
    %v1686 = vadd.f32 0.0, %v1685
    %v1687 = vpop.f32.mrf.mxu0
    %1688 = vmatprep.mubr.f32.mxu0 0.0
    %1689 = vmatmul.mubr.f32.gmra.mxu0 %v1617
    %v1690 = vpop.f32.mrf.mxu0
    %v1691 = vadd.f32 0.0, %v1690
    %v1692 = vpop.f32.mrf.mxu0
    %1693 = vdwg.mxu0
    %v1694 = vlaneseq
    %v1695 = vshrl.u32 %v1694, 7
    %v1696 = vsub.s32 2, %v1695
    %v1697 = vrot.slane %v1181, %v1696
    %1699 = vrot.lane.b32.xlu0 %v1697, 64
    %v1700 = vpop.permute.xlu0 %1699
    %v1702 = vmul.f32 %v1250, %v1700
    %v1703 = vmul.f32 %v1255, %v1700
    %1706 = vrot.lane.b32.xlu0 %v1702, 64
    %v1707 = vpop.permute.xlu0 %1706
    %1708 = vrot.lane.b32.xlu0 %v1703, 64
    %v1709 = vpop.permute.xlu0 %1708
    %v1712 = vsel %vm229, %v1707, 0.0
    %1713 = vadd.xlane.f32.xlu0 %v1712
    %v1714 = vpop.xlane.xlu0 %1713
    %v1715 = vsel %vm229, %v1709, 0.0
    %1716 = vadd.xlane.f32.xlu0 %v1715
    %v1717 = vpop.xlane.xlu0 %1716
    %v1718 = vrot.slane %v1180, 2
    %1719 = vrot.lane.b32.xlu0 %v1250, 64
    %v1720 = vpop.permute.xlu0 %1719
    %1721 = vrot.lane.b32.xlu0 %v1255, 64
    %v1722 = vpop.permute.xlu0 %1721
    %v1723 = vsel %vm229, %v1718, 0
    %v1725 = vsel %vm229, %v1720, 0
    %v1727 = vsel %vm229, %v1722, 0
    %1729 = vmatprep.subr.mxu0 0.0
    %1730 = vmatpush1.xpose.msra.mxu0 0.0
    %1731 = vmatprep.subr.mxu0 0.0
    %1732 = vmatpush1.xpose.msra.mxu0 0.0
    %1733 = vmatprep.subr.mxu0 0.0
    %1734 = vmatpush1.xpose.msra.mxu0 0.0
    %1735 = vmatprep.subr.mxu0 0.0
    %1736 = vmatpush1.xpose.msra.mxu0 0.0
    %1737 = vmatprep.subr.mxu0 0.0
    %1738 = vmatpush1.xpose.msra.mxu0 0.0
    %1739 = vmatprep.subr.mxu0 0.0
    %1740 = vmatpush1.xpose.msra.mxu0 0.0
    %1741 = vmatprep.subr.mxu0 0.0
    %1742 = vmatpush1.xpose.msra.mxu0 0.0
    %1743 = vmatprep.subr.mxu0 0.0
    %1744 = vmatpush1.xpose.msra.mxu0 0.0
    %1745 = vmatprep.subr.mxu0 0.0
    %1746 = vmatpush1.xpose.msra.mxu0 0.0
    %1747 = vmatprep.subr.mxu0 0.0
    %1748 = vmatpush1.xpose.msra.mxu0 0.0
    %1749 = vmatprep.subr.mxu0 0.0
    %1750 = vmatpush1.xpose.msra.mxu0 0.0
    %1751 = vmatprep.subr.mxu0 0.0
    %1752 = vmatpush1.xpose.msra.mxu0 0.0
    %1753 = vmatprep.subr.mxu0 0.0
    %1754 = vmatpush1.xpose.msra.mxu0 0.0
    %1755 = vmatprep.subr.mxu0 0.0
    %1756 = vmatpush1.xpose.msra.mxu0 0.0
    %1757 = vmatprep.subr.mxu0 0.0
    %1758 = vmatpush1.xpose.msra.mxu0 %v1727
    %1759 = vmatprep.subr.mxu0 0.0
    %1760 = vmatpush1.xpose.msra.mxu0 %v1725
    %1761 = vmatprep.subr.mxu0 0.0
    %1762 = vmatpush2.xpose.msra.mxu0 0.0
    %1763 = vmatprep.subr.mxu0 0.0
    %1764 = vmatpush2.xpose.msra.mxu0 0.0
    %1765 = vmatprep.subr.mxu0 0.0
    %1766 = vmatpush2.xpose.msra.mxu0 0.0
    %1767 = vmatprep.subr.mxu0 0.0
    %1768 = vmatpush2.xpose.msra.mxu0 0.0
    %1769 = vmatprep.subr.mxu0 0.0
    %1770 = vmatpush2.xpose.msra.mxu0 0.0
    %1771 = vmatprep.subr.mxu0 0.0
    %1772 = vmatpush2.xpose.msra.mxu0 0.0
    %1773 = vmatprep.subr.mxu0 0.0
    %1774 = vmatpush2.xpose.msra.mxu0 0.0
    %1775 = vmatprep.subr.mxu0 0.0
    %1776 = vmatpush2.xpose.msra.mxu0 0.0
    %1777 = vmatprep.subr.mxu0 0.0
    %1778 = vmatpush2.xpose.msra.mxu0 0.0
    %1779 = vmatprep.subr.mxu0 0.0
    %1780 = vmatpush2.xpose.msra.mxu0 0.0
    %1781 = vmatprep.subr.mxu0 0.0
    %1782 = vmatpush2.xpose.msra.mxu0 0.0
    %1783 = vmatprep.subr.mxu0 0.0
    %1784 = vmatpush2.xpose.msra.mxu0 0.0
    %1785 = vmatprep.subr.mxu0 0.0
    %1786 = vmatpush2.xpose.msra.mxu0 0.0
    %1787 = vmatprep.subr.mxu0 0.0
    %1788 = vmatpush2.xpose.msra.mxu0 0.0
    %1789 = vmatprep.subr.mxu0 0.0
    %1790 = vmatpush2.xpose.msra.mxu0 0.0
    %1791 = vmatprep.subr.mxu0 0.0
    %1792 = vmatpush2.xpose.msra.mxu0 0.0
    %1793 = vmatprep.mubr.f32.mxu0 0.0
    %1794 = vmatmul.mubr.f32.gmra.mxu0 %v1723
    %v1795 = vpop.f32.mrf.mxu0
    %v1796 = vadd.f32 0.0, %v1795
    %v1797 = vpop.f32.mrf.mxu0
    %1798 = vdwg.mxu0
    %v1799 = vlaneseq
    %v1800 = vshrl.u32 %v1799, 7
    %v1801 = vsub.s32 0, %v1800
    %v1802 = vrot.slane %v1796, %v1801
    %v1803 = vadd.f32 %v1714, %v1802
    %v1804 = vadd.f32 %v1717, %v1802
    %vm1805 = vcmp.gt.f32.partialorder %v1803, 0.0
    %vm1806 = vcmp.gt.f32.partialorder %v1804, 0.0
    %v1807 = vmul.f32 %v1803, 0.2
    %v1808 = vmul.f32 %v1804, 0.2
    %v1809 = vsel %vm1805, %v1803, %v1807
    %v1810 = vsel %vm1806, %v1804, %v1808
    %v1811 = vsel %vm132, %v1809, -1e+30
    %v1812 = vsel %vm133, %v1810, -1e+30
    %v1813 = vsel %vm141, %v1811, -inf
    %1814 = vmax.xlane.f32.xlu0 %v1813
    %v1815 = vpop.xlane.xlu0 %1814
    %v1816 = vsel %vm141, %v1812, -inf
    %1817 = vmax.xlane.f32.xlu0 %v1816
    %v1818 = vpop.xlane.xlu0 %1817
    %v1819 = vsub.f32 %v1811, %v1815
    %v1820 = vsub.f32 %v1812, %v1818
    %v1821 = vmul.f32 %v1819, 1.442695
    %v1822 = vpow.pop %v1821
    %v1823 = vmul.f32 %v1820, 1.442695
    %v1824 = vpow.pop %v1823
    %v1825 = vsel %vm132, %v1822, 0.0
    %v1826 = vsel %vm133, %v1824, 0.0
    %v1827 = vsel %vm141, %v1825, 0.0
    %1828 = vadd.xlane.f32.xlu0 %v1827
    %v1829 = vpop.xlane.xlu0 %1828
    %v1830 = vsel %vm141, %v1826, 0.0
    %1831 = vadd.xlane.f32.xlu0 %v1830
    %v1832 = vpop.xlane.xlu0 %1831
    %v1833 = vrcp.pop %v1829
    %v1834 = vrcp.pop %v1832
    %v1835 = vmul.f32 %v1825, %v1833
    %v1836 = vmul.f32 %v1826, %v1834
    %v1840 = vsel %vm141, %v1835, 0
    %v1843 = vsel %vm141, %v1836, 0
    %1845 = vmatprep.subr.mxu0 0.0
    %1846 = vmatpush1.msra.mxu0 0.0
    %1847 = vmatprep.subr.mxu0 0.0
    %1848 = vmatpush1.msra.mxu0 0.0
    %1849 = vmatprep.subr.mxu0 0.0
    %1850 = vmatpush1.msra.mxu0 0.0
    %1851 = vmatprep.subr.mxu0 0.0
    %1852 = vmatpush1.msra.mxu0 0.0
    %1853 = vmatprep.subr.mxu0 0.0
    %1854 = vmatpush1.msra.mxu0 0.0
    %1855 = vmatprep.subr.mxu0 0.0
    %1856 = vmatpush1.msra.mxu0 0.0
    %1857 = vmatprep.subr.mxu0 0.0
    %1858 = vmatpush1.msra.mxu0 0.0
    %1859 = vmatprep.subr.mxu0 0.0
    %1860 = vmatpush1.msra.mxu0 0.0
    %1861 = vmatprep.subr.mxu0 0.0
    %1862 = vmatpush1.msra.mxu0 0.0
    %1863 = vmatprep.subr.mxu0 0.0
    %1864 = vmatpush1.msra.mxu0 0.0
    %1865 = vmatprep.subr.mxu0 0.0
    %1866 = vmatpush1.msra.mxu0 0.0
    %1867 = vmatprep.subr.mxu0 0.0
    %1868 = vmatpush1.msra.mxu0 0.0
    %1869 = vmatprep.subr.mxu0 0.0
    %1870 = vmatpush1.msra.mxu0 0.0
    %1871 = vmatprep.subr.mxu0 0.0
    %1872 = vmatpush1.msra.mxu0 0.0
    %1873 = vmatprep.subr.mxu0 0.0
    %1874 = vmatpush1.msra.mxu0 %v1722
    %1875 = vmatprep.subr.mxu0 0.0
    %1876 = vmatpush1.msra.mxu0 %v1720
    %1877 = vmatprep.subr.mxu0 0.0
    %1878 = vmatpush2.msra.mxu0 0.0
    %1879 = vmatprep.subr.mxu0 0.0
    %1880 = vmatpush2.msra.mxu0 0.0
    %1881 = vmatprep.subr.mxu0 0.0
    %1882 = vmatpush2.msra.mxu0 0.0
    %1883 = vmatprep.subr.mxu0 0.0
    %1884 = vmatpush2.msra.mxu0 0.0
    %1885 = vmatprep.subr.mxu0 0.0
    %1886 = vmatpush2.msra.mxu0 0.0
    %1887 = vmatprep.subr.mxu0 0.0
    %1888 = vmatpush2.msra.mxu0 0.0
    %1889 = vmatprep.subr.mxu0 0.0
    %1890 = vmatpush2.msra.mxu0 0.0
    %1891 = vmatprep.subr.mxu0 0.0
    %1892 = vmatpush2.msra.mxu0 0.0
    %1893 = vmatprep.subr.mxu0 0.0
    %1894 = vmatpush2.msra.mxu0 0.0
    %1895 = vmatprep.subr.mxu0 0.0
    %1896 = vmatpush2.msra.mxu0 0.0
    %1897 = vmatprep.subr.mxu0 0.0
    %1898 = vmatpush2.msra.mxu0 0.0
    %1899 = vmatprep.subr.mxu0 0.0
    %1900 = vmatpush2.msra.mxu0 0.0
    %1901 = vmatprep.subr.mxu0 0.0
    %1902 = vmatpush2.msra.mxu0 0.0
    %1903 = vmatprep.subr.mxu0 0.0
    %1904 = vmatpush2.msra.mxu0 0.0
    %1905 = vmatprep.subr.mxu0 0.0
    %1906 = vmatpush2.msra.mxu0 0.0
    %1907 = vmatprep.subr.mxu0 0.0
    %1908 = vmatpush2.msra.mxu0 0.0
    %1909 = vmatprep.mubr.f32.mxu0 0.0
    %1910 = vmatmul.mubr.f32.gmra.mxu0 %v1840
    %v1911 = vpop.f32.mrf.mxu0
    %v1912 = vadd.f32 0.0, %v1911
    %v1913 = vpop.f32.mrf.mxu0
    %1914 = vmatprep.mubr.f32.mxu0 0.0
    %1915 = vmatmul.mubr.f32.gmra.mxu0 %v1843
    %v1916 = vpop.f32.mrf.mxu0
    %v1917 = vadd.f32 0.0, %v1916
    %v1918 = vpop.f32.mrf.mxu0
    %1919 = vdwg.mxu0
    %v1920 = vlaneseq
    %v1921 = vshrl.u32 %v1920, 7
    %v1922 = vsub.s32 3, %v1921
    %v1923 = vrot.slane %v1181, %v1922
    %1925 = vrot.lane.b32.xlu0 %v1923, 96
    %v1926 = vpop.permute.xlu0 %1925
    %v1928 = vmul.f32 %v1250, %v1926
    %v1929 = vmul.f32 %v1255, %v1926
    %1932 = vrot.lane.b32.xlu0 %v1928, 32
    %v1933 = vpop.permute.xlu0 %1932
    %1934 = vrot.lane.b32.xlu0 %v1929, 32
    %v1935 = vpop.permute.xlu0 %1934
    %v1938 = vsel %vm229, %v1933, 0.0
    %1939 = vadd.xlane.f32.xlu0 %v1938
    %v1940 = vpop.xlane.xlu0 %1939
    %v1941 = vsel %vm229, %v1935, 0.0
    %1942 = vadd.xlane.f32.xlu0 %v1941
    %v1943 = vpop.xlane.xlu0 %1942
    %v1944 = vrot.slane %v1180, 3
    %1945 = vrot.lane.b32.xlu0 %v1250, 32
    %v1946 = vpop.permute.xlu0 %1945
    %1947 = vrot.lane.b32.xlu0 %v1255, 32
    %v1948 = vpop.permute.xlu0 %1947
    %v1949 = vsel %vm229, %v1944, 0
    %v1951 = vsel %vm229, %v1946, 0
    %v1953 = vsel %vm229, %v1948, 0
    %1955 = vmatprep.subr.mxu0 0.0
    %1956 = vmatpush1.xpose.msra.mxu0 0.0
    %1957 = vmatprep.subr.mxu0 0.0
    %1958 = vmatpush1.xpose.msra.mxu0 0.0
    %1959 = vmatprep.subr.mxu0 0.0
    %1960 = vmatpush1.xpose.msra.mxu0 0.0
    %1961 = vmatprep.subr.mxu0 0.0
    %1962 = vmatpush1.xpose.msra.mxu0 0.0
    %1963 = vmatprep.subr.mxu0 0.0
    %1964 = vmatpush1.xpose.msra.mxu0 0.0
    %1965 = vmatprep.subr.mxu0 0.0
    %1966 = vmatpush1.xpose.msra.mxu0 0.0
    %1967 = vmatprep.subr.mxu0 0.0
    %1968 = vmatpush1.xpose.msra.mxu0 0.0
    %1969 = vmatprep.subr.mxu0 0.0
    %1970 = vmatpush1.xpose.msra.mxu0 0.0
    %1971 = vmatprep.subr.mxu0 0.0
    %1972 = vmatpush1.xpose.msra.mxu0 0.0
    %1973 = vmatprep.subr.mxu0 0.0
    %1974 = vmatpush1.xpose.msra.mxu0 0.0
    %1975 = vmatprep.subr.mxu0 0.0
    %1976 = vmatpush1.xpose.msra.mxu0 0.0
    %1977 = vmatprep.subr.mxu0 0.0
    %1978 = vmatpush1.xpose.msra.mxu0 0.0
    %1979 = vmatprep.subr.mxu0 0.0
    %1980 = vmatpush1.xpose.msra.mxu0 0.0
    %1981 = vmatprep.subr.mxu0 0.0
    %1982 = vmatpush1.xpose.msra.mxu0 0.0
    %1983 = vmatprep.subr.mxu0 0.0
    %1984 = vmatpush1.xpose.msra.mxu0 %v1953
    %1985 = vmatprep.subr.mxu0 0.0
    %1986 = vmatpush1.xpose.msra.mxu0 %v1951
    %1987 = vmatprep.subr.mxu0 0.0
    %1988 = vmatpush2.xpose.msra.mxu0 0.0
    %1989 = vmatprep.subr.mxu0 0.0
    %1990 = vmatpush2.xpose.msra.mxu0 0.0
    %1991 = vmatprep.subr.mxu0 0.0
    %1992 = vmatpush2.xpose.msra.mxu0 0.0
    %1993 = vmatprep.subr.mxu0 0.0
    %1994 = vmatpush2.xpose.msra.mxu0 0.0
    %1995 = vmatprep.subr.mxu0 0.0
    %1996 = vmatpush2.xpose.msra.mxu0 0.0
    %1997 = vmatprep.subr.mxu0 0.0
    %1998 = vmatpush2.xpose.msra.mxu0 0.0
    %1999 = vmatprep.subr.mxu0 0.0
    %2000 = vmatpush2.xpose.msra.mxu0 0.0
    %2001 = vmatprep.subr.mxu0 0.0
    %2002 = vmatpush2.xpose.msra.mxu0 0.0
    %2003 = vmatprep.subr.mxu0 0.0
    %2004 = vmatpush2.xpose.msra.mxu0 0.0
    %2005 = vmatprep.subr.mxu0 0.0
    %2006 = vmatpush2.xpose.msra.mxu0 0.0
    %2007 = vmatprep.subr.mxu0 0.0
    %2008 = vmatpush2.xpose.msra.mxu0 0.0
    %2009 = vmatprep.subr.mxu0 0.0
    %2010 = vmatpush2.xpose.msra.mxu0 0.0
    %2011 = vmatprep.subr.mxu0 0.0
    %2012 = vmatpush2.xpose.msra.mxu0 0.0
    %2013 = vmatprep.subr.mxu0 0.0
    %2014 = vmatpush2.xpose.msra.mxu0 0.0
    %2015 = vmatprep.subr.mxu0 0.0
    %2016 = vmatpush2.xpose.msra.mxu0 0.0
    %2017 = vmatprep.subr.mxu0 0.0
    %2018 = vmatpush2.xpose.msra.mxu0 0.0
    %2019 = vmatprep.mubr.f32.mxu0 0.0
    %2020 = vmatmul.mubr.f32.gmra.mxu0 %v1949
    %v2021 = vpop.f32.mrf.mxu0
    %v2022 = vadd.f32 0.0, %v2021
    %v2023 = vpop.f32.mrf.mxu0
    %2024 = vdwg.mxu0
    %v2025 = vlaneseq
    %v2026 = vshrl.u32 %v2025, 7
    %v2027 = vsub.s32 0, %v2026
    %v2028 = vrot.slane %v2022, %v2027
    %v2029 = vadd.f32 %v1940, %v2028
    %v2030 = vadd.f32 %v1943, %v2028
    %vm2031 = vcmp.gt.f32.partialorder %v2029, 0.0
    %vm2032 = vcmp.gt.f32.partialorder %v2030, 0.0
    %v2033 = vmul.f32 %v2029, 0.2
    %v2034 = vmul.f32 %v2030, 0.2
    %v2035 = vsel %vm2031, %v2029, %v2033
    %v2036 = vsel %vm2032, %v2030, %v2034
    %v2037 = vsel %vm132, %v2035, -1e+30
    %v2038 = vsel %vm133, %v2036, -1e+30
    %v2039 = vsel %vm141, %v2037, -inf
    %2040 = vmax.xlane.f32.xlu0 %v2039
    %v2041 = vpop.xlane.xlu0 %2040
    %v2042 = vsel %vm141, %v2038, -inf
    %2043 = vmax.xlane.f32.xlu0 %v2042
    %v2044 = vpop.xlane.xlu0 %2043
    %v2045 = vsub.f32 %v2037, %v2041
    %v2046 = vsub.f32 %v2038, %v2044
    %v2047 = vmul.f32 %v2045, 1.442695
    %v2048 = vpow.pop %v2047
    %v2049 = vmul.f32 %v2046, 1.442695
    %v2050 = vpow.pop %v2049
    %v2051 = vsel %vm132, %v2048, 0.0
    %v2052 = vsel %vm133, %v2050, 0.0
    %v2053 = vsel %vm141, %v2051, 0.0
    %2054 = vadd.xlane.f32.xlu0 %v2053
    %v2055 = vpop.xlane.xlu0 %2054
    %v2056 = vsel %vm141, %v2052, 0.0
    %2057 = vadd.xlane.f32.xlu0 %v2056
    %v2058 = vpop.xlane.xlu0 %2057
    %v2059 = vrcp.pop %v2055
    %v2060 = vrcp.pop %v2058
    %v2061 = vmul.f32 %v2051, %v2059
    %v2062 = vmul.f32 %v2052, %v2060
    %v2066 = vsel %vm141, %v2061, 0
    %v2069 = vsel %vm141, %v2062, 0
    %2071 = vmatprep.subr.mxu0 0.0
    %2072 = vmatpush1.msra.mxu0 0.0
    %2073 = vmatprep.subr.mxu0 0.0
    %2074 = vmatpush1.msra.mxu0 0.0
    %2075 = vmatprep.subr.mxu0 0.0
    %2076 = vmatpush1.msra.mxu0 0.0
    %2077 = vmatprep.subr.mxu0 0.0
    %2078 = vmatpush1.msra.mxu0 0.0
    %2079 = vmatprep.subr.mxu0 0.0
    %2080 = vmatpush1.msra.mxu0 0.0
    %2081 = vmatprep.subr.mxu0 0.0
    %2082 = vmatpush1.msra.mxu0 0.0
    %2083 = vmatprep.subr.mxu0 0.0
    %2084 = vmatpush1.msra.mxu0 0.0
    %2085 = vmatprep.subr.mxu0 0.0
    %2086 = vmatpush1.msra.mxu0 0.0
    %2087 = vmatprep.subr.mxu0 0.0
    %2088 = vmatpush1.msra.mxu0 0.0
    %2089 = vmatprep.subr.mxu0 0.0
    %2090 = vmatpush1.msra.mxu0 0.0
    %2091 = vmatprep.subr.mxu0 0.0
    %2092 = vmatpush1.msra.mxu0 0.0
    %2093 = vmatprep.subr.mxu0 0.0
    %2094 = vmatpush1.msra.mxu0 0.0
    %2095 = vmatprep.subr.mxu0 0.0
    %2096 = vmatpush1.msra.mxu0 0.0
    %2097 = vmatprep.subr.mxu0 0.0
    %2098 = vmatpush1.msra.mxu0 0.0
    %2099 = vmatprep.subr.mxu0 0.0
    %2100 = vmatpush1.msra.mxu0 %v1948
    %2101 = vmatprep.subr.mxu0 0.0
    %2102 = vmatpush1.msra.mxu0 %v1946
    %2103 = vmatprep.subr.mxu0 0.0
    %2104 = vmatpush2.msra.mxu0 0.0
    %2105 = vmatprep.subr.mxu0 0.0
    %2106 = vmatpush2.msra.mxu0 0.0
    %2107 = vmatprep.subr.mxu0 0.0
    %2108 = vmatpush2.msra.mxu0 0.0
    %2109 = vmatprep.subr.mxu0 0.0
    %2110 = vmatpush2.msra.mxu0 0.0
    %2111 = vmatprep.subr.mxu0 0.0
    %2112 = vmatpush2.msra.mxu0 0.0
    %2113 = vmatprep.subr.mxu0 0.0
    %2114 = vmatpush2.msra.mxu0 0.0
    %2115 = vmatprep.subr.mxu0 0.0
    %2116 = vmatpush2.msra.mxu0 0.0
    %2117 = vmatprep.subr.mxu0 0.0
    %2118 = vmatpush2.msra.mxu0 0.0
    %2119 = vmatprep.subr.mxu0 0.0
    %2120 = vmatpush2.msra.mxu0 0.0
    %2121 = vmatprep.subr.mxu0 0.0
    %2122 = vmatpush2.msra.mxu0 0.0
    %2123 = vmatprep.subr.mxu0 0.0
    %2124 = vmatpush2.msra.mxu0 0.0
    %2125 = vmatprep.subr.mxu0 0.0
    %2126 = vmatpush2.msra.mxu0 0.0
    %2127 = vmatprep.subr.mxu0 0.0
    %2128 = vmatpush2.msra.mxu0 0.0
    %2129 = vmatprep.subr.mxu0 0.0
    %2130 = vmatpush2.msra.mxu0 0.0
    %2131 = vmatprep.subr.mxu0 0.0
    %2132 = vmatpush2.msra.mxu0 0.0
    %2133 = vmatprep.subr.mxu0 0.0
    %2134 = vmatpush2.msra.mxu0 0.0
    %2135 = vmatprep.mubr.f32.mxu0 0.0
    %2136 = vmatmul.mubr.f32.gmra.mxu0 %v2066
    %v2137 = vpop.f32.mrf.mxu0
    %v2138 = vadd.f32 0.0, %v2137
    %v2139 = vpop.f32.mrf.mxu0
    %2140 = vmatprep.mubr.f32.mxu0 0.0
    %2141 = vmatmul.mubr.f32.gmra.mxu0 %v2069
    %v2142 = vpop.f32.mrf.mxu0
    %v2143 = vadd.f32 0.0, %v2142
    %v2144 = vpop.f32.mrf.mxu0
    %2145 = vdwg.mxu0
    %2148 = vrot.lane.b32.xlu0 %v1686, 32
    %v2149 = vpop.permute.xlu0 %2148
    %2150 = vrot.lane.b32.xlu0 %v1691, 32
    %v2151 = vpop.permute.xlu0 %2150
    %2156 = vrot.lane.b32.xlu0 %v1912, 64
    %v2157 = vpop.permute.xlu0 %2156
    %2158 = vrot.lane.b32.xlu0 %v1917, 64
    %v2159 = vpop.permute.xlu0 %2158
    %2164 = vrot.lane.b32.xlu0 %v2138, 96
    %v2165 = vpop.permute.xlu0 %2164
    %2166 = vrot.lane.b32.xlu0 %v2143, 96
    %v2167 = vpop.permute.xlu0 %2166
    %v2170 = vsel %vm229, %v1460, %v2149
    %v2171 = vsel %vm229, %v1465, %v2151
    %v2172 = vsel %vm1138, %v2170, %v2157
    %v2173 = vsel %vm1138, %v2171, %v2159
    %v2174 = vsel %vm1141, %v2172, %v2165
    %v2175 = vsel %vm1141, %v2173, %v2167
    %v2177 = vlaneseq
    %v2178 = vshrl.u32 %v2177, 7
    %v2179 = vsub.s32 0, %v2178
    %v2180 = vrot.slane %v1182, %v2179
    %v2182 = vadd.f32 %v2174, %v2180
    %v2183 = vadd.f32 %v2175, %v2180
    %vm2184 = vcmp.gt.f32.partialorder %v2182, 0.0
    %vm2185 = vcmp.gt.f32.partialorder %v2183, 0.0
    %v2186 = vmin.f32 %v2182, 0.0
    %v2187 = vmin.f32 %v2183, 0.0
    %v2188 = vmul.f32 %v2186, 1.442695
    %v2189 = vpow.pop %v2188
    %v2190 = vmul.f32 %v2187, 1.442695
    %v2191 = vpow.pop %v2190
    %v2192 = vsub.f32 %v2189, 1.0
    %v2193 = vsub.f32 %v2191, 1.0
    %v2194 = vsel %vm2184, %v2182, %v2192
    %v2195 = vsel %vm2185, %v2183, %v2193
    %v2196 = vld [vmem:[#allocation8] sm:$0xff]
    %v2197 = vld [vmem:[#allocation8 + $0x8] sm:$0xff]
    %v2198 = vld [vmem:[#allocation8 + $0x10] sm:$0xff]
    %v2199 = vld [vmem:[#allocation8 + $0x18] sm:$0xff]
    %v2200 = vld [vmem:[#allocation8 + $0x20] sm:$0xff]
    %v2201 = vld [vmem:[#allocation8 + $0x28] sm:$0xff]
    %v2202 = vld [vmem:[#allocation8 + $0x30] sm:$0xff]
    %v2203 = vld [vmem:[#allocation8 + $0x38] sm:$0xff]
    %v2204 = vld [vmem:[#allocation8 + $0x40] sm:$0xff]
    %v2205 = vld [vmem:[#allocation8 + $0x48] sm:$0xff]
    %v2206 = vld [vmem:[#allocation8 + $0x50] sm:$0xff]
    %v2207 = vld [vmem:[#allocation8 + $0x58] sm:$0xff]
    %v2208 = vld [vmem:[#allocation8 + $0x60] sm:$0xff]
    %v2209 = vld [vmem:[#allocation8 + $0x68] sm:$0xff]
    %v2210 = vld [vmem:[#allocation8 + $0x70] sm:$0xff]
    %v2211 = vld [vmem:[#allocation8 + $0x78] sm:$0xff]
    %v2212 = vld [vmem:[#allocation8 + $0x80] sm:$0xff]
    %v2213 = vld [vmem:[#allocation8 + $0x88] sm:$0xff]
    %v2214 = vld [vmem:[#allocation8 + $0x90] sm:$0xff]
    %v2215 = vld [vmem:[#allocation8 + $0x98] sm:$0xff]
    %v2216 = vld [vmem:[#allocation8 + $0xa0] sm:$0xff]
    %v2217 = vld [vmem:[#allocation8 + $0xa8] sm:$0xff]
    %v2218 = vld [vmem:[#allocation8 + $0xb0] sm:$0xff]
    %v2219 = vld [vmem:[#allocation8 + $0xb8] sm:$0xff]
    %v2220 = vld [vmem:[#allocation8 + $0xc0] sm:$0xff]
    %v2221 = vld [vmem:[#allocation8 + $0xc8] sm:$0xff]
    %v2222 = vld [vmem:[#allocation8 + $0xd0] sm:$0xff]
    %v2223 = vld [vmem:[#allocation8 + $0xd8] sm:$0xff]
    %v2224 = vld [vmem:[#allocation8 + $0xe0] sm:$0xff]
    %v2225 = vld [vmem:[#allocation8 + $0xe8] sm:$0xff]
    %v2226 = vld [vmem:[#allocation8 + $0xf0] sm:$0xff]
    %v2227 = vld [vmem:[#allocation8 + $0xf8] sm:$0xff]
    %v2228 = vld [vmem:[#allocation8 + $0x100] sm:$0xff]
    %v2229 = vld [vmem:[#allocation8 + $0x108] sm:$0xff]
    %v2230 = vld [vmem:[#allocation8 + $0x110] sm:$0xff]
    %v2231 = vld [vmem:[#allocation8 + $0x118] sm:$0xff]
    %v2232 = vld [vmem:[#allocation8 + $0x120] sm:$0xff]
    %v2233 = vld [vmem:[#allocation8 + $0x128] sm:$0xff]
    %v2234 = vld [vmem:[#allocation8 + $0x130] sm:$0xff]
    %v2235 = vld [vmem:[#allocation8 + $0x138] sm:$0xff]
    %v2236 = vld [vmem:[#allocation8 + $0x140] sm:$0xff]
    %v2237 = vld [vmem:[#allocation8 + $0x148] sm:$0xff]
    %v2238 = vld [vmem:[#allocation8 + $0x150] sm:$0xff]
    %v2239 = vld [vmem:[#allocation8 + $0x158] sm:$0xff]
    %v2240 = vld [vmem:[#allocation8 + $0x160] sm:$0xff]
    %v2241 = vld [vmem:[#allocation8 + $0x168] sm:$0xff]
    %v2242 = vld [vmem:[#allocation8 + $0x170] sm:$0xff]
    %v2243 = vld [vmem:[#allocation8 + $0x178] sm:$0xff]
    %v2244 = vld [vmem:[%s15] sm:$0x7]
    %v2245 = vld [vmem:[#allocation10] sm:$0xff]
    %v2246 = vld [vmem:[#allocation10 + $0x8] sm:$0xff]
    %v2247 = vld [vmem:[#allocation10 + $0x10] sm:$0xff]
    %v2248 = vld [vmem:[#allocation10 + $0x18] sm:$0xff]
    %v2249 = vld [vmem:[#allocation10 + $0x20] sm:$0xff]
    %v2250 = vld [vmem:[#allocation10 + $0x28] sm:$0xff]
    %v2251 = vld [vmem:[#allocation10 + $0x30] sm:$0xff]
    %v2252 = vld [vmem:[#allocation10 + $0x38] sm:$0xff]
    %v2253 = vld [vmem:[#allocation10 + $0x40] sm:$0xff]
    %v2254 = vld [vmem:[#allocation10 + $0x48] sm:$0xff]
    %v2255 = vld [vmem:[#allocation10 + $0x50] sm:$0xff]
    %v2256 = vld [vmem:[#allocation10 + $0x58] sm:$0xff]
    %v2257 = vld [vmem:[#allocation10 + $0x60] sm:$0xff]
    %v2258 = vld [vmem:[#allocation10 + $0x68] sm:$0xff]
    %v2259 = vld [vmem:[#allocation10 + $0x70] sm:$0xff]
    %v2260 = vld [vmem:[#allocation10 + $0x78] sm:$0xff]
    %v2261 = vld [vmem:[%s17] sm:$0x1]
    %v2262 = vld [vmem:[%s18] sm:$0x1]
    %v2263 = vld [vmem:[%s19] sm:$0x1]
    %v2265 = vlaneseq
    %v2266 = vshrl.u32 %v2265, 7
    %v2267 = vsub.s32 0, %v2266
    %v2268 = vrot.slane %v2244, %v2267
    %v2269 = vlaneseq
    %v2270 = vshrl.u32 %v2269, 7
    %v2271 = vsub.s32 1, %v2270
    %v2272 = vrot.slane %v2244, %v2271
    %v2273 = vlaneseq
    %v2274 = vshrl.u32 %v2273, 7
    %v2275 = vsub.s32 2, %v2274
    %v2276 = vrot.slane %v2244, %v2275
    %2280 = vmatprep.subr.mxu0 %v2242
    %2281 = vmatpush1.msra.mxu0 %v2241
    %2282 = vmatprep.subr.mxu0 %v2239
    %2283 = vmatpush1.msra.mxu0 %v2238
    %2284 = vmatprep.subr.mxu0 %v2236
    %2285 = vmatpush1.msra.mxu0 %v2235
    %2286 = vmatprep.subr.mxu0 %v2233
    %2287 = vmatpush1.msra.mxu0 %v2232
    %2288 = vmatprep.subr.mxu0 %v2230
    %2289 = vmatpush1.msra.mxu0 %v2229
    %2290 = vmatprep.subr.mxu0 %v2227
    %2291 = vmatpush1.msra.mxu0 %v2226
    %2292 = vmatprep.subr.mxu0 %v2224
    %2293 = vmatpush1.msra.mxu0 %v2223
    %2294 = vmatprep.subr.mxu0 %v2221
    %2295 = vmatpush1.msra.mxu0 %v2220
    %2296 = vmatprep.subr.mxu0 %v2218
    %2297 = vmatpush1.msra.mxu0 %v2217
    %2298 = vmatprep.subr.mxu0 %v2215
    %2299 = vmatpush1.msra.mxu0 %v2214
    %2300 = vmatprep.subr.mxu0 %v2212
    %2301 = vmatpush1.msra.mxu0 %v2211
    %2302 = vmatprep.subr.mxu0 %v2209
    %2303 = vmatpush1.msra.mxu0 %v2208
    %2304 = vmatprep.subr.mxu0 %v2206
    %2305 = vmatpush1.msra.mxu0 %v2205
    %2306 = vmatprep.subr.mxu0 %v2203
    %2307 = vmatpush1.msra.mxu0 %v2202
    %2308 = vmatprep.subr.mxu0 %v2200
    %2309 = vmatpush1.msra.mxu0 %v2199
    %2310 = vmatprep.subr.mxu0 %v2197
    %2311 = vmatpush1.msra.mxu0 %v2196
    %2312 = vmatprep.subr.mxu0 0.0
    %2313 = vmatpush2.msra.mxu0 0.0
    %2314 = vmatprep.subr.mxu0 0.0
    %2315 = vmatpush2.msra.mxu0 0.0
    %2316 = vmatprep.subr.mxu0 0.0
    %2317 = vmatpush2.msra.mxu0 0.0
    %2318 = vmatprep.subr.mxu0 0.0
    %2319 = vmatpush2.msra.mxu0 0.0
    %2320 = vmatprep.subr.mxu0 0.0
    %2321 = vmatpush2.msra.mxu0 0.0
    %2322 = vmatprep.subr.mxu0 0.0
    %2323 = vmatpush2.msra.mxu0 0.0
    %2324 = vmatprep.subr.mxu0 0.0
    %2325 = vmatpush2.msra.mxu0 0.0
    %2326 = vmatprep.subr.mxu0 0.0
    %2327 = vmatpush2.msra.mxu0 0.0
    %2328 = vmatprep.subr.mxu0 0.0
    %2329 = vmatpush2.msra.mxu0 0.0
    %2330 = vmatprep.subr.mxu0 0.0
    %2331 = vmatpush2.msra.mxu0 0.0
    %2332 = vmatprep.subr.mxu0 0.0
    %2333 = vmatpush2.msra.mxu0 0.0
    %2334 = vmatprep.subr.mxu0 0.0
    %2335 = vmatpush2.msra.mxu0 0.0
    %2336 = vmatprep.subr.mxu0 0.0
    %2337 = vmatpush2.msra.mxu0 0.0
    %2338 = vmatprep.subr.mxu0 0.0
    %2339 = vmatpush2.msra.mxu0 0.0
    %2340 = vmatprep.subr.mxu0 0.0
    %2341 = vmatpush2.msra.mxu0 0.0
    %2342 = vmatprep.subr.mxu0 0.0
    %2343 = vmatpush2.msra.mxu0 0.0
    %2344 = vmatprep.mubr.f32.mxu0 0.0
    %2345 = vmatmul.mubr.f32.gmra.mxu0 %v2194
    %v2346 = vpop.f32.mrf.mxu0
    %v2347 = vadd.f32 %v2268, %v2346
    %v2348 = vpop.f32.mrf.mxu0
    %v2349 = vadd.f32 %v2272, %v2348
    %2350 = vmatprep.mubr.f32.mxu0 0.0
    %2351 = vmatmul.mubr.f32.gmra.mxu0 %v2195
    %v2352 = vpop.f32.mrf.mxu0
    %v2353 = vadd.f32 %v2268, %v2352
    %v2354 = vpop.f32.mrf.mxu0
    %v2355 = vadd.f32 %v2272, %v2354
    %2356 = vdwg.mxu0
    %2357 = vmatprep.subr.mxu0 0.0
    %2358 = vmatpush1.msra.mxu0 %v2243
    %2359 = vmatprep.subr.mxu0 0.0
    %2360 = vmatpush1.msra.mxu0 %v2240
    %2361 = vmatprep.subr.mxu0 0.0
    %2362 = vmatpush1.msra.mxu0 %v2237
    %2363 = vmatprep.subr.mxu0 0.0
    %2364 = vmatpush1.msra.mxu0 %v2234
    %2365 = vmatprep.subr.mxu0 0.0
    %2366 = vmatpush1.msra.mxu0 %v2231
    %2367 = vmatprep.subr.mxu0 0.0
    %2368 = vmatpush1.msra.mxu0 %v2228
    %2369 = vmatprep.subr.mxu0 0.0
    %2370 = vmatpush1.msra.mxu0 %v2225
    %2371 = vmatprep.subr.mxu0 0.0
    %2372 = vmatpush1.msra.mxu0 %v2222
    %2373 = vmatprep.subr.mxu0 0.0
    %2374 = vmatpush1.msra.mxu0 %v2219
    %2375 = vmatprep.subr.mxu0 0.0
    %2376 = vmatpush1.msra.mxu0 %v2216
    %2377 = vmatprep.subr.mxu0 0.0
    %2378 = vmatpush1.msra.mxu0 %v2213
    %2379 = vmatprep.subr.mxu0 0.0
    %2380 = vmatpush1.msra.mxu0 %v2210
    %2381 = vmatprep.subr.mxu0 0.0
    %2382 = vmatpush1.msra.mxu0 %v2207
    %2383 = vmatprep.subr.mxu0 0.0
    %2384 = vmatpush1.msra.mxu0 %v2204
    %2385 = vmatprep.subr.mxu0 0.0
    %2386 = vmatpush1.msra.mxu0 %v2201
    %2387 = vmatprep.subr.mxu0 0.0
    %2388 = vmatpush1.msra.mxu0 %v2198
    %2389 = vmatprep.subr.mxu0 0.0
    %2390 = vmatpush2.msra.mxu0 0.0
    %2391 = vmatprep.subr.mxu0 0.0
    %2392 = vmatpush2.msra.mxu0 0.0
    %2393 = vmatprep.subr.mxu0 0.0
    %2394 = vmatpush2.msra.mxu0 0.0
    %2395 = vmatprep.subr.mxu0 0.0
    %2396 = vmatpush2.msra.mxu0 0.0
    %2397 = vmatprep.subr.mxu0 0.0
    %2398 = vmatpush2.msra.mxu0 0.0
    %2399 = vmatprep.subr.mxu0 0.0
    %2400 = vmatpush2.msra.mxu0 0.0
    %2401 = vmatprep.subr.mxu0 0.0
    %2402 = vmatpush2.msra.mxu0 0.0
    %2403 = vmatprep.subr.mxu0 0.0
    %2404 = vmatpush2.msra.mxu0 0.0
    %2405 = vmatprep.subr.mxu0 0.0
    %2406 = vmatpush2.msra.mxu0 0.0
    %2407 = vmatprep.subr.mxu0 0.0
    %2408 = vmatpush2.msra.mxu0 0.0
    %2409 = vmatprep.subr.mxu0 0.0
    %2410 = vmatpush2.msra.mxu0 0.0
    %2411 = vmatprep.subr.mxu0 0.0
    %2412 = vmatpush2.msra.mxu0 0.0
    %2413 = vmatprep.subr.mxu0 0.0
    %2414 = vmatpush2.msra.mxu0 0.0
    %2415 = vmatprep.subr.mxu0 0.0
    %2416 = vmatpush2.msra.mxu0 0.0
    %2417 = vmatprep.subr.mxu0 0.0
    %2418 = vmatpush2.msra.mxu0 0.0
    %2419 = vmatprep.subr.mxu0 0.0
    %2420 = vmatpush2.msra.mxu0 0.0
    %2421 = vmatprep.mubr.f32.mxu0 0.0
    %2422 = vmatmul.mubr.f32.gmra.mxu0 %v2194
    %v2423 = vpop.f32.mrf.mxu0
    %v2424 = vadd.f32 %v2276, %v2423
    %v2425 = vpop.f32.mrf.mxu0
    %2426 = vmatprep.mubr.f32.mxu0 0.0
    %2427 = vmatmul.mubr.f32.gmra.mxu0 %v2195
    %v2428 = vpop.f32.mrf.mxu0
    %v2429 = vadd.f32 %v2276, %v2428
    %v2430 = vpop.f32.mrf.mxu0
    %2431 = vdwg.mxu0
    %v2433 = vsel %vm229, %v2347, 0
    %v2436 = vsel %vm229, %v2353, 0
    %v2439 = vsel %vm229, %v2349, 0
    %v2442 = vsel %vm229, %v2355, 0
    %2444 = vmatprep.subr.mxu0 0.0
    %2445 = vmatpush1.xpose.msra.mxu0 0.0
    %2446 = vmatprep.subr.mxu0 0.0
    %2447 = vmatpush1.xpose.msra.mxu0 0.0
    %2448 = vmatprep.subr.mxu0 0.0
    %2449 = vmatpush1.xpose.msra.mxu0 0.0
    %2450 = vmatprep.subr.mxu0 0.0
    %2451 = vmatpush1.xpose.msra.mxu0 0.0
    %2452 = vmatprep.subr.mxu0 0.0
    %2453 = vmatpush1.xpose.msra.mxu0 0.0
    %2454 = vmatprep.subr.mxu0 0.0
    %2455 = vmatpush1.xpose.msra.mxu0 0.0
    %2456 = vmatprep.subr.mxu0 0.0
    %2457 = vmatpush1.xpose.msra.mxu0 0.0
    %2458 = vmatprep.subr.mxu0 0.0
    %2459 = vmatpush1.xpose.msra.mxu0 0.0
    %2460 = vmatprep.subr.mxu0 0.0
    %2461 = vmatpush1.xpose.msra.mxu0 0.0
    %2462 = vmatprep.subr.mxu0 0.0
    %2463 = vmatpush1.xpose.msra.mxu0 0.0
    %2464 = vmatprep.subr.mxu0 0.0
    %2465 = vmatpush1.xpose.msra.mxu0 0.0
    %2466 = vmatprep.subr.mxu0 0.0
    %2467 = vmatpush1.xpose.msra.mxu0 0.0
    %2468 = vmatprep.subr.mxu0 0.0
    %2469 = vmatpush1.xpose.msra.mxu0 0.0
    %2470 = vmatprep.subr.mxu0 0.0
    %2471 = vmatpush1.xpose.msra.mxu0 0.0
    %2472 = vmatprep.subr.mxu0 0.0
    %2473 = vmatpush1.xpose.msra.mxu0 %v2442
    %2474 = vmatprep.subr.mxu0 0.0
    %2475 = vmatpush1.xpose.msra.mxu0 %v2439
    %2476 = vmatprep.subr.mxu0 0.0
    %2477 = vmatpush2.xpose.msra.mxu0 0.0
    %2478 = vmatprep.subr.mxu0 0.0
    %2479 = vmatpush2.xpose.msra.mxu0 0.0
    %2480 = vmatprep.subr.mxu0 0.0
    %2481 = vmatpush2.xpose.msra.mxu0 0.0
    %2482 = vmatprep.subr.mxu0 0.0
    %2483 = vmatpush2.xpose.msra.mxu0 0.0
    %2484 = vmatprep.subr.mxu0 0.0
    %2485 = vmatpush2.xpose.msra.mxu0 0.0
    %2486 = vmatprep.subr.mxu0 0.0
    %2487 = vmatpush2.xpose.msra.mxu0 0.0
    %2488 = vmatprep.subr.mxu0 0.0
    %2489 = vmatpush2.xpose.msra.mxu0 0.0
    %2490 = vmatprep.subr.mxu0 0.0
    %2491 = vmatpush2.xpose.msra.mxu0 0.0
    %2492 = vmatprep.subr.mxu0 0.0
    %2493 = vmatpush2.xpose.msra.mxu0 0.0
    %2494 = vmatprep.subr.mxu0 0.0
    %2495 = vmatpush2.xpose.msra.mxu0 0.0
    %2496 = vmatprep.subr.mxu0 0.0
    %2497 = vmatpush2.xpose.msra.mxu0 0.0
    %2498 = vmatprep.subr.mxu0 0.0
    %2499 = vmatpush2.xpose.msra.mxu0 0.0
    %2500 = vmatprep.subr.mxu0 0.0
    %2501 = vmatpush2.xpose.msra.mxu0 0.0
    %2502 = vmatprep.subr.mxu0 0.0
    %2503 = vmatpush2.xpose.msra.mxu0 0.0
    %2504 = vmatprep.subr.mxu0 0.0
    %2505 = vmatpush2.xpose.msra.mxu0 0.0
    %2506 = vmatprep.subr.mxu0 0.0
    %2507 = vmatpush2.xpose.msra.mxu0 0.0
    %2508 = vmatprep.mubr.f32.mxu0 0.0
    %2509 = vmatmul.mubr.f32.gmra.mxu0 %v2433
    %v2510 = vpop.f32.mrf.mxu0
    %v2511 = vadd.f32 0.0, %v2510
    %v2512 = vpop.f32.mrf.mxu0
    %2513 = vmatprep.mubr.f32.mxu0 0.0
    %2514 = vmatmul.mubr.f32.gmra.mxu0 %v2436
    %v2515 = vpop.f32.mrf.mxu0
    %v2516 = vadd.f32 0.0, %v2515
    %v2517 = vpop.f32.mrf.mxu0
    %2518 = vdwg.mxu0
    %v2519 = vmul.f32 %v2511, 0.17677669
    %v2520 = vmul.f32 %v2516, 0.17677669
    %v2521 = vsel %vm141, %v2519, -inf
    %2522 = vmax.xlane.f32.xlu0 %v2521
    %v2523 = vpop.xlane.xlu0 %2522
    %v2524 = vsel %vm141, %v2520, -inf
    %2525 = vmax.xlane.f32.xlu0 %v2524
    %v2526 = vpop.xlane.xlu0 %2525
    %v2527 = vsub.f32 %v2519, %v2523
    %v2528 = vsub.f32 %v2520, %v2526
    %v2529 = vmul.f32 %v2527, 1.442695
    %v2530 = vpow.pop %v2529
    %v2531 = vmul.f32 %v2528, 1.442695
    %v2532 = vpow.pop %v2531
    %v2533 = vsel %vm141, %v2530, 0.0
    %2534 = vadd.xlane.f32.xlu0 %v2533
    %v2535 = vpop.xlane.xlu0 %2534
    %v2536 = vsel %vm141, %v2532, 0.0
    %2537 = vadd.xlane.f32.xlu0 %v2536
    %v2538 = vpop.xlane.xlu0 %2537
    %v2539 = vrcp.pop %v2535
    %v2540 = vrcp.pop %v2538
    %v2541 = vmul.f32 %v2530, %v2539
    %v2542 = vmul.f32 %v2532, %v2540
    %v2544 = vsel %vm141, %v2541, 0
    %v2547 = vsel %vm141, %v2542, 0
    %2549 = vmatprep.subr.mxu0 0.0
    %2550 = vmatpush1.msra.mxu0 0.0
    %2551 = vmatprep.subr.mxu0 0.0
    %2552 = vmatpush1.msra.mxu0 0.0
    %2553 = vmatprep.subr.mxu0 0.0
    %2554 = vmatpush1.msra.mxu0 0.0
    %2555 = vmatprep.subr.mxu0 0.0
    %2556 = vmatpush1.msra.mxu0 0.0
    %2557 = vmatprep.subr.mxu0 0.0
    %2558 = vmatpush1.msra.mxu0 0.0
    %2559 = vmatprep.subr.mxu0 0.0
    %2560 = vmatpush1.msra.mxu0 0.0
    %2561 = vmatprep.subr.mxu0 0.0
    %2562 = vmatpush1.msra.mxu0 0.0
    %2563 = vmatprep.subr.mxu0 0.0
    %2564 = vmatpush1.msra.mxu0 0.0
    %2565 = vmatprep.subr.mxu0 0.0
    %2566 = vmatpush1.msra.mxu0 0.0
    %2567 = vmatprep.subr.mxu0 0.0
    %2568 = vmatpush1.msra.mxu0 0.0
    %2569 = vmatprep.subr.mxu0 0.0
    %2570 = vmatpush1.msra.mxu0 0.0
    %2571 = vmatprep.subr.mxu0 0.0
    %2572 = vmatpush1.msra.mxu0 0.0
    %2573 = vmatprep.subr.mxu0 0.0
    %2574 = vmatpush1.msra.mxu0 0.0
    %2575 = vmatprep.subr.mxu0 0.0
    %2576 = vmatpush1.msra.mxu0 0.0
    %2577 = vmatprep.subr.mxu0 0.0
    %2578 = vmatpush1.msra.mxu0 %v2429
    %2579 = vmatprep.subr.mxu0 0.0
    %2580 = vmatpush1.msra.mxu0 %v2424
    %2581 = vmatprep.subr.mxu0 0.0
    %2582 = vmatpush2.msra.mxu0 0.0
    %2583 = vmatprep.subr.mxu0 0.0
    %2584 = vmatpush2.msra.mxu0 0.0
    %2585 = vmatprep.subr.mxu0 0.0
    %2586 = vmatpush2.msra.mxu0 0.0
    %2587 = vmatprep.subr.mxu0 0.0
    %2588 = vmatpush2.msra.mxu0 0.0
    %2589 = vmatprep.subr.mxu0 0.0
    %2590 = vmatpush2.msra.mxu0 0.0
    %2591 = vmatprep.subr.mxu0 0.0
    %2592 = vmatpush2.msra.mxu0 0.0
    %2593 = vmatprep.subr.mxu0 0.0
    %2594 = vmatpush2.msra.mxu0 0.0
    %2595 = vmatprep.subr.mxu0 0.0
    %2596 = vmatpush2.msra.mxu0 0.0
    %2597 = vmatprep.subr.mxu0 0.0
    %2598 = vmatpush2.msra.mxu0 0.0
    %2599 = vmatprep.subr.mxu0 0.0
    %2600 = vmatpush2.msra.mxu0 0.0
    %2601 = vmatprep.subr.mxu0 0.0
    %2602 = vmatpush2.msra.mxu0 0.0
    %2603 = vmatprep.subr.mxu0 0.0
    %2604 = vmatpush2.msra.mxu0 0.0
    %2605 = vmatprep.subr.mxu0 0.0
    %2606 = vmatpush2.msra.mxu0 0.0
    %2607 = vmatprep.subr.mxu0 0.0
    %2608 = vmatpush2.msra.mxu0 0.0
    %2609 = vmatprep.subr.mxu0 0.0
    %2610 = vmatpush2.msra.mxu0 0.0
    %2611 = vmatprep.subr.mxu0 0.0
    %2612 = vmatpush2.msra.mxu0 0.0
    %2613 = vmatprep.mubr.f32.mxu0 0.0
    %2614 = vmatmul.mubr.f32.gmra.mxu0 %v2544
    %v2615 = vpop.f32.mrf.mxu0
    %v2616 = vadd.f32 0.0, %v2615
    %v2617 = vpop.f32.mrf.mxu0
    %2618 = vmatprep.mubr.f32.mxu0 0.0
    %2619 = vmatmul.mubr.f32.gmra.mxu0 %v2547
    %v2620 = vpop.f32.mrf.mxu0
    %v2621 = vadd.f32 0.0, %v2620
    %v2622 = vpop.f32.mrf.mxu0
    %2623 = vdwg.mxu0
    %2624 = vrot.lane.b32.xlu0 %v2347, 96
    %v2625 = vpop.permute.xlu0 %2624
    %2626 = vrot.lane.b32.xlu0 %v2353, 96
    %v2627 = vpop.permute.xlu0 %2626
    %2628 = vrot.lane.b32.xlu0 %v2349, 96
    %v2629 = vpop.permute.xlu0 %2628
    %2630 = vrot.lane.b32.xlu0 %v2355, 96
    %v2631 = vpop.permute.xlu0 %2630
    %v2632 = vsel %vm229, %v2625, 0
    %v2634 = vsel %vm229, %v2627, 0
    %v2636 = vsel %vm229, %v2629, 0
    %v2638 = vsel %vm229, %v2631, 0
    %2640 = vmatprep.subr.mxu0 0.0
    %2641 = vmatpush1.xpose.msra.mxu0 0.0
    %2642 = vmatprep.subr.mxu0 0.0
    %2643 = vmatpush1.xpose.msra.mxu0 0.0
    %2644 = vmatprep.subr.mxu0 0.0
    %2645 = vmatpush1.xpose.msra.mxu0 0.0
    %2646 = vmatprep.subr.mxu0 0.0
    %2647 = vmatpush1.xpose.msra.mxu0 0.0
    %2648 = vmatprep.subr.mxu0 0.0
    %2649 = vmatpush1.xpose.msra.mxu0 0.0
    %2650 = vmatprep.subr.mxu0 0.0
    %2651 = vmatpush1.xpose.msra.mxu0 0.0
    %2652 = vmatprep.subr.mxu0 0.0
    %2653 = vmatpush1.xpose.msra.mxu0 0.0
    %2654 = vmatprep.subr.mxu0 0.0
    %2655 = vmatpush1.xpose.msra.mxu0 0.0
    %2656 = vmatprep.subr.mxu0 0.0
    %2657 = vmatpush1.xpose.msra.mxu0 0.0
    %2658 = vmatprep.subr.mxu0 0.0
    %2659 = vmatpush1.xpose.msra.mxu0 0.0
    %2660 = vmatprep.subr.mxu0 0.0
    %2661 = vmatpush1.xpose.msra.mxu0 0.0
    %2662 = vmatprep.subr.mxu0 0.0
    %2663 = vmatpush1.xpose.msra.mxu0 0.0
    %2664 = vmatprep.subr.mxu0 0.0
    %2665 = vmatpush1.xpose.msra.mxu0 0.0
    %2666 = vmatprep.subr.mxu0 0.0
    %2667 = vmatpush1.xpose.msra.mxu0 0.0
    %2668 = vmatprep.subr.mxu0 0.0
    %2669 = vmatpush1.xpose.msra.mxu0 %v2638
    %2670 = vmatprep.subr.mxu0 0.0
    %2671 = vmatpush1.xpose.msra.mxu0 %v2636
    %2672 = vmatprep.subr.mxu0 0.0
    %2673 = vmatpush2.xpose.msra.mxu0 0.0
    %2674 = vmatprep.subr.mxu0 0.0
    %2675 = vmatpush2.xpose.msra.mxu0 0.0
    %2676 = vmatprep.subr.mxu0 0.0
    %2677 = vmatpush2.xpose.msra.mxu0 0.0
    %2678 = vmatprep.subr.mxu0 0.0
    %2679 = vmatpush2.xpose.msra.mxu0 0.0
    %2680 = vmatprep.subr.mxu0 0.0
    %2681 = vmatpush2.xpose.msra.mxu0 0.0
    %2682 = vmatprep.subr.mxu0 0.0
    %2683 = vmatpush2.xpose.msra.mxu0 0.0
    %2684 = vmatprep.subr.mxu0 0.0
    %2685 = vmatpush2.xpose.msra.mxu0 0.0
    %2686 = vmatprep.subr.mxu0 0.0
    %2687 = vmatpush2.xpose.msra.mxu0 0.0
    %2688 = vmatprep.subr.mxu0 0.0
    %2689 = vmatpush2.xpose.msra.mxu0 0.0
    %2690 = vmatprep.subr.mxu0 0.0
    %2691 = vmatpush2.xpose.msra.mxu0 0.0
    %2692 = vmatprep.subr.mxu0 0.0
    %2693 = vmatpush2.xpose.msra.mxu0 0.0
    %2694 = vmatprep.subr.mxu0 0.0
    %2695 = vmatpush2.xpose.msra.mxu0 0.0
    %2696 = vmatprep.subr.mxu0 0.0
    %2697 = vmatpush2.xpose.msra.mxu0 0.0
    %2698 = vmatprep.subr.mxu0 0.0
    %2699 = vmatpush2.xpose.msra.mxu0 0.0
    %2700 = vmatprep.subr.mxu0 0.0
    %2701 = vmatpush2.xpose.msra.mxu0 0.0
    %2702 = vmatprep.subr.mxu0 0.0
    %2703 = vmatpush2.xpose.msra.mxu0 0.0
    %2704 = vmatprep.mubr.f32.mxu0 0.0
    %2705 = vmatmul.mubr.f32.gmra.mxu0 %v2632
    %v2706 = vpop.f32.mrf.mxu0
    %v2707 = vadd.f32 0.0, %v2706
    %v2708 = vpop.f32.mrf.mxu0
    %2709 = vmatprep.mubr.f32.mxu0 0.0
    %2710 = vmatmul.mubr.f32.gmra.mxu0 %v2634
    %v2711 = vpop.f32.mrf.mxu0
    %v2712 = vadd.f32 0.0, %v2711
    %v2713 = vpop.f32.mrf.mxu0
    %2714 = vdwg.mxu0
    %v2715 = vmul.f32 %v2707, 0.17677669
    %v2716 = vmul.f32 %v2712, 0.17677669
    %v2717 = vsel %vm141, %v2715, -inf
    %2718 = vmax.xlane.f32.xlu0 %v2717
    %v2719 = vpop.xlane.xlu0 %2718
    %v2720 = vsel %vm141, %v2716, -inf
    %2721 = vmax.xlane.f32.xlu0 %v2720
    %v2722 = vpop.xlane.xlu0 %2721
    %v2723 = vsub.f32 %v2715, %v2719
    %v2724 = vsub.f32 %v2716, %v2722
    %v2725 = vmul.f32 %v2723, 1.442695
    %v2726 = vpow.pop %v2725
    %v2727 = vmul.f32 %v2724, 1.442695
    %v2728 = vpow.pop %v2727
    %v2729 = vsel %vm141, %v2726, 0.0
    %2730 = vadd.xlane.f32.xlu0 %v2729
    %v2731 = vpop.xlane.xlu0 %2730
    %v2732 = vsel %vm141, %v2728, 0.0
    %2733 = vadd.xlane.f32.xlu0 %v2732
    %v2734 = vpop.xlane.xlu0 %2733
    %v2735 = vrcp.pop %v2731
    %v2736 = vrcp.pop %v2734
    %v2737 = vmul.f32 %v2726, %v2735
    %v2738 = vmul.f32 %v2728, %v2736
    %2741 = vrot.lane.b32.xlu0 %v2424, 96
    %v2742 = vpop.permute.xlu0 %2741
    %2743 = vrot.lane.b32.xlu0 %v2429, 96
    %v2744 = vpop.permute.xlu0 %2743
    %v2748 = vsel %vm141, %v2737, 0
    %v2751 = vsel %vm141, %v2738, 0
    %2753 = vmatprep.subr.mxu0 0.0
    %2754 = vmatpush1.msra.mxu0 0.0
    %2755 = vmatprep.subr.mxu0 0.0
    %2756 = vmatpush1.msra.mxu0 0.0
    %2757 = vmatprep.subr.mxu0 0.0
    %2758 = vmatpush1.msra.mxu0 0.0
    %2759 = vmatprep.subr.mxu0 0.0
    %2760 = vmatpush1.msra.mxu0 0.0
    %2761 = vmatprep.subr.mxu0 0.0
    %2762 = vmatpush1.msra.mxu0 0.0
    %2763 = vmatprep.subr.mxu0 0.0
    %2764 = vmatpush1.msra.mxu0 0.0
    %2765 = vmatprep.subr.mxu0 0.0
    %2766 = vmatpush1.msra.mxu0 0.0
    %2767 = vmatprep.subr.mxu0 0.0
    %2768 = vmatpush1.msra.mxu0 0.0
    %2769 = vmatprep.subr.mxu0 0.0
    %2770 = vmatpush1.msra.mxu0 0.0
    %2771 = vmatprep.subr.mxu0 0.0
    %2772 = vmatpush1.msra.mxu0 0.0
    %2773 = vmatprep.subr.mxu0 0.0
    %2774 = vmatpush1.msra.mxu0 0.0
    %2775 = vmatprep.subr.mxu0 0.0
    %2776 = vmatpush1.msra.mxu0 0.0
    %2777 = vmatprep.subr.mxu0 0.0
    %2778 = vmatpush1.msra.mxu0 0.0
    %2779 = vmatprep.subr.mxu0 0.0
    %2780 = vmatpush1.msra.mxu0 0.0
    %2781 = vmatprep.subr.mxu0 0.0
    %2782 = vmatpush1.msra.mxu0 %v2744
    %2783 = vmatprep.subr.mxu0 0.0
    %2784 = vmatpush1.msra.mxu0 %v2742
    %2785 = vmatprep.subr.mxu0 0.0
    %2786 = vmatpush2.msra.mxu0 0.0
    %2787 = vmatprep.subr.mxu0 0.0
    %2788 = vmatpush2.msra.mxu0 0.0
    %2789 = vmatprep.subr.mxu0 0.0
    %2790 = vmatpush2.msra.mxu0 0.0
    %2791 = vmatprep.subr.mxu0 0.0
    %2792 = vmatpush2.msra.mxu0 0.0
    %2793 = vmatprep.subr.mxu0 0.0
    %2794 = vmatpush2.msra.mxu0 0.0
    %2795 = vmatprep.subr.mxu0 0.0
    %2796 = vmatpush2.msra.mxu0 0.0
    %2797 = vmatprep.subr.mxu0 0.0
    %2798 = vmatpush2.msra.mxu0 0.0
    %2799 = vmatprep.subr.mxu0 0.0
    %2800 = vmatpush2.msra.mxu0 0.0
    %2801 = vmatprep.subr.mxu0 0.0
    %2802 = vmatpush2.msra.mxu0 0.0
    %2803 = vmatprep.subr.mxu0 0.0
    %2804 = vmatpush2.msra.mxu0 0.0
    %2805 = vmatprep.subr.mxu0 0.0
    %2806 = vmatpush2.msra.mxu0 0.0
    %2807 = vmatprep.subr.mxu0 0.0
    %2808 = vmatpush2.msra.mxu0 0.0
    %2809 = vmatprep.subr.mxu0 0.0
    %2810 = vmatpush2.msra.mxu0 0.0
    %2811 = vmatprep.subr.mxu0 0.0
    %2812 = vmatpush2.msra.mxu0 0.0
    %2813 = vmatprep.subr.mxu0 0.0
    %2814 = vmatpush2.msra.mxu0 0.0
    %2815 = vmatprep.subr.mxu0 0.0
    %2816 = vmatpush2.msra.mxu0 0.0
    %2817 = vmatprep.mubr.f32.mxu0 0.0
    %2818 = vmatmul.mubr.f32.gmra.mxu0 %v2748
    %v2819 = vpop.f32.mrf.mxu0
    %v2820 = vadd.f32 0.0, %v2819
    %v2821 = vpop.f32.mrf.mxu0
    %2822 = vmatprep.mubr.f32.mxu0 0.0
    %2823 = vmatmul.mubr.f32.gmra.mxu0 %v2751
    %v2824 = vpop.f32.mrf.mxu0
    %v2825 = vadd.f32 0.0, %v2824
    %v2826 = vpop.f32.mrf.mxu0
    %2827 = vdwg.mxu0
    %2828 = vrot.lane.b32.xlu0 %v2347, 64
    %v2829 = vpop.permute.xlu0 %2828
    %2830 = vrot.lane.b32.xlu0 %v2353, 64
    %v2831 = vpop.permute.xlu0 %2830
    %2832 = vrot.lane.b32.xlu0 %v2349, 64
    %v2833 = vpop.permute.xlu0 %2832
    %2834 = vrot.lane.b32.xlu0 %v2355, 64
    %v2835 = vpop.permute.xlu0 %2834
    %v2836 = vsel %vm229, %v2829, 0
    %v2838 = vsel %vm229, %v2831, 0
    %v2840 = vsel %vm229, %v2833, 0
    %v2842 = vsel %vm229, %v2835, 0
    %2844 = vmatprep.subr.mxu0 0.0
    %2845 = vmatpush1.xpose.msra.mxu0 0.0
    %2846 = vmatprep.subr.mxu0 0.0
    %2847 = vmatpush1.xpose.msra.mxu0 0.0
    %2848 = vmatprep.subr.mxu0 0.0
    %2849 = vmatpush1.xpose.msra.mxu0 0.0
    %2850 = vmatprep.subr.mxu0 0.0
    %2851 = vmatpush1.xpose.msra.mxu0 0.0
    %2852 = vmatprep.subr.mxu0 0.0
    %2853 = vmatpush1.xpose.msra.mxu0 0.0
    %2854 = vmatprep.subr.mxu0 0.0
    %2855 = vmatpush1.xpose.msra.mxu0 0.0
    %2856 = vmatprep.subr.mxu0 0.0
    %2857 = vmatpush1.xpose.msra.mxu0 0.0
    %2858 = vmatprep.subr.mxu0 0.0
    %2859 = vmatpush1.xpose.msra.mxu0 0.0
    %2860 = vmatprep.subr.mxu0 0.0
    %2861 = vmatpush1.xpose.msra.mxu0 0.0
    %2862 = vmatprep.subr.mxu0 0.0
    %2863 = vmatpush1.xpose.msra.mxu0 0.0
    %2864 = vmatprep.subr.mxu0 0.0
    %2865 = vmatpush1.xpose.msra.mxu0 0.0
    %2866 = vmatprep.subr.mxu0 0.0
    %2867 = vmatpush1.xpose.msra.mxu0 0.0
    %2868 = vmatprep.subr.mxu0 0.0
    %2869 = vmatpush1.xpose.msra.mxu0 0.0
    %2870 = vmatprep.subr.mxu0 0.0
    %2871 = vmatpush1.xpose.msra.mxu0 0.0
    %2872 = vmatprep.subr.mxu0 0.0
    %2873 = vmatpush1.xpose.msra.mxu0 %v2842
    %2874 = vmatprep.subr.mxu0 0.0
    %2875 = vmatpush1.xpose.msra.mxu0 %v2840
    %2876 = vmatprep.subr.mxu0 0.0
    %2877 = vmatpush2.xpose.msra.mxu0 0.0
    %2878 = vmatprep.subr.mxu0 0.0
    %2879 = vmatpush2.xpose.msra.mxu0 0.0
    %2880 = vmatprep.subr.mxu0 0.0
    %2881 = vmatpush2.xpose.msra.mxu0 0.0
    %2882 = vmatprep.subr.mxu0 0.0
    %2883 = vmatpush2.xpose.msra.mxu0 0.0
    %2884 = vmatprep.subr.mxu0 0.0
    %2885 = vmatpush2.xpose.msra.mxu0 0.0
    %2886 = vmatprep.subr.mxu0 0.0
    %2887 = vmatpush2.xpose.msra.mxu0 0.0
    %2888 = vmatprep.subr.mxu0 0.0
    %2889 = vmatpush2.xpose.msra.mxu0 0.0
    %2890 = vmatprep.subr.mxu0 0.0
    %2891 = vmatpush2.xpose.msra.mxu0 0.0
    %2892 = vmatprep.subr.mxu0 0.0
    %2893 = vmatpush2.xpose.msra.mxu0 0.0
    %2894 = vmatprep.subr.mxu0 0.0
    %2895 = vmatpush2.xpose.msra.mxu0 0.0
    %2896 = vmatprep.subr.mxu0 0.0
    %2897 = vmatpush2.xpose.msra.mxu0 0.0
    %2898 = vmatprep.subr.mxu0 0.0
    %2899 = vmatpush2.xpose.msra.mxu0 0.0
    %2900 = vmatprep.subr.mxu0 0.0
    %2901 = vmatpush2.xpose.msra.mxu0 0.0
    %2902 = vmatprep.subr.mxu0 0.0
    %2903 = vmatpush2.xpose.msra.mxu0 0.0
    %2904 = vmatprep.subr.mxu0 0.0
    %2905 = vmatpush2.xpose.msra.mxu0 0.0
    %2906 = vmatprep.subr.mxu0 0.0
    %2907 = vmatpush2.xpose.msra.mxu0 0.0
    %2908 = vmatprep.mubr.f32.mxu0 0.0
    %2909 = vmatmul.mubr.f32.gmra.mxu0 %v2836
    %v2910 = vpop.f32.mrf.mxu0
    %v2911 = vadd.f32 0.0, %v2910
    %v2912 = vpop.f32.mrf.mxu0
    %2913 = vmatprep.mubr.f32.mxu0 0.0
    %2914 = vmatmul.mubr.f32.gmra.mxu0 %v2838
    %v2915 = vpop.f32.mrf.mxu0
    %v2916 = vadd.f32 0.0, %v2915
    %v2917 = vpop.f32.mrf.mxu0
    %2918 = vdwg.mxu0
    %v2919 = vmul.f32 %v2911, 0.17677669
    %v2920 = vmul.f32 %v2916, 0.17677669
    %v2921 = vsel %vm141, %v2919, -inf
    %2922 = vmax.xlane.f32.xlu0 %v2921
    %v2923 = vpop.xlane.xlu0 %2922
    %v2924 = vsel %vm141, %v2920, -inf
    %2925 = vmax.xlane.f32.xlu0 %v2924
    %v2926 = vpop.xlane.xlu0 %2925
    %v2927 = vsub.f32 %v2919, %v2923
    %v2928 = vsub.f32 %v2920, %v2926
    %v2929 = vmul.f32 %v2927, 1.442695
    %v2930 = vpow.pop %v2929
    %v2931 = vmul.f32 %v2928, 1.442695
    %v2932 = vpow.pop %v2931
    %v2933 = vsel %vm141, %v2930, 0.0
    %2934 = vadd.xlane.f32.xlu0 %v2933
    %v2935 = vpop.xlane.xlu0 %2934
    %v2936 = vsel %vm141, %v2932, 0.0
    %2937 = vadd.xlane.f32.xlu0 %v2936
    %v2938 = vpop.xlane.xlu0 %2937
    %v2939 = vrcp.pop %v2935
    %v2940 = vrcp.pop %v2938
    %v2941 = vmul.f32 %v2930, %v2939
    %v2942 = vmul.f32 %v2932, %v2940
    %2943 = vrot.lane.b32.xlu0 %v2424, 64
    %v2944 = vpop.permute.xlu0 %2943
    %2945 = vrot.lane.b32.xlu0 %v2429, 64
    %v2946 = vpop.permute.xlu0 %2945
    %v2950 = vsel %vm141, %v2941, 0
    %v2953 = vsel %vm141, %v2942, 0
    %2955 = vmatprep.subr.mxu0 0.0
    %2956 = vmatpush1.msra.mxu0 0.0
    %2957 = vmatprep.subr.mxu0 0.0
    %2958 = vmatpush1.msra.mxu0 0.0
    %2959 = vmatprep.subr.mxu0 0.0
    %2960 = vmatpush1.msra.mxu0 0.0
    %2961 = vmatprep.subr.mxu0 0.0
    %2962 = vmatpush1.msra.mxu0 0.0
    %2963 = vmatprep.subr.mxu0 0.0
    %2964 = vmatpush1.msra.mxu0 0.0
    %2965 = vmatprep.subr.mxu0 0.0
    %2966 = vmatpush1.msra.mxu0 0.0
    %2967 = vmatprep.subr.mxu0 0.0
    %2968 = vmatpush1.msra.mxu0 0.0
    %2969 = vmatprep.subr.mxu0 0.0
    %2970 = vmatpush1.msra.mxu0 0.0
    %2971 = vmatprep.subr.mxu0 0.0
    %2972 = vmatpush1.msra.mxu0 0.0
    %2973 = vmatprep.subr.mxu0 0.0
    %2974 = vmatpush1.msra.mxu0 0.0
    %2975 = vmatprep.subr.mxu0 0.0
    %2976 = vmatpush1.msra.mxu0 0.0
    %2977 = vmatprep.subr.mxu0 0.0
    %2978 = vmatpush1.msra.mxu0 0.0
    %2979 = vmatprep.subr.mxu0 0.0
    %2980 = vmatpush1.msra.mxu0 0.0
    %2981 = vmatprep.subr.mxu0 0.0
    %2982 = vmatpush1.msra.mxu0 0.0
    %2983 = vmatprep.subr.mxu0 0.0
    %2984 = vmatpush1.msra.mxu0 %v2946
    %2985 = vmatprep.subr.mxu0 0.0
    %2986 = vmatpush1.msra.mxu0 %v2944
    %2987 = vmatprep.subr.mxu0 0.0
    %2988 = vmatpush2.msra.mxu0 0.0
    %2989 = vmatprep.subr.mxu0 0.0
    %2990 = vmatpush2.msra.mxu0 0.0
    %2991 = vmatprep.subr.mxu0 0.0
    %2992 = vmatpush2.msra.mxu0 0.0
    %2993 = vmatprep.subr.mxu0 0.0
    %2994 = vmatpush2.msra.mxu0 0.0
    %2995 = vmatprep.subr.mxu0 0.0
    %2996 = vmatpush2.msra.mxu0 0.0
    %2997 = vmatprep.subr.mxu0 0.0
    %2998 = vmatpush2.msra.mxu0 0.0
    %2999 = vmatprep.subr.mxu0 0.0
    %3000 = vmatpush2.msra.mxu0 0.0
    %3001 = vmatprep.subr.mxu0 0.0
    %3002 = vmatpush2.msra.mxu0 0.0
    %3003 = vmatprep.subr.mxu0 0.0
    %3004 = vmatpush2.msra.mxu0 0.0
    %3005 = vmatprep.subr.mxu0 0.0
    %3006 = vmatpush2.msra.mxu0 0.0
    %3007 = vmatprep.subr.mxu0 0.0
    %3008 = vmatpush2.msra.mxu0 0.0
    %3009 = vmatprep.subr.mxu0 0.0
    %3010 = vmatpush2.msra.mxu0 0.0
    %3011 = vmatprep.subr.mxu0 0.0
    %3012 = vmatpush2.msra.mxu0 0.0
    %3013 = vmatprep.subr.mxu0 0.0
    %3014 = vmatpush2.msra.mxu0 0.0
    %3015 = vmatprep.subr.mxu0 0.0
    %3016 = vmatpush2.msra.mxu0 0.0
    %3017 = vmatprep.subr.mxu0 0.0
    %3018 = vmatpush2.msra.mxu0 0.0
    %3019 = vmatprep.mubr.f32.mxu0 0.0
    %3020 = vmatmul.mubr.f32.gmra.mxu0 %v2950
    %v3021 = vpop.f32.mrf.mxu0
    %v3022 = vadd.f32 0.0, %v3021
    %v3023 = vpop.f32.mrf.mxu0
    %3024 = vmatprep.mubr.f32.mxu0 0.0
    %3025 = vmatmul.mubr.f32.gmra.mxu0 %v2953
    %v3026 = vpop.f32.mrf.mxu0
    %v3027 = vadd.f32 0.0, %v3026
    %v3028 = vpop.f32.mrf.mxu0
    %3029 = vdwg.mxu0
    %3030 = vrot.lane.b32.xlu0 %v2347, 32
    %v3031 = vpop.permute.xlu0 %3030
    %3032 = vrot.lane.b32.xlu0 %v2353, 32
    %v3033 = vpop.permute.xlu0 %3032
    %3034 = vrot.lane.b32.xlu0 %v2349, 32
    %v3035 = vpop.permute.xlu0 %3034
    %3036 = vrot.lane.b32.xlu0 %v2355, 32
    %v3037 = vpop.permute.xlu0 %3036
    %v3038 = vsel %vm229, %v3031, 0
    %v3040 = vsel %vm229, %v3033, 0
    %v3042 = vsel %vm229, %v3035, 0
    %v3044 = vsel %vm229, %v3037, 0
    %3046 = vmatprep.subr.mxu0 0.0
    %3047 = vmatpush1.xpose.msra.mxu0 0.0
    %3048 = vmatprep.subr.mxu0 0.0
    %3049 = vmatpush1.xpose.msra.mxu0 0.0
    %3050 = vmatprep.subr.mxu0 0.0
    %3051 = vmatpush1.xpose.msra.mxu0 0.0
    %3052 = vmatprep.subr.mxu0 0.0
    %3053 = vmatpush1.xpose.msra.mxu0 0.0
    %3054 = vmatprep.subr.mxu0 0.0
    %3055 = vmatpush1.xpose.msra.mxu0 0.0
    %3056 = vmatprep.subr.mxu0 0.0
    %3057 = vmatpush1.xpose.msra.mxu0 0.0
    %3058 = vmatprep.subr.mxu0 0.0
    %3059 = vmatpush1.xpose.msra.mxu0 0.0
    %3060 = vmatprep.subr.mxu0 0.0
    %3061 = vmatpush1.xpose.msra.mxu0 0.0
    %3062 = vmatprep.subr.mxu0 0.0
    %3063 = vmatpush1.xpose.msra.mxu0 0.0
    %3064 = vmatprep.subr.mxu0 0.0
    %3065 = vmatpush1.xpose.msra.mxu0 0.0
    %3066 = vmatprep.subr.mxu0 0.0
    %3067 = vmatpush1.xpose.msra.mxu0 0.0
    %3068 = vmatprep.subr.mxu0 0.0
    %3069 = vmatpush1.xpose.msra.mxu0 0.0
    %3070 = vmatprep.subr.mxu0 0.0
    %3071 = vmatpush1.xpose.msra.mxu0 0.0
    %3072 = vmatprep.subr.mxu0 0.0
    %3073 = vmatpush1.xpose.msra.mxu0 0.0
    %3074 = vmatprep.subr.mxu0 0.0
    %3075 = vmatpush1.xpose.msra.mxu0 %v3044
    %3076 = vmatprep.subr.mxu0 0.0
    %3077 = vmatpush1.xpose.msra.mxu0 %v3042
    %3078 = vmatprep.subr.mxu0 0.0
    %3079 = vmatpush2.xpose.msra.mxu0 0.0
    %3080 = vmatprep.subr.mxu0 0.0
    %3081 = vmatpush2.xpose.msra.mxu0 0.0
    %3082 = vmatprep.subr.mxu0 0.0
    %3083 = vmatpush2.xpose.msra.mxu0 0.0
    %3084 = vmatprep.subr.mxu0 0.0
    %3085 = vmatpush2.xpose.msra.mxu0 0.0
    %3086 = vmatprep.subr.mxu0 0.0
    %3087 = vmatpush2.xpose.msra.mxu0 0.0
    %3088 = vmatprep.subr.mxu0 0.0
    %3089 = vmatpush2.xpose.msra.mxu0 0.0
    %3090 = vmatprep.subr.mxu0 0.0
    %3091 = vmatpush2.xpose.msra.mxu0 0.0
    %3092 = vmatprep.subr.mxu0 0.0
    %3093 = vmatpush2.xpose.msra.mxu0 0.0
    %3094 = vmatprep.subr.mxu0 0.0
    %3095 = vmatpush2.xpose.msra.mxu0 0.0
    %3096 = vmatprep.subr.mxu0 0.0
    %3097 = vmatpush2.xpose.msra.mxu0 0.0
    %3098 = vmatprep.subr.mxu0 0.0
    %3099 = vmatpush2.xpose.msra.mxu0 0.0
    %3100 = vmatprep.subr.mxu0 0.0
    %3101 = vmatpush2.xpose.msra.mxu0 0.0
    %3102 = vmatprep.subr.mxu0 0.0
    %3103 = vmatpush2.xpose.msra.mxu0 0.0
    %3104 = vmatprep.subr.mxu0 0.0
    %3105 = vmatpush2.xpose.msra.mxu0 0.0
    %3106 = vmatprep.subr.mxu0 0.0
    %3107 = vmatpush2.xpose.msra.mxu0 0.0
    %3108 = vmatprep.subr.mxu0 0.0
    %3109 = vmatpush2.xpose.msra.mxu0 0.0
    %3110 = vmatprep.mubr.f32.mxu0 0.0
    %3111 = vmatmul.mubr.f32.gmra.mxu0 %v3038
    %v3112 = vpop.f32.mrf.mxu0
    %v3113 = vadd.f32 0.0, %v3112
    %v3114 = vpop.f32.mrf.mxu0
    %3115 = vmatprep.mubr.f32.mxu0 0.0
    %3116 = vmatmul.mubr.f32.gmra.mxu0 %v3040
    %v3117 = vpop.f32.mrf.mxu0
    %v3118 = vadd.f32 0.0, %v3117
    %v3119 = vpop.f32.mrf.mxu0
    %3120 = vdwg.mxu0
    %v3121 = vmul.f32 %v3113, 0.17677669
    %v3122 = vmul.f32 %v3118, 0.17677669
    %v3123 = vsel %vm141, %v3121, -inf
    %3124 = vmax.xlane.f32.xlu0 %v3123
    %v3125 = vpop.xlane.xlu0 %3124
    %v3126 = vsel %vm141, %v3122, -inf
    %3127 = vmax.xlane.f32.xlu0 %v3126
    %v3128 = vpop.xlane.xlu0 %3127
    %v3129 = vsub.f32 %v3121, %v3125
    %v3130 = vsub.f32 %v3122, %v3128
    %v3131 = vmul.f32 %v3129, 1.442695
    %v3132 = vpow.pop %v3131
    %v3133 = vmul.f32 %v3130, 1.442695
    %v3134 = vpow.pop %v3133
    %v3135 = vsel %vm141, %v3132, 0.0
    %3136 = vadd.xlane.f32.xlu0 %v3135
    %v3137 = vpop.xlane.xlu0 %3136
    %v3138 = vsel %vm141, %v3134, 0.0
    %3139 = vadd.xlane.f32.xlu0 %v3138
    %v3140 = vpop.xlane.xlu0 %3139
    %v3141 = vrcp.pop %v3137
    %v3142 = vrcp.pop %v3140
    %v3143 = vmul.f32 %v3132, %v3141
    %v3144 = vmul.f32 %v3134, %v3142
    %3145 = vrot.lane.b32.xlu0 %v2424, 32
    %v3146 = vpop.permute.xlu0 %3145
    %3147 = vrot.lane.b32.xlu0 %v2429, 32
    %v3148 = vpop.permute.xlu0 %3147
    %v3152 = vsel %vm141, %v3143, 0
    %v3155 = vsel %vm141, %v3144, 0
    %3157 = vmatprep.subr.mxu0 0.0
    %3158 = vmatpush1.msra.mxu0 0.0
    %3159 = vmatprep.subr.mxu0 0.0
    %3160 = vmatpush1.msra.mxu0 0.0
    %3161 = vmatprep.subr.mxu0 0.0
    %3162 = vmatpush1.msra.mxu0 0.0
    %3163 = vmatprep.subr.mxu0 0.0
    %3164 = vmatpush1.msra.mxu0 0.0
    %3165 = vmatprep.subr.mxu0 0.0
    %3166 = vmatpush1.msra.mxu0 0.0
    %3167 = vmatprep.subr.mxu0 0.0
    %3168 = vmatpush1.msra.mxu0 0.0
    %3169 = vmatprep.subr.mxu0 0.0
    %3170 = vmatpush1.msra.mxu0 0.0
    %3171 = vmatprep.subr.mxu0 0.0
    %3172 = vmatpush1.msra.mxu0 0.0
    %3173 = vmatprep.subr.mxu0 0.0
    %3174 = vmatpush1.msra.mxu0 0.0
    %3175 = vmatprep.subr.mxu0 0.0
    %3176 = vmatpush1.msra.mxu0 0.0
    %3177 = vmatprep.subr.mxu0 0.0
    %3178 = vmatpush1.msra.mxu0 0.0
    %3179 = vmatprep.subr.mxu0 0.0
    %3180 = vmatpush1.msra.mxu0 0.0
    %3181 = vmatprep.subr.mxu0 0.0
    %3182 = vmatpush1.msra.mxu0 0.0
    %3183 = vmatprep.subr.mxu0 0.0
    %3184 = vmatpush1.msra.mxu0 0.0
    %3185 = vmatprep.subr.mxu0 0.0
    %3186 = vmatpush1.msra.mxu0 %v3148
    %3187 = vmatprep.subr.mxu0 0.0
    %3188 = vmatpush1.msra.mxu0 %v3146
    %3189 = vmatprep.subr.mxu0 0.0
    %3190 = vmatpush2.msra.mxu0 0.0
    %3191 = vmatprep.subr.mxu0 0.0
    %3192 = vmatpush2.msra.mxu0 0.0
    %3193 = vmatprep.subr.mxu0 0.0
    %3194 = vmatpush2.msra.mxu0 0.0
    %3195 = vmatprep.subr.mxu0 0.0
    %3196 = vmatpush2.msra.mxu0 0.0
    %3197 = vmatprep.subr.mxu0 0.0
    %3198 = vmatpush2.msra.mxu0 0.0
    %3199 = vmatprep.subr.mxu0 0.0
    %3200 = vmatpush2.msra.mxu0 0.0
    %3201 = vmatprep.subr.mxu0 0.0
    %3202 = vmatpush2.msra.mxu0 0.0
    %3203 = vmatprep.subr.mxu0 0.0
    %3204 = vmatpush2.msra.mxu0 0.0
    %3205 = vmatprep.subr.mxu0 0.0
    %3206 = vmatpush2.msra.mxu0 0.0
    %3207 = vmatprep.subr.mxu0 0.0
    %3208 = vmatpush2.msra.mxu0 0.0
    %3209 = vmatprep.subr.mxu0 0.0
    %3210 = vmatpush2.msra.mxu0 0.0
    %3211 = vmatprep.subr.mxu0 0.0
    %3212 = vmatpush2.msra.mxu0 0.0
    %3213 = vmatprep.subr.mxu0 0.0
    %3214 = vmatpush2.msra.mxu0 0.0
    %3215 = vmatprep.subr.mxu0 0.0
    %3216 = vmatpush2.msra.mxu0 0.0
    %3217 = vmatprep.subr.mxu0 0.0
    %3218 = vmatpush2.msra.mxu0 0.0
    %3219 = vmatprep.subr.mxu0 0.0
    %3220 = vmatpush2.msra.mxu0 0.0
    %3221 = vmatprep.mubr.f32.mxu0 0.0
    %3222 = vmatmul.mubr.f32.gmra.mxu0 %v3152
    %v3223 = vpop.f32.mrf.mxu0
    %v3224 = vadd.f32 0.0, %v3223
    %v3225 = vpop.f32.mrf.mxu0
    %3226 = vmatprep.mubr.f32.mxu0 0.0
    %3227 = vmatmul.mubr.f32.gmra.mxu0 %v3155
    %v3228 = vpop.f32.mrf.mxu0
    %v3229 = vadd.f32 0.0, %v3228
    %v3230 = vpop.f32.mrf.mxu0
    %3231 = vdwg.mxu0
    %3234 = vrot.lane.b32.xlu0 %v2820, 32
    %v3235 = vpop.permute.xlu0 %3234
    %3236 = vrot.lane.b32.xlu0 %v2825, 32
    %v3237 = vpop.permute.xlu0 %3236
    %3242 = vrot.lane.b32.xlu0 %v3022, 64
    %v3243 = vpop.permute.xlu0 %3242
    %3244 = vrot.lane.b32.xlu0 %v3027, 64
    %v3245 = vpop.permute.xlu0 %3244
    %3250 = vrot.lane.b32.xlu0 %v3224, 96
    %v3251 = vpop.permute.xlu0 %3250
    %3252 = vrot.lane.b32.xlu0 %v3229, 96
    %v3253 = vpop.permute.xlu0 %3252
    %v3256 = vsel %vm229, %v2616, %v3235
    %v3257 = vsel %vm229, %v2621, %v3237
    %v3258 = vsel %vm1138, %v3256, %v3243
    %v3259 = vsel %vm1138, %v3257, %v3245
    %v3260 = vsel %vm1141, %v3258, %v3251
    %v3261 = vsel %vm1141, %v3259, %v3253
    %v3263 = vlaneseq
    %v3264 = vshrl.u32 %v3263, 7
    %v3265 = vsub.s32 0, %v3264
    %v3266 = vrot.slane %v2261, %v3265
    %3268 = vmatprep.subr.mxu0 0.0
    %3269 = vmatpush1.msra.mxu0 %v2260
    %3270 = vmatprep.subr.mxu0 0.0
    %3271 = vmatpush1.msra.mxu0 %v2259
    %3272 = vmatprep.subr.mxu0 0.0
    %3273 = vmatpush1.msra.mxu0 %v2258
    %3274 = vmatprep.subr.mxu0 0.0
    %3275 = vmatpush1.msra.mxu0 %v2257
    %3276 = vmatprep.subr.mxu0 0.0
    %3277 = vmatpush1.msra.mxu0 %v2256
    %3278 = vmatprep.subr.mxu0 0.0
    %3279 = vmatpush1.msra.mxu0 %v2255
    %3280 = vmatprep.subr.mxu0 0.0
    %3281 = vmatpush1.msra.mxu0 %v2254
    %3282 = vmatprep.subr.mxu0 0.0
    %3283 = vmatpush1.msra.mxu0 %v2253
    %3284 = vmatprep.subr.mxu0 0.0
    %3285 = vmatpush1.msra.mxu0 %v2252
    %3286 = vmatprep.subr.mxu0 0.0
    %3287 = vmatpush1.msra.mxu0 %v2251
    %3288 = vmatprep.subr.mxu0 0.0
    %3289 = vmatpush1.msra.mxu0 %v2250
    %3290 = vmatprep.subr.mxu0 0.0
    %3291 = vmatpush1.msra.mxu0 %v2249
    %3292 = vmatprep.subr.mxu0 0.0
    %3293 = vmatpush1.msra.mxu0 %v2248
    %3294 = vmatprep.subr.mxu0 0.0
    %3295 = vmatpush1.msra.mxu0 %v2247
    %3296 = vmatprep.subr.mxu0 0.0
    %3297 = vmatpush1.msra.mxu0 %v2246
    %3298 = vmatprep.subr.mxu0 0.0
    %3299 = vmatpush1.msra.mxu0 %v2245
    %3300 = vmatprep.subr.mxu0 0.0
    %3301 = vmatpush2.msra.mxu0 0.0
    %3302 = vmatprep.subr.mxu0 0.0
    %3303 = vmatpush2.msra.mxu0 0.0
    %3304 = vmatprep.subr.mxu0 0.0
    %3305 = vmatpush2.msra.mxu0 0.0
    %3306 = vmatprep.subr.mxu0 0.0
    %3307 = vmatpush2.msra.mxu0 0.0
    %3308 = vmatprep.subr.mxu0 0.0
    %3309 = vmatpush2.msra.mxu0 0.0
    %3310 = vmatprep.subr.mxu0 0.0
    %3311 = vmatpush2.msra.mxu0 0.0
    %3312 = vmatprep.subr.mxu0 0.0
    %3313 = vmatpush2.msra.mxu0 0.0
    %3314 = vmatprep.subr.mxu0 0.0
    %3315 = vmatpush2.msra.mxu0 0.0
    %3316 = vmatprep.subr.mxu0 0.0
    %3317 = vmatpush2.msra.mxu0 0.0
    %3318 = vmatprep.subr.mxu0 0.0
    %3319 = vmatpush2.msra.mxu0 0.0
    %3320 = vmatprep.subr.mxu0 0.0
    %3321 = vmatpush2.msra.mxu0 0.0
    %3322 = vmatprep.subr.mxu0 0.0
    %3323 = vmatpush2.msra.mxu0 0.0
    %3324 = vmatprep.subr.mxu0 0.0
    %3325 = vmatpush2.msra.mxu0 0.0
    %3326 = vmatprep.subr.mxu0 0.0
    %3327 = vmatpush2.msra.mxu0 0.0
    %3328 = vmatprep.subr.mxu0 0.0
    %3329 = vmatpush2.msra.mxu0 0.0
    %3330 = vmatprep.subr.mxu0 0.0
    %3331 = vmatpush2.msra.mxu0 0.0
    %3332 = vmatprep.mubr.f32.mxu0 0.0
    %3333 = vmatmul.mubr.f32.gmra.mxu0 %v3260
    %v3334 = vpop.f32.mrf.mxu0
    %v3335 = vadd.f32 %v3266, %v3334
    %v3336 = vpop.f32.mrf.mxu0
    %3337 = vmatprep.mubr.f32.mxu0 0.0
    %3338 = vmatmul.mubr.f32.gmra.mxu0 %v3261
    %v3339 = vpop.f32.mrf.mxu0
    %v3340 = vadd.f32 %v3266, %v3339
    %v3341 = vpop.f32.mrf.mxu0
    %3342 = vdwg.mxu0
    %v3343 = vadd.f32 %v3335, %v2194
    %v3344 = vadd.f32 %v3340, %v2195
    %3345 = vadd.xlane.f32.xlu0 %v3343
    %v3346 = vpop.xlane.xlu0 %3345
    %3347 = vadd.xlane.f32.xlu0 %v3344
    %v3348 = vpop.xlane.xlu0 %3347
    %v3349 = vrcp.pop 128.0
    %v3350 = vmul.f32 %v3346, %v3349
    %v3351 = vmul.f32 %v3348, %v3349
    %v3352 = vsub.f32 %v3343, %v3350
    %v3353 = vsub.f32 %v3344, %v3351
    %v3354 = vmul.f32 %v3352, %v3352
    %v3355 = vmul.f32 %v3353, %v3353
    %3356 = vadd.xlane.f32.xlu0 %v3354
    %v3357 = vpop.xlane.xlu0 %3356
    %3358 = vadd.xlane.f32.xlu0 %v3355
    %v3359 = vpop.xlane.xlu0 %3358
    %v3360 = vmul.f32 %v3357, %v3349
    %v3361 = vmul.f32 %v3359, %v3349
    %v3362 = vadd.f32 %v3360, 1e-05
    %v3363 = vadd.f32 %v3361, 1e-05
    %v3364 = vrsqrt.pop %v3362
    %v3365 = vrsqrt.pop %v3363
    %v3366 = vmul.f32 %v3352, %v3364
    %v3367 = vmul.f32 %v3353, %v3365
    %v3369 = vlaneseq
    %v3370 = vshrl.u32 %v3369, 7
    %v3371 = vsub.s32 0, %v3370
    %v3372 = vrot.slane %v2262, %v3371
    %v3374 = vmul.f32 %v3366, %v3372
    %v3375 = vmul.f32 %v3367, %v3372
    %v3377 = vlaneseq
    %v3378 = vshrl.u32 %v3377, 7
    %v3379 = vsub.s32 0, %v3378
    %v3380 = vrot.slane %v2263, %v3379
    %v3382 = vadd.f32 %v3374, %v3380
    %v3383 = vadd.f32 %v3375, %v3380
    %v3384 = vld [vmem:[%s10] sm:$0xff]
    %v3385 = vld [vmem:[%s10 + $0x8] sm:$0xff]
    %v3386 = vld [vmem:[%s10 + $0x10] sm:$0xff]
    %v3387 = vld [vmem:[%s10 + $0x18] sm:$0xff]
    %v3388 = vld [vmem:[%s10 + $0x20] sm:$0xff]
    %v3389 = vld [vmem:[%s10 + $0x28] sm:$0xff]
    %v3390 = vld [vmem:[%s10 + $0x30] sm:$0xff]
    %v3391 = vld [vmem:[%s10 + $0x38] sm:$0xff]
    %v3392 = vld [vmem:[%s10 + $0x40] sm:$0xff]
    %v3393 = vld [vmem:[%s10 + $0x48] sm:$0xff]
    %v3394 = vld [vmem:[%s10 + $0x50] sm:$0xff]
    %v3395 = vld [vmem:[%s10 + $0x58] sm:$0xff]
    %v3396 = vld [vmem:[%s10 + $0x60] sm:$0xff]
    %v3397 = vld [vmem:[%s10 + $0x68] sm:$0xff]
    %v3398 = vld [vmem:[%s10 + $0x70] sm:$0xff]
    %v3399 = vld [vmem:[%s10 + $0x78] sm:$0xff]
    %v3400 = vld [vmem:[%s11] sm:$0x1]
    %v3401 = vld [vmem:[%s12] sm:$0x1]
    %v3402 = vld [vmem:[%s13] sm:$0x1]
    %3403 = vmatprep.subr.mxu0 0.0
    %3404 = vmatpush1.msra.mxu0 %v3399
    %3405 = vmatprep.subr.mxu0 0.0
    %3406 = vmatpush1.msra.mxu0 %v3398
    %3407 = vmatprep.subr.mxu0 0.0
    %3408 = vmatpush1.msra.mxu0 %v3397
    %3409 = vmatprep.subr.mxu0 0.0
    %3410 = vmatpush1.msra.mxu0 %v3396
    %3411 = vmatprep.subr.mxu0 0.0
    %3412 = vmatpush1.msra.mxu0 %v3395
    %3413 = vmatprep.subr.mxu0 0.0
    %3414 = vmatpush1.msra.mxu0 %v3394
    %3415 = vmatprep.subr.mxu0 0.0
    %3416 = vmatpush1.msra.mxu0 %v3393
    %3417 = vmatprep.subr.mxu0 0.0
    %3418 = vmatpush1.msra.mxu0 %v3392
    %3419 = vmatprep.subr.mxu0 0.0
    %3420 = vmatpush1.msra.mxu0 %v3391
    %3421 = vmatprep.subr.mxu0 0.0
    %3422 = vmatpush1.msra.mxu0 %v3390
    %3423 = vmatprep.subr.mxu0 0.0
    %3424 = vmatpush1.msra.mxu0 %v3389
    %3425 = vmatprep.subr.mxu0 0.0
    %3426 = vmatpush1.msra.mxu0 %v3388
    %3427 = vmatprep.subr.mxu0 0.0
    %3428 = vmatpush1.msra.mxu0 %v3387
    %3429 = vmatprep.subr.mxu0 0.0
    %3430 = vmatpush1.msra.mxu0 %v3386
    %3431 = vmatprep.subr.mxu0 0.0
    %3432 = vmatpush1.msra.mxu0 %v3385
    %3433 = vmatprep.subr.mxu0 0.0
    %3434 = vmatpush1.msra.mxu0 %v3384
    %3435 = vmatprep.subr.mxu0 0.0
    %3436 = vmatpush2.msra.mxu0 0.0
    %3437 = vmatprep.subr.mxu0 0.0
    %3438 = vmatpush2.msra.mxu0 0.0
    %3439 = vmatprep.subr.mxu0 0.0
    %3440 = vmatpush2.msra.mxu0 0.0
    %3441 = vmatprep.subr.mxu0 0.0
    %3442 = vmatpush2.msra.mxu0 0.0
    %3443 = vmatprep.subr.mxu0 0.0
    %3444 = vmatpush2.msra.mxu0 0.0
    %3445 = vmatprep.subr.mxu0 0.0
    %3446 = vmatpush2.msra.mxu0 0.0
    %3447 = vmatprep.subr.mxu0 0.0
    %3448 = vmatpush2.msra.mxu0 0.0
    %3449 = vmatprep.subr.mxu0 0.0
    %3450 = vmatpush2.msra.mxu0 0.0
    %3451 = vmatprep.subr.mxu0 0.0
    %3452 = vmatpush2.msra.mxu0 0.0
    %3453 = vmatprep.subr.mxu0 0.0
    %3454 = vmatpush2.msra.mxu0 0.0
    %3455 = vmatprep.subr.mxu0 0.0
    %3456 = vmatpush2.msra.mxu0 0.0
    %3457 = vmatprep.subr.mxu0 0.0
    %3458 = vmatpush2.msra.mxu0 0.0
    %3459 = vmatprep.subr.mxu0 0.0
    %3460 = vmatpush2.msra.mxu0 0.0
    %3461 = vmatprep.subr.mxu0 0.0
    %3462 = vmatpush2.msra.mxu0 0.0
    %3463 = vmatprep.subr.mxu0 0.0
    %3464 = vmatpush2.msra.mxu0 0.0
    %3465 = vmatprep.subr.mxu0 0.0
    %3466 = vmatpush2.msra.mxu0 0.0
    %3467 = vmatprep.mubr.f32.mxu0 0.0
    %3468 = vmatmul.mubr.f32.gmra.mxu0 %v3382
    %v3469 = vpop.f32.mrf.mxu0
    %v3470 = vadd.f32 0.0, %v3469
    %v3471 = vpop.f32.mrf.mxu0
    %3472 = vmatprep.mubr.f32.mxu0 0.0
    %3473 = vmatmul.mubr.f32.gmra.mxu0 %v3383
    %v3474 = vpop.f32.mrf.mxu0
    %v3475 = vadd.f32 0.0, %v3474
    %v3476 = vpop.f32.mrf.mxu0
    %3477 = vdwg.mxu0
    %v3479 = vlaneseq
    %v3480 = vshrl.u32 %v3479, 7
    %v3481 = vsub.s32 0, %v3480
    %v3482 = vrot.slane %v3401, %v3481
    %v3484 = vmul.f32 %v3470, %v3482
    %v3485 = vmul.f32 %v3475, %v3482
    %v3486 = vsel %vm229, %v3484, 0.0
    %3487 = vadd.xlane.f32.xlu0 %v3486
    %v3488 = vpop.xlane.xlu0 %3487
    %v3489 = vsel %vm229, %v3485, 0.0
    %3490 = vadd.xlane.f32.xlu0 %v3489
    %v3491 = vpop.xlane.xlu0 %3490
    %v3493 = vsel %vm229, %v3400, 0
    %v3496 = vsel %vm229, %v3470, 0
    %v3499 = vsel %vm229, %v3475, 0
    %3501 = vmatprep.subr.mxu0 0.0
    %3502 = vmatpush1.xpose.msra.mxu0 0.0
    %3503 = vmatprep.subr.mxu0 0.0
    %3504 = vmatpush1.xpose.msra.mxu0 0.0
    %3505 = vmatprep.subr.mxu0 0.0
    %3506 = vmatpush1.xpose.msra.mxu0 0.0
    %3507 = vmatprep.subr.mxu0 0.0
    %3508 = vmatpush1.xpose.msra.mxu0 0.0
    %3509 = vmatprep.subr.mxu0 0.0
    %3510 = vmatpush1.xpose.msra.mxu0 0.0
    %3511 = vmatprep.subr.mxu0 0.0
    %3512 = vmatpush1.xpose.msra.mxu0 0.0
    %3513 = vmatprep.subr.mxu0 0.0
    %3514 = vmatpush1.xpose.msra.mxu0 0.0
    %3515 = vmatprep.subr.mxu0 0.0
    %3516 = vmatpush1.xpose.msra.mxu0 0.0
    %3517 = vmatprep.subr.mxu0 0.0
    %3518 = vmatpush1.xpose.msra.mxu0 0.0
    %3519 = vmatprep.subr.mxu0 0.0
    %3520 = vmatpush1.xpose.msra.mxu0 0.0
    %3521 = vmatprep.subr.mxu0 0.0
    %3522 = vmatpush1.xpose.msra.mxu0 0.0
    %3523 = vmatprep.subr.mxu0 0.0
    %3524 = vmatpush1.xpose.msra.mxu0 0.0
    %3525 = vmatprep.subr.mxu0 0.0
    %3526 = vmatpush1.xpose.msra.mxu0 0.0
    %3527 = vmatprep.subr.mxu0 0.0
    %3528 = vmatpush1.xpose.msra.mxu0 0.0
    %3529 = vmatprep.subr.mxu0 0.0
    %3530 = vmatpush1.xpose.msra.mxu0 %v3499
    %3531 = vmatprep.subr.mxu0 0.0
    %3532 = vmatpush1.xpose.msra.mxu0 %v3496
    %3533 = vmatprep.subr.mxu0 0.0
    %3534 = vmatpush2.xpose.msra.mxu0 0.0
    %3535 = vmatprep.subr.mxu0 0.0
    %3536 = vmatpush2.xpose.msra.mxu0 0.0
    %3537 = vmatprep.subr.mxu0 0.0
    %3538 = vmatpush2.xpose.msra.mxu0 0.0
    %3539 = vmatprep.subr.mxu0 0.0
    %3540 = vmatpush2.xpose.msra.mxu0 0.0
    %3541 = vmatprep.subr.mxu0 0.0
    %3542 = vmatpush2.xpose.msra.mxu0 0.0
    %3543 = vmatprep.subr.mxu0 0.0
    %3544 = vmatpush2.xpose.msra.mxu0 0.0
    %3545 = vmatprep.subr.mxu0 0.0
    %3546 = vmatpush2.xpose.msra.mxu0 0.0
    %3547 = vmatprep.subr.mxu0 0.0
    %3548 = vmatpush2.xpose.msra.mxu0 0.0
    %3549 = vmatprep.subr.mxu0 0.0
    %3550 = vmatpush2.xpose.msra.mxu0 0.0
    %3551 = vmatprep.subr.mxu0 0.0
    %3552 = vmatpush2.xpose.msra.mxu0 0.0
    %3553 = vmatprep.subr.mxu0 0.0
    %3554 = vmatpush2.xpose.msra.mxu0 0.0
    %3555 = vmatprep.subr.mxu0 0.0
    %3556 = vmatpush2.xpose.msra.mxu0 0.0
    %3557 = vmatprep.subr.mxu0 0.0
    %3558 = vmatpush2.xpose.msra.mxu0 0.0
    %3559 = vmatprep.subr.mxu0 0.0
    %3560 = vmatpush2.xpose.msra.mxu0 0.0
    %3561 = vmatprep.subr.mxu0 0.0
    %3562 = vmatpush2.xpose.msra.mxu0 0.0
    %3563 = vmatprep.subr.mxu0 0.0
    %3564 = vmatpush2.xpose.msra.mxu0 0.0
    %3565 = vmatprep.mubr.f32.mxu0 0.0
    %3566 = vmatmul.mubr.f32.gmra.mxu0 %v3493
    %v3567 = vpop.f32.mrf.mxu0
    %v3568 = vadd.f32 0.0, %v3567
    %v3569 = vpop.f32.mrf.mxu0
    %3570 = vdwg.mxu0
    %v3571 = vlaneseq
    %v3572 = vshrl.u32 %v3571, 7
    %v3573 = vsub.s32 0, %v3572
    %v3574 = vrot.slane %v3568, %v3573
    %v3575 = vadd.f32 %v3488, %v3574
    %v3576 = vadd.f32 %v3491, %v3574
    %vm3577 = vcmp.gt.f32.partialorder %v3575, 0.0
    %vm3578 = vcmp.gt.f32.partialorder %v3576, 0.0
    %v3579 = vmul.f32 %v3575, 0.2
    %v3580 = vmul.f32 %v3576, 0.2
    %v3581 = vsel %vm3577, %v3575, %v3579
    %v3582 = vsel %vm3578, %v3576, %v3580
    %v3583 = vsel %vm132, %v3581, -1e+30
    %v3584 = vsel %vm133, %v3582, -1e+30
    %v3585 = vsel %vm141, %v3583, -inf
    %3586 = vmax.xlane.f32.xlu0 %v3585
    %v3587 = vpop.xlane.xlu0 %3586
    %v3588 = vsel %vm141, %v3584, -inf
    %3589 = vmax.xlane.f32.xlu0 %v3588
    %v3590 = vpop.xlane.xlu0 %3589
    %v3591 = vsub.f32 %v3583, %v3587
    %v3592 = vsub.f32 %v3584, %v3590
    %v3593 = vmul.f32 %v3591, 1.442695
    %v3594 = vpow.pop %v3593
    %v3595 = vmul.f32 %v3592, 1.442695
    %v3596 = vpow.pop %v3595
    %v3597 = vsel %vm132, %v3594, 0.0
    %v3598 = vsel %vm133, %v3596, 0.0
    %v3599 = vsel %vm141, %v3597, 0.0
    %3600 = vadd.xlane.f32.xlu0 %v3599
    %v3601 = vpop.xlane.xlu0 %3600
    %v3602 = vsel %vm141, %v3598, 0.0
    %3603 = vadd.xlane.f32.xlu0 %v3602
    %v3604 = vpop.xlane.xlu0 %3603
    %v3605 = vrcp.pop %v3601
    %v3606 = vrcp.pop %v3604
    %v3607 = vmul.f32 %v3597, %v3605
    %v3608 = vmul.f32 %v3598, %v3606
    %v3610 = vlaneseq
    %v3611 = vshrl.u32 %v3610, 7
    %v3612 = vsub.s32 0, %v3611
    %v3613 = vrot.slane %v3402, %v3612
    %v3616 = vsel %vm141, %v3607, 0
    %v3619 = vsel %vm141, %v3608, 0
    %3621 = vmatprep.subr.mxu0 0.0
    %3622 = vmatpush1.msra.mxu0 0.0
    %3623 = vmatprep.subr.mxu0 0.0
    %3624 = vmatpush1.msra.mxu0 0.0
    %3625 = vmatprep.subr.mxu0 0.0
    %3626 = vmatpush1.msra.mxu0 0.0
    %3627 = vmatprep.subr.mxu0 0.0
    %3628 = vmatpush1.msra.mxu0 0.0
    %3629 = vmatprep.subr.mxu0 0.0
    %3630 = vmatpush1.msra.mxu0 0.0
    %3631 = vmatprep.subr.mxu0 0.0
    %3632 = vmatpush1.msra.mxu0 0.0
    %3633 = vmatprep.subr.mxu0 0.0
    %3634 = vmatpush1.msra.mxu0 0.0
    %3635 = vmatprep.subr.mxu0 0.0
    %3636 = vmatpush1.msra.mxu0 0.0
    %3637 = vmatprep.subr.mxu0 0.0
    %3638 = vmatpush1.msra.mxu0 0.0
    %3639 = vmatprep.subr.mxu0 0.0
    %3640 = vmatpush1.msra.mxu0 0.0
    %3641 = vmatprep.subr.mxu0 0.0
    %3642 = vmatpush1.msra.mxu0 0.0
    %3643 = vmatprep.subr.mxu0 0.0
    %3644 = vmatpush1.msra.mxu0 0.0
    %3645 = vmatprep.subr.mxu0 0.0
    %3646 = vmatpush1.msra.mxu0 0.0
    %3647 = vmatprep.subr.mxu0 0.0
    %3648 = vmatpush1.msra.mxu0 0.0
    %3649 = vmatprep.subr.mxu0 0.0
    %3650 = vmatpush1.msra.mxu0 %v3475
    %3651 = vmatprep.subr.mxu0 0.0
    %3652 = vmatpush1.msra.mxu0 %v3470
    %3653 = vmatprep.subr.mxu0 0.0
    %3654 = vmatpush2.msra.mxu0 0.0
    %3655 = vmatprep.subr.mxu0 0.0
    %3656 = vmatpush2.msra.mxu0 0.0
    %3657 = vmatprep.subr.mxu0 0.0
    %3658 = vmatpush2.msra.mxu0 0.0
    %3659 = vmatprep.subr.mxu0 0.0
    %3660 = vmatpush2.msra.mxu0 0.0
    %3661 = vmatprep.subr.mxu0 0.0
    %3662 = vmatpush2.msra.mxu0 0.0
    %3663 = vmatprep.subr.mxu0 0.0
    %3664 = vmatpush2.msra.mxu0 0.0
    %3665 = vmatprep.subr.mxu0 0.0
    %3666 = vmatpush2.msra.mxu0 0.0
    %3667 = vmatprep.subr.mxu0 0.0
    %3668 = vmatpush2.msra.mxu0 0.0
    %3669 = vmatprep.subr.mxu0 0.0
    %3670 = vmatpush2.msra.mxu0 0.0
    %3671 = vmatprep.subr.mxu0 0.0
    %3672 = vmatpush2.msra.mxu0 0.0
    %3673 = vmatprep.subr.mxu0 0.0
    %3674 = vmatpush2.msra.mxu0 0.0
    %3675 = vmatprep.subr.mxu0 0.0
    %3676 = vmatpush2.msra.mxu0 0.0
    %3677 = vmatprep.subr.mxu0 0.0
    %3678 = vmatpush2.msra.mxu0 0.0
    %3679 = vmatprep.subr.mxu0 0.0
    %3680 = vmatpush2.msra.mxu0 0.0
    %3681 = vmatprep.subr.mxu0 0.0
    %3682 = vmatpush2.msra.mxu0 0.0
    %3683 = vmatprep.subr.mxu0 0.0
    %3684 = vmatpush2.msra.mxu0 0.0
    %3685 = vmatprep.mubr.f32.mxu0 0.0
    %3686 = vmatmul.mubr.f32.gmra.mxu0 %v3616
    %v3687 = vpop.f32.mrf.mxu0
    %v3688 = vadd.f32 %v3613, %v3687
    %v3689 = vpop.f32.mrf.mxu0
    %3690 = vmatprep.mubr.f32.mxu0 0.0
    %3691 = vmatmul.mubr.f32.gmra.mxu0 %v3619
    %v3692 = vpop.f32.mrf.mxu0
    %v3693 = vadd.f32 %v3613, %v3692
    %v3694 = vpop.f32.mrf.mxu0
    %3695 = vdwg.mxu0
    %3696 = vst.msk [vmem:[#allocation11] sm:$0xff] %vm229, %v3688
    %3697 = vst.msk [vmem:[#allocation11 + $0x8] sm:$0xff] %vm229, %v3693
    // Predicated region
    $region102: #{tpu_custom_call.1} parent=1 // pred_check
      _
    $region103: #{tpu_custom_call.1} parent=1 // pred_check_branch
      %3699 = sbr.rel (0) target = $region105
    $region104: #{tpu_custom_call.1} parent=1 // pred_region
      %s3701 = ssub.s32 256, 256
      %3702 = vsyncadd [#allocation4], %s3701
      %s3703 = sshll.u32 [#allocation11], 4
      %s3704 = int_to_ptr.vmem [resolvable:$true] %s3703
      %3709 = dma.vmem_to_hbm [thread:$0]  %s3704, 256, %s20, [#allocation4], 128, 128, 8
    $region105: #{tpu_custom_call.1} parent=1 // pred_fallthru
      _
    // Predicated region
    $region106: #{tpu_custom_call.1} parent=1 // pred_check
      _
    $region107: #{tpu_custom_call.1} parent=1 // pred_check_branch
      %3711 = sbr.rel (0) target = $region109
    $region108: #{tpu_custom_call.1} parent=1 // pred_region
      %3712 = dma.done [#allocation4], 256
    $region109: #{tpu_custom_call.1} parent=1 // pred_fallthru
      _
    %3713 = vsyncpa [#allocation3], 1
    %3714 = vsyncpa [#allocation6], 1
    %3715 = vsyncpa [#allocation9], 1
    %3716 = vsyncpa [#allocation4], 1

</llo_original>
